<compile_context>
chip_gen: v5e
topology: v5e:2x2
jax: 0.10.0
libtpu: 0.0.40
codegen_flags: <defaults>
</compile_context>

<pallas_src>
import jax
import jax.numpy as jnp
from jax.experimental import pallas as pl
from jax.experimental.pallas import tpu as pltpu

FEATURE_SIZE = (2, 2)   # adaptive-pool target of the facial-dynamics branch
COMPRESS_DIM = 64       # scaled-down stand-in for the original COMPRESS_DIM
STEM_CH = 32            # stem conv output channels per branch (scaled down)
ID_DIM = 32             # identity code width (scaled down)
N_BRANCH = 4            # app / id / pose / dyn
FUSED_CH = N_BRANCH * STEM_CH              # 128 -> lane-dense stem output
N_WIN = FEATURE_SIZE[0] * FEATURE_SIZE[1]  # 4 adaptive-pool windows
HEAD_OUT = ID_DIM + 6 + COMPRESS_DIM       # 102 useful head columns
HEAD_OUT_PAD = 128                         # padded to a full lane width
HEAD_ROWS = 8                              # sublane-padded head rows per batch


# ---------------------------- Pallas kernel ----------------------------

def _make_encoder_kernel(Wp, C, N):
    """Build the fused stem+pool+heads kernel for one batch element per step.

    x_ref   : (1, Npad, C)  bf16   padded NHWC input, spatial flattened
    w_ref   : (9, C, 128)   bf16   [app|id|pose|dyn] 3x3 stem weights per tap
    b_ref   : (1, 128)      f32    stem bias
    pool_ref: (4, N)        bf16   adaptive 2x2 window-mean matrix
    hw_ref  : (4, 128, 128) bf16   per-window block of the fused head matrix
    hb_ref  : (1, 128)      f32    fused head bias
    app_ref : (N, 32)       bf16   out: appearance channels only
    head_ref: (8, 128)      f32    out: [id | rot | trans | dyn | pad], 8 rows
    acc_ref : (N, 128)      f32    VMEM scratch accumulator
    """

    def kernel(x_ref, w_ref, b_ref, pool_ref, hw_ref, hb_ref,
               app_ref, head_ref, acc_ref):
        # --- fused 4-branch 3x3 conv stem: 9 shifted K=C_in dots (in-kernel
        #     im2col; no patch matrix ever hits HBM) ---
        acc_ref[...] = jnp.broadcast_to(b_ref[...], acc_ref.shape)
        for k in range(9):
            kh, kw = divmod(k, 3)
            off = kh * Wp + kw
            chunk = x_ref[0, pl.ds(off, N), :]          # (N, C) shifted view
            acc_ref[...] += jnp.dot(chunk, w_ref[k],
                                    preferred_element_type=jnp.float32)
        y = jnp.maximum(acc_ref[...], 0.0)              # ReLU epilogue (f32)
        y_bf = y.astype(jnp.bfloat16)

        # appearance branch: write ONLY the 32 consumed channels, in bf16
        app_ref[...] = y_bf[:, :STEM_CH]

        # fused adaptive 2x2 pooling as one bf16 MXU dot (f32 accumulation);
        # pool_mat rows zero out the per-row padding columns of the flat map.
        pooled = jnp.dot(pool_ref[...], y_bf,
                         preferred_element_type=jnp.float32)   # (4, 128)
        pooled_bf = pooled.astype(jnp.bfloat16)

        # fused identity / head-pose / facial-dynamics heads:
        # sum over windows of (1,128)x(128,128) bf16 dots == (1,512)x(512,128)
        head = hb_ref[...]                               # (1, 128) f32
        for w in range(N_WIN):
            head = head + jnp.dot(pooled_bf[w:w + 1, :], hw_ref[w],
                                  preferred_element_type=jnp.float32)
        # pad to 8 sublanes so the store is one full unmasked vreg
        head_ref[...] = jnp.broadcast_to(head, head_ref.shape)

    return kernel


# ---------------------------- wrappers (glue) ----------------------------

def make_pool_matrix(H, W, Wp):
    """(N_WIN, H*Wp) window-mean matrix over the flat padded-width layout.

    Columns that fall on the 2 per-row padding positions get zero weight.
    Assumes H, W divisible by FEATURE_SIZE (matches adaptive_avg_pool2d then).
    """
    ph, pw = FEATURE_SIZE
    wh, ww = H // ph, W // pw
    p = jnp.arange(H * Wp)
    h = p // Wp
    w = p % Wp
    valid = w < W
    win = (h // wh) * pw + jnp.minimum(w, W - 1) // ww
    onehot = (win[None, :] == jnp.arange(ph * pw)[:, None]) & valid[None, :]
    return onehot.astype(jnp.float32) / float(wh * ww)


def fused_encoder(params, x):
    B, C, H, W = x.shape
    ph, pw = FEATURE_SIZE
    assert H % ph == 0 and W % pw == 0, "stand-in adaptive pool assumes divisibility"
    Hp, Wp = H + 2, W + 2
    N = H * Wp                         # working rows (W valid + 2 pad cols / row)
    assert N % 8 == 0
    # extra zero tail so every shifted slice [off, off+N) stays in-bounds
    Npad = -(-(Hp * Wp + Wp) // 8) * 8

    # NCHW -> padded NHWC -> (B, Npad, C) bf16: one small pad/reshape in XLA,
    # no 9x im2col blow-up in HBM.
    x_nhwc = jnp.transpose(x, (0, 2, 3, 1))
    x_p = jnp.pad(x_nhwc, ((0, 0), (1, 1), (1, 1), (0, 0)))
    x_flat = x_p.reshape(B, Hp * Wp, C)
    x_flat = jnp.pad(x_flat, ((0, 0), (0, Npad - Hp * Wp), (0, 0)))
    x_flat = x_flat.astype(jnp.bfloat16)

    pool_mat = make_pool_matrix(H, W, Wp).astype(jnp.bfloat16)  # 1/64 exact in bf16

    kernel = _make_encoder_kernel(Wp, C, N)
    # grid=(B,): >=2 parallel steps for v7x megacore; per-step VMEM use is tiny
    # on all of v5e/v6e/v7x at these sizes.  (For real image sizes, add an HW
    # tile axis + vmem_limit_bytes; on single-TC v5e/v6e prefer merged blocks.)
    app, head = pl.pallas_call(
        kernel,
        out_shape=(
            jax.ShapeDtypeStruct((B * N, STEM_CH), jnp.bfloat16),
            jax.ShapeDtypeStruct((B * HEAD_ROWS, HEAD_OUT_PAD), jnp.float32),
        ),
        grid_spec=pltpu.PrefetchScalarGridSpec(
            num_scalar_prefetch=0,
            grid=(B,),
            in_specs=[
                pl.BlockSpec((1, Npad, C), lambda b: (b, 0, 0)),
                pl.BlockSpec((9, C, FUSED_CH), lambda b: (0, 0, 0)),
                pl.BlockSpec((1, FUSED_CH), lambda b: (0, 0)),
                pl.BlockSpec((N_WIN, N), lambda b: (0, 0)),
                pl.BlockSpec((N_WIN, FUSED_CH, HEAD_OUT_PAD),
                             lambda b: (0, 0, 0)),
                pl.BlockSpec((1, HEAD_OUT_PAD), lambda b: (0, 0)),
            ],
            out_specs=[
                pl.BlockSpec((N, STEM_CH), lambda b: (b, 0)),
                pl.BlockSpec((HEAD_ROWS, HEAD_OUT_PAD), lambda b: (b, 0)),
            ],
            scratch_shapes=[pltpu.VMEM((N, FUSED_CH), jnp.float32)],
        ),
        compiler_params=pltpu.CompilerParams(
            dimension_semantics=("parallel",)),
    )(x_flat,
      params["stem_w"].astype(jnp.bfloat16),
      params["stem_b"],
      pool_mat,
      params["head_w"].astype(jnp.bfloat16),
      params["head_b"])
    return app, head


# ---------------------------- parameters ----------------------------

def init_params(key):
    ks = jax.random.split(key, 7)
    C_in = 3
    K = 9 * C_in

    def dense(k, fan_in, fan_out):
        return (jax.random.normal(k, (fan_in, fan_out), jnp.float32)
                * (1.0 / jnp.sqrt(jnp.float32(fan_in))))

    # Four branch stems fused along the output-channel axis:
    # channels [0:32]=app, [32:64]=id, [64:96]=pose, [96:128]=dyn.
    # Rows ordered (kh, kw, c_in) then reshaped to per-tap (9, C_in, 128).
    stem_w = jnp.concatenate([dense(ks[i], K, STEM_CH) for i in range(N_BRANCH)],
                             axis=1).reshape(9, C_in, FUSED_CH)
    stem_b = jnp.zeros((1, FUSED_CH), jnp.float32)

    id_w = dense(ks[4], STEM_CH, ID_DIM)
    pose_w = dense(ks[5], STEM_CH, 6)                  # headPoseEstimator.fc -> 6
    dyn_w = dense(ks[6], N_WIN * STEM_CH, COMPRESS_DIM).reshape(
        N_WIN, STEM_CH, COMPRESS_DIM)                  # facialDynamicsEncoder.fc
    id_b = jnp.zeros((ID_DIM,), jnp.float32)
    pose_b = jnp.zeros((6,), jnp.float32)
    dyn_b = jnp.zeros((COMPRESS_DIM,), jnp.float32)

    # Per-window head block (window-major over pooled features).  The 1/N_WIN
    # GAP factor for the identity / pose heads is folded into the weights.
    # Output columns: [0:32]=identity, [32:38]=pose (rot|trans), [38:102]=dyn.
    # NOTE: real facialDynamicsEncoder.fc checkpoints are channel-major over
    # the flattened pool output and would need a permutation before packing.
    head_w = jnp.zeros((N_WIN, FUSED_CH, HEAD_OUT_PAD), jnp.float32)
    for wi in range(N_WIN):
        head_w = head_w.at[wi, 32:64, 0:ID_DIM].set(id_w / N_WIN)
        head_w = head_w.at[wi, 64:96, ID_DIM:ID_DIM + 6].set(pose_w / N_WIN)
        head_w = head_w.at[wi, 96:128, ID_DIM + 6:HEAD_OUT].set(dyn_w[wi])
    head_b = jnp.zeros((1, HEAD_OUT_PAD), jnp.float32)
    head_b = head_b.at[0, 0:ID_DIM].set(id_b)
    head_b = head_b.at[0, ID_DIM:ID_DIM + 6].set(pose_b)
    head_b = head_b.at[0, ID_DIM + 6:HEAD_OUT].set(dyn_b)

    return {"stem_w": stem_w, "stem_b": stem_b,
            "head_w": head_w, "head_b": head_b}


# ---------------------------- forward ----------------------------

def face_encoder_forward(params, x):
    B, C, H, W = x.shape
    Wp = W + 2

    app, head = fused_encoder(params, x)

    # appearance branch: (B*H*Wp, 32) bf16 -> (B, 8, C//8, H, W) f32
    f_app = app.reshape(B, H, Wp, STEM_CH)[:, :, :W, :]
    appearance_volume = jnp.transpose(f_app, (0, 3, 1, 2)).astype(jnp.float32)
    appearance_volume = appearance_volume.reshape(B, 8, STEM_CH // 8, H, W)

    # identity / head-pose / facial-dynamics heads
    head = head.reshape(B, HEAD_ROWS, HEAD_OUT_PAD)[:, 0, :]
    identity_code = head[:, :ID_DIM]
    rotation = head[:, ID_DIM:ID_DIM + 3]
    translation = head[:, ID_DIM + 3:ID_DIM + 6]
    facial_dynamics = head[:, ID_DIM + 6:HEAD_OUT]

    return appearance_volume, identity_code, rotation, translation, facial_dynamics


if __name__ == "__main__":
    key = jax.random.PRNGKey(0)
    kx, kp = jax.random.split(key)
    x = jax.random.normal(kx, (2, 3, 16, 16), jnp.float32)     # NCHW like PyTorch
    params = init_params(kp)

    outs = jax.jit(face_encoder_forward)(params, x)
    outs = jax.block_until_ready(outs)

    appearance_volume, identity_code, rotation, translation, facial_dynamics = outs
    assert appearance_volume.shape == (2, 8, 4, 16, 16)
    assert identity_code.shape == (2, ID_DIM)
    assert rotation.shape == (2, 3)
    assert translation.shape == (2, 3)
    assert facial_dynamics.shape == (2, COMPRESS_DIM)
    assert all(bool(jnp.all(jnp.isfinite(o))) for o in outs)
    print("KERNEL_OK")
</pallas_src>

<mosaic_0001>
module attributes {stable_mosaic.version = 11 : i64} {
  func.func @kernel(%arg0: i32, %arg1: memref<1x344x3xbf16, #tpu.memory_space<vmem>>, %arg2: memref<9x3x128xbf16, #tpu.memory_space<vmem>>, %arg3: memref<1x128xf32, #tpu.memory_space<vmem>>, %arg4: memref<4x288xbf16, #tpu.memory_space<vmem>>, %arg5: memref<4x128x128xbf16, #tpu.memory_space<vmem>>, %arg6: memref<1x128xf32, #tpu.memory_space<vmem>>, %arg7: memref<288x32xbf16, #tpu.memory_space<vmem>>, %arg8: memref<8x128xf32, #tpu.memory_space<vmem>>, %arg9: memref<288x128xf32, #tpu.memory_space<vmem>>) attributes {dimension_semantics = [#tpu.dimension_semantics<parallel>], iteration_bounds = array<i64: 2>, scalar_prefetch = 0 : i64, scratch_operands = 1 : i64, tpu.core_type = #tpu.core_type<tc>, window_params = [{transform_indices = @transform_0, window_bounds = array<i64: 1, 344, 3>}, {pipeline_mode = #tpu.pipeline_mode<synchronous>, transform_indices = @transform_1, window_bounds = array<i64: 9, 3, 128>}, {pipeline_mode = #tpu.pipeline_mode<synchronous>, transform_indices = @transform_2, window_bounds = array<i64: 1, 128>}, {pipeline_mode = #tpu.pipeline_mode<synchronous>, transform_indices = @transform_3, window_bounds = array<i64: 4, 288>}, {pipeline_mode = #tpu.pipeline_mode<synchronous>, transform_indices = @transform_4, window_bounds = array<i64: 4, 128, 128>}, {pipeline_mode = #tpu.pipeline_mode<synchronous>, transform_indices = @transform_5, window_bounds = array<i64: 1, 128>}, {transform_indices = @transform_6, window_bounds = array<i64: 288, 32>}, {transform_indices = @transform_7, window_bounds = array<i64: 8, 128>}]} {
    %c0 = arith.constant 0 : index
    %c0_0 = arith.constant 0 : index
    %0 = vector.load %arg3[%c0, %c0_0] : memref<1x128xf32, #tpu.memory_space<vmem>>, vector<1x128xf32>
    %1 = vector.shape_cast %0 : vector<1x128xf32> to vector<1x128xf32>
    %2 = vector.broadcast %1 : vector<1x128xf32> to vector<288x128xf32>
    %c0_1 = arith.constant 0 : index
    %c0_2 = arith.constant 0 : index
    %3 = vector.load %arg9[%c0_1, %c0_2] : memref<288x128xf32, #tpu.memory_space<vmem>>, vector<288x128xf32>
    tpu.vector_store %arg9[%c0_1, %c0_2], %2 {strides = array<i32>} : memref<288x128xf32, #tpu.memory_space<vmem>>, vector<288x128xf32>,
    %c0_3 = arith.constant 0 : index
    %c0_4 = arith.constant 0 : index
    %c0_5 = arith.constant 0 : index
    %4 = vector.load %arg1[%c0_3, %c0_4, %c0_5] : memref<1x344x3xbf16, #tpu.memory_space<vmem>>, vector<1x288x3xbf16>
    %5 = vector.shape_cast %4 : vector<1x288x3xbf16> to vector<288x3xbf16>
    %c0_6 = arith.constant 0 : index
    %c0_7 = arith.constant 0 : index
    %6 = vector.load %arg9[%c0_6, %c0_7] : memref<288x128xf32, #tpu.memory_space<vmem>>, vector<288x128xf32>
    %c0_8 = arith.constant 0 : index
    %c0_9 = arith.constant 0 : index
    %c0_10 = arith.constant 0 : index
    %7 = vector.load %arg2[%c0_8, %c0_9, %c0_10] : memref<9x3x128xbf16, #tpu.memory_space<vmem>>, vector<1x3x128xbf16>
    %8 = vector.shape_cast %7 : vector<1x3x128xbf16> to vector<3x128xbf16>
    %cst = arith.constant dense<0.000000e+00> : vector<288x128xf32>
    %9 = tpu.matmul %5, %8, %cst {dimension_numbers = #tpu.dot_dimension_numbers<[1], [0], [0], [1], [0, 0, 1, 1], [], []>} : vector<288x3xbf16>, vector<3x128xbf16>, vector<288x128xf32> -> vector<288x128xf32>
    %10 = arith.addf %6, %9 : vector<288x128xf32>
    %c0_11 = arith.constant 0 : index
    %c0_12 = arith.constant 0 : index
    %11 = vector.load %arg9[%c0_11, %c0_12] : memref<288x128xf32, #tpu.memory_space<vmem>>, vector<288x128xf32>
    tpu.vector_store %arg9[%c0_11, %c0_12], %10 {strides = array<i32>} : memref<288x128xf32, #tpu.memory_space<vmem>>, vector<288x128xf32>,
    %c0_13 = arith.constant 0 : index
    %c1 = arith.constant 1 : index
    %c0_14 = arith.constant 0 : index
    %12 = vector.load %arg1[%c0_13, %c1, %c0_14] : memref<1x344x3xbf16, #tpu.memory_space<vmem>>, vector<1x288x3xbf16>
    %13 = vector.shape_cast %12 : vector<1x288x3xbf16> to vector<288x3xbf16>
    %c0_15 = arith.constant 0 : index
    %c0_16 = arith.constant 0 : index
    %14 = vector.load %arg9[%c0_15, %c0_16] : memref<288x128xf32, #tpu.memory_space<vmem>>, vector<288x128xf32>
    %c1_17 = arith.constant 1 : index
    %c0_18 = arith.constant 0 : index
    %c0_19 = arith.constant 0 : index
    %15 = vector.load %arg2[%c1_17, %c0_18, %c0_19] : memref<9x3x128xbf16, #tpu.memory_space<vmem>>, vector<1x3x128xbf16>
    %16 = vector.shape_cast %15 : vector<1x3x128xbf16> to vector<3x128xbf16>
    %cst_20 = arith.constant dense<0.000000e+00> : vector<288x128xf32>
    %17 = tpu.matmul %13, %16, %cst_20 {dimension_numbers = #tpu.dot_dimension_numbers<[1], [0], [0], [1], [0, 0, 1, 1], [], []>} : vector<288x3xbf16>, vector<3x128xbf16>, vector<288x128xf32> -> vector<288x128xf32>
    %18 = arith.addf %14, %17 : vector<288x128xf32>
    %c0_21 = arith.constant 0 : index
    %c0_22 = arith.constant 0 : index
    %19 = vector.load %arg9[%c0_21, %c0_22] : memref<288x128xf32, #tpu.memory_space<vmem>>, vector<288x128xf32>
    tpu.vector_store %arg9[%c0_21, %c0_22], %18 {strides = array<i32>} : memref<288x128xf32, #tpu.memory_space<vmem>>, vector<288x128xf32>,
    %c0_23 = arith.constant 0 : index
    %c2 = arith.constant 2 : index
    %c0_24 = arith.constant 0 : index
    %20 = vector.load %arg1[%c0_23, %c2, %c0_24] : memref<1x344x3xbf16, #tpu.memory_space<vmem>>, vector<1x288x3xbf16>
    %21 = vector.shape_cast %20 : vector<1x288x3xbf16> to vector<288x3xbf16>
    %c0_25 = arith.constant 0 : index
    %c0_26 = arith.constant 0 : index
    %22 = vector.load %arg9[%c0_25, %c0_26] : memref<288x128xf32, #tpu.memory_space<vmem>>, vector<288x128xf32>
    %c2_27 = arith.constant 2 : index
    %c0_28 = arith.constant 0 : index
    %c0_29 = arith.constant 0 : index
    %23 = vector.load %arg2[%c2_27, %c0_28, %c0_29] : memref<9x3x128xbf16, #tpu.memory_space<vmem>>, vector<1x3x128xbf16>
    %24 = vector.shape_cast %23 : vector<1x3x128xbf16> to vector<3x128xbf16>
    %cst_30 = arith.constant dense<0.000000e+00> : vector<288x128xf32>
    %25 = tpu.matmul %21, %24, %cst_30 {dimension_numbers = #tpu.dot_dimension_numbers<[1], [0], [0], [1], [0, 0, 1, 1], [], []>} : vector<288x3xbf16>, vector<3x128xbf16>, vector<288x128xf32> -> vector<288x128xf32>
    %26 = arith.addf %22, %25 : vector<288x128xf32>
    %c0_31 = arith.constant 0 : index
    %c0_32 = arith.constant 0 : index
    %27 = vector.load %arg9[%c0_31, %c0_32] : memref<288x128xf32, #tpu.memory_space<vmem>>, vector<288x128xf32>
    tpu.vector_store %arg9[%c0_31, %c0_32], %26 {strides = array<i32>} : memref<288x128xf32, #tpu.memory_space<vmem>>, vector<288x128xf32>,
    %c0_33 = arith.constant 0 : index
    %c18 = arith.constant 18 : index
    %c0_34 = arith.constant 0 : index
    %28 = vector.load %arg1[%c0_33, %c18, %c0_34] : memref<1x344x3xbf16, #tpu.memory_space<vmem>>, vector<1x288x3xbf16>
    %29 = vector.shape_cast %28 : vector<1x288x3xbf16> to vector<288x3xbf16>
    %c0_35 = arith.constant 0 : index
    %c0_36 = arith.constant 0 : index
    %30 = vector.load %arg9[%c0_35, %c0_36] : memref<288x128xf32, #tpu.memory_space<vmem>>, vector<288x128xf32>
    %c3 = arith.constant 3 : index
    %c0_37 = arith.constant 0 : index
    %c0_38 = arith.constant 0 : index
    %31 = vector.load %arg2[%c3, %c0_37, %c0_38] : memref<9x3x128xbf16, #tpu.memory_space<vmem>>, vector<1x3x128xbf16>
    %32 = vector.shape_cast %31 : vector<1x3x128xbf16> to vector<3x128xbf16>
    %cst_39 = arith.constant dense<0.000000e+00> : vector<288x128xf32>
    %33 = tpu.matmul %29, %32, %cst_39 {dimension_numbers = #tpu.dot_dimension_numbers<[1], [0], [0], [1], [0, 0, 1, 1], [], []>} : vector<288x3xbf16>, vector<3x128xbf16>, vector<288x128xf32> -> vector<288x128xf32>
    %34 = arith.addf %30, %33 : vector<288x128xf32>
    %c0_40 = arith.constant 0 : index
    %c0_41 = arith.constant 0 : index
    %35 = vector.load %arg9[%c0_40, %c0_41] : memref<288x128xf32, #tpu.memory_space<vmem>>, vector<288x128xf32>
    tpu.vector_store %arg9[%c0_40, %c0_41], %34 {strides = array<i32>} : memref<288x128xf32, #tpu.memory_space<vmem>>, vector<288x128xf32>,
    %c0_42 = arith.constant 0 : index
    %c19 = arith.constant 19 : index
    %c0_43 = arith.constant 0 : index
    %36 = vector.load %arg1[%c0_42, %c19, %c0_43] : memref<1x344x3xbf16, #tpu.memory_space<vmem>>, vector<1x288x3xbf16>
    %37 = vector.shape_cast %36 : vector<1x288x3xbf16> to vector<288x3xbf16>
    %c0_44 = arith.constant 0 : index
    %c0_45 = arith.constant 0 : index
    %38 = vector.load %arg9[%c0_44, %c0_45] : memref<288x128xf32, #tpu.memory_space<vmem>>, vector<288x128xf32>
    %c4 = arith.constant 4 : index
    %c0_46 = arith.constant 0 : index
    %c0_47 = arith.constant 0 : index
    %39 = vector.load %arg2[%c4, %c0_46, %c0_47] : memref<9x3x128xbf16, #tpu.memory_space<vmem>>, vector<1x3x128xbf16>
    %40 = vector.shape_cast %39 : vector<1x3x128xbf16> to vector<3x128xbf16>
    %cst_48 = arith.constant dense<0.000000e+00> : vector<288x128xf32>
    %41 = tpu.matmul %37, %40, %cst_48 {dimension_numbers = #tpu.dot_dimension_numbers<[1], [0], [0], [1], [0, 0, 1, 1], [], []>} : vector<288x3xbf16>, vector<3x128xbf16>, vector<288x128xf32> -> vector<288x128xf32>
    %42 = arith.addf %38, %41 : vector<288x128xf32>
    %c0_49 = arith.constant 0 : index
    %c0_50 = arith.constant 0 : index
    %43 = vector.load %arg9[%c0_49, %c0_50] : memref<288x128xf32, #tpu.memory_space<vmem>>, vector<288x128xf32>
    tpu.vector_store %arg9[%c0_49, %c0_50], %42 {strides = array<i32>} : memref<288x128xf32, #tpu.memory_space<vmem>>, vector<288x128xf32>,
    %c0_51 = arith.constant 0 : index
    %c20 = arith.constant 20 : index
    %c0_52 = arith.constant 0 : index
    %44 = vector.load %arg1[%c0_51, %c20, %c0_52] : memref<1x344x3xbf16, #tpu.memory_space<vmem>>, vector<1x288x3xbf16>
    %45 = vector.shape_cast %44 : vector<1x288x3xbf16> to vector<288x3xbf16>
    %c0_53 = arith.constant 0 : index
    %c0_54 = arith.constant 0 : index
    %46 = vector.load %arg9[%c0_53, %c0_54] : memref<288x128xf32, #tpu.memory_space<vmem>>, vector<288x128xf32>
    %c5 = arith.constant 5 : index
    %c0_55 = arith.constant 0 : index
    %c0_56 = arith.constant 0 : index
    %47 = vector.load %arg2[%c5, %c0_55, %c0_56] : memref<9x3x128xbf16, #tpu.memory_space<vmem>>, vector<1x3x128xbf16>
    %48 = vector.shape_cast %47 : vector<1x3x128xbf16> to vector<3x128xbf16>
    %cst_57 = arith.constant dense<0.000000e+00> : vector<288x128xf32>
    %49 = tpu.matmul %45, %48, %cst_57 {dimension_numbers = #tpu.dot_dimension_numbers<[1], [0], [0], [1], [0, 0, 1, 1], [], []>} : vector<288x3xbf16>, vector<3x128xbf16>, vector<288x128xf32> -> vector<288x128xf32>
    %50 = arith.addf %46, %49 : vector<288x128xf32>
    %c0_58 = arith.constant 0 : index
    %c0_59 = arith.constant 0 : index
    %51 = vector.load %arg9[%c0_58, %c0_59] : memref<288x128xf32, #tpu.memory_space<vmem>>, vector<288x128xf32>
    tpu.vector_store %arg9[%c0_58, %c0_59], %50 {strides = array<i32>} : memref<288x128xf32, #tpu.memory_space<vmem>>, vector<288x128xf32>,
    %c0_60 = arith.constant 0 : index
    %c36 = arith.constant 36 : index
    %c0_61 = arith.constant 0 : index
    %52 = vector.load %arg1[%c0_60, %c36, %c0_61] : memref<1x344x3xbf16, #tpu.memory_space<vmem>>, vector<1x288x3xbf16>
    %53 = vector.shape_cast %52 : vector<1x288x3xbf16> to vector<288x3xbf16>
    %c0_62 = arith.constant 0 : index
    %c0_63 = arith.constant 0 : index
    %54 = vector.load %arg9[%c0_62, %c0_63] : memref<288x128xf32, #tpu.memory_space<vmem>>, vector<288x128xf32>
    %c6 = arith.constant 6 : index
    %c0_64 = arith.constant 0 : index
    %c0_65 = arith.constant 0 : index
    %55 = vector.load %arg2[%c6, %c0_64, %c0_65] : memref<9x3x128xbf16, #tpu.memory_space<vmem>>, vector<1x3x128xbf16>
    %56 = vector.shape_cast %55 : vector<1x3x128xbf16> to vector<3x128xbf16>
    %cst_66 = arith.constant dense<0.000000e+00> : vector<288x128xf32>
    %57 = tpu.matmul %53, %56, %cst_66 {dimension_numbers = #tpu.dot_dimension_numbers<[1], [0], [0], [1], [0, 0, 1, 1], [], []>} : vector<288x3xbf16>, vector<3x128xbf16>, vector<288x128xf32> -> vector<288x128xf32>
    %58 = arith.addf %54, %57 : vector<288x128xf32>
    %c0_67 = arith.constant 0 : index
    %c0_68 = arith.constant 0 : index
    %59 = vector.load %arg9[%c0_67, %c0_68] : memref<288x128xf32, #tpu.memory_space<vmem>>, vector<288x128xf32>
    tpu.vector_store %arg9[%c0_67, %c0_68], %58 {strides = array<i32>} : memref<288x128xf32, #tpu.memory_space<vmem>>, vector<288x128xf32>,
    %c0_69 = arith.constant 0 : index
    %c37 = arith.constant 37 : index
    %c0_70 = arith.constant 0 : index
    %60 = vector.load %arg1[%c0_69, %c37, %c0_70] : memref<1x344x3xbf16, #tpu.memory_space<vmem>>, vector<1x288x3xbf16>
    %61 = vector.shape_cast %60 : vector<1x288x3xbf16> to vector<288x3xbf16>
    %c0_71 = arith.constant 0 : index
    %c0_72 = arith.constant 0 : index
    %62 = vector.load %arg9[%c0_71, %c0_72] : memref<288x128xf32, #tpu.memory_space<vmem>>, vector<288x128xf32>
    %c7 = arith.constant 7 : index
    %c0_73 = arith.constant 0 : index
    %c0_74 = arith.constant 0 : index
    %63 = vector.load %arg2[%c7, %c0_73, %c0_74] : memref<9x3x128xbf16, #tpu.memory_space<vmem>>, vector<1x3x128xbf16>
    %64 = vector.shape_cast %63 : vector<1x3x128xbf16> to vector<3x128xbf16>
    %cst_75 = arith.constant dense<0.000000e+00> : vector<288x128xf32>
    %65 = tpu.matmul %61, %64, %cst_75 {dimension_numbers = #tpu.dot_dimension_numbers<[1], [0], [0], [1], [0, 0, 1, 1], [], []>} : vector<288x3xbf16>, vector<3x128xbf16>, vector<288x128xf32> -> vector<288x128xf32>
    %66 = arith.addf %62, %65 : vector<288x128xf32>
    %c0_76 = arith.constant 0 : index
    %c0_77 = arith.constant 0 : index
    %67 = vector.load %arg9[%c0_76, %c0_77] : memref<288x128xf32, #tpu.memory_space<vmem>>, vector<288x128xf32>
    tpu.vector_store %arg9[%c0_76, %c0_77], %66 {strides = array<i32>} : memref<288x128xf32, #tpu.memory_space<vmem>>, vector<288x128xf32>,
    %c0_78 = arith.constant 0 : index
    %c38 = arith.constant 38 : index
    %c0_79 = arith.constant 0 : index
    %68 = vector.load %arg1[%c0_78, %c38, %c0_79] : memref<1x344x3xbf16, #tpu.memory_space<vmem>>, vector<1x288x3xbf16>
    %69 = vector.shape_cast %68 : vector<1x288x3xbf16> to vector<288x3xbf16>
    %c0_80 = arith.constant 0 : index
    %c0_81 = arith.constant 0 : index
    %70 = vector.load %arg9[%c0_80, %c0_81] : memref<288x128xf32, #tpu.memory_space<vmem>>, vector<288x128xf32>
    %c8 = arith.constant 8 : index
    %c0_82 = arith.constant 0 : index
    %c0_83 = arith.constant 0 : index
    %71 = vector.load %arg2[%c8, %c0_82, %c0_83] : memref<9x3x128xbf16, #tpu.memory_space<vmem>>, vector<1x3x128xbf16>
    %72 = vector.shape_cast %71 : vector<1x3x128xbf16> to vector<3x128xbf16>
    %cst_84 = arith.constant dense<0.000000e+00> : vector<288x128xf32>
    %73 = tpu.matmul %69, %72, %cst_84 {dimension_numbers = #tpu.dot_dimension_numbers<[1], [0], [0], [1], [0, 0, 1, 1], [], []>} : vector<288x3xbf16>, vector<3x128xbf16>, vector<288x128xf32> -> vector<288x128xf32>
    %74 = arith.addf %70, %73 : vector<288x128xf32>
    %c0_85 = arith.constant 0 : index
    %c0_86 = arith.constant 0 : index
    %75 = vector.load %arg9[%c0_85, %c0_86] : memref<288x128xf32, #tpu.memory_space<vmem>>, vector<288x128xf32>
    tpu.vector_store %arg9[%c0_85, %c0_86], %74 {strides = array<i32>} : memref<288x128xf32, #tpu.memory_space<vmem>>, vector<288x128xf32>,
    %c0_87 = arith.constant 0 : index
    %c0_88 = arith.constant 0 : index
    %76 = vector.load %arg9[%c0_87, %c0_88] : memref<288x128xf32, #tpu.memory_space<vmem>>, vector<288x128xf32>
    %cst_89 = arith.constant 0.000000e+00 : f32
    %77 = vector.broadcast %cst_89 : f32 to vector<288x128xf32>
    %78 = arith.maximumf %76, %77 : vector<288x128xf32>
    %79 = arith.truncf %78 : vector<288x128xf32> to vector<288x128xbf16>
    %80 = vector.extract_strided_slice %79 {offsets = [0, 0], sizes = [288, 32], strides = [1, 1]} : vector<288x128xbf16> to vector<288x32xbf16>
    %c0_90 = arith.constant 0 : index
    %c0_91 = arith.constant 0 : index
    %81 = vector.load %arg7[%c0_90, %c0_91] : memref<288x32xbf16, #tpu.memory_space<vmem>>, vector<288x32xbf16>
    tpu.vector_store %arg7[%c0_90, %c0_91], %80 {strides = array<i32>} : memref<288x32xbf16, #tpu.memory_space<vmem>>, vector<288x32xbf16>,
    %c0_92 = arith.constant 0 : index
    %c0_93 = arith.constant 0 : index
    %82 = vector.load %arg4[%c0_92, %c0_93] : memref<4x288xbf16, #tpu.memory_space<vmem>>, vector<4x288xbf16>
    %cst_94 = arith.constant dense<0.000000e+00> : vector<4x128xf32>
    %83 = tpu.matmul %82, %79, %cst_94 {dimension_numbers = #tpu.dot_dimension_numbers<[1], [0], [0], [1], [0, 0, 1, 1], [], []>} : vector<4x288xbf16>, vector<288x128xbf16>, vector<4x128xf32> -> vector<4x128xf32>
    %84 = arith.truncf %83 : vector<4x128xf32> to vector<4x128xbf16>
    %c0_95 = arith.constant 0 : index
    %c0_96 = arith.constant 0 : index
    %85 = vector.load %arg6[%c0_95, %c0_96] : memref<1x128xf32, #tpu.memory_space<vmem>>, vector<1x128xf32>
    %86 = vector.extract_strided_slice %84 {offsets = [0, 0], sizes = [1, 128], strides = [1, 1]} : vector<4x128xbf16> to vector<1x128xbf16>
    %c0_97 = arith.constant 0 : index
    %c0_98 = arith.constant 0 : index
    %c0_99 = arith.constant 0 : index
    %87 = vector.load %arg5[%c0_97, %c0_98, %c0_99] : memref<4x128x128xbf16, #tpu.memory_space<vmem>>, vector<1x128x128xbf16>
    %88 = vector.shape_cast %87 : vector<1x128x128xbf16> to vector<128x128xbf16>
    %cst_100 = arith.constant dense<0.000000e+00> : vector<1x128xf32>
    %89 = tpu.matmul %86, %88, %cst_100 {dimension_numbers = #tpu.dot_dimension_numbers<[1], [0], [0], [1], [0, 0, 1, 1], [], []>} : vector<1x128xbf16>, vector<128x128xbf16>, vector<1x128xf32> -> vector<1x128xf32>
    %90 = arith.addf %85, %89 : vector<1x128xf32>
    %91 = vector.extract_strided_slice %84 {offsets = [1, 0], sizes = [1, 128], strides = [1, 1]} : vector<4x128xbf16> to vector<1x128xbf16>
    %c1_101 = arith.constant 1 : index
    %c0_102 = arith.constant 0 : index
    %c0_103 = arith.constant 0 : index
    %92 = vector.load %arg5[%c1_101, %c0_102, %c0_103] : memref<4x128x128xbf16, #tpu.memory_space<vmem>>, vector<1x128x128xbf16>
    %93 = vector.shape_cast %92 : vector<1x128x128xbf16> to vector<128x128xbf16>
    %cst_104 = arith.constant dense<0.000000e+00> : vector<1x128xf32>
    %94 = tpu.matmul %91, %93, %cst_104 {dimension_numbers = #tpu.dot_dimension_numbers<[1], [0], [0], [1], [0, 0, 1, 1], [], []>} : vector<1x128xbf16>, vector<128x128xbf16>, vector<1x128xf32> -> vector<1x128xf32>
    %95 = arith.addf %90, %94 : vector<1x128xf32>
    %96 = vector.extract_strided_slice %84 {offsets = [2, 0], sizes = [1, 128], strides = [1, 1]} : vector<4x128xbf16> to vector<1x128xbf16>
    %c2_105 = arith.constant 2 : index
    %c0_106 = arith.constant 0 : index
    %c0_107 = arith.constant 0 : index
    %97 = vector.load %arg5[%c2_105, %c0_106, %c0_107] : memref<4x128x128xbf16, #tpu.memory_space<vmem>>, vector<1x128x128xbf16>
    %98 = vector.shape_cast %97 : vector<1x128x128xbf16> to vector<128x128xbf16>
    %cst_108 = arith.constant dense<0.000000e+00> : vector<1x128xf32>
    %99 = tpu.matmul %96, %98, %cst_108 {dimension_numbers = #tpu.dot_dimension_numbers<[1], [0], [0], [1], [0, 0, 1, 1], [], []>} : vector<1x128xbf16>, vector<128x128xbf16>, vector<1x128xf32> -> vector<1x128xf32>
    %100 = arith.addf %95, %99 : vector<1x128xf32>
    %101 = vector.extract_strided_slice %84 {offsets = [3, 0], sizes = [1, 128], strides = [1, 1]} : vector<4x128xbf16> to vector<1x128xbf16>
    %c3_109 = arith.constant 3 : index
    %c0_110 = arith.constant 0 : index
    %c0_111 = arith.constant 0 : index
    %102 = vector.load %arg5[%c3_109, %c0_110, %c0_111] : memref<4x128x128xbf16, #tpu.memory_space<vmem>>, vector<1x128x128xbf16>
    %103 = vector.shape_cast %102 : vector<1x128x128xbf16> to vector<128x128xbf16>
    %cst_112 = arith.constant dense<0.000000e+00> : vector<1x128xf32>
    %104 = tpu.matmul %101, %103, %cst_112 {dimension_numbers = #tpu.dot_dimension_numbers<[1], [0], [0], [1], [0, 0, 1, 1], [], []>} : vector<1x128xbf16>, vector<128x128xbf16>, vector<1x128xf32> -> vector<1x128xf32>
    %105 = arith.addf %100, %104 : vector<1x128xf32>
    %106 = vector.shape_cast %105 : vector<1x128xf32> to vector<1x128xf32>
    %107 = vector.broadcast %106 : vector<1x128xf32> to vector<8x128xf32>
    %c0_113 = arith.constant 0 : index
    %c0_114 = arith.constant 0 : index
    %108 = vector.load %arg8[%c0_113, %c0_114] : memref<8x128xf32, #tpu.memory_space<vmem>>, vector<8x128xf32>
    tpu.vector_store %arg8[%c0_113, %c0_114], %107 {strides = array<i32>} : memref<8x128xf32, #tpu.memory_space<vmem>>, vector<8x128xf32>,
    return
  }
  func.func @transform_0(%arg0: i32) -> (i32, i32, i32) {
    %c0_i32 = arith.constant 0 : i32
    %c0_i32_0 = arith.constant 0 : i32
    %c0_i32_1 = arith.constant 0 : i32
    return %arg0, %c0_i32, %c0_i32_0 : i32, i32, i32
  }
  func.func @transform_1(%arg0: i32) -> (i32, i32, i32) {
    %c0_i32 = arith.constant 0 : i32
    %c0_i32_0 = arith.constant 0 : i32
    %c0_i32_1 = arith.constant 0 : i32
    %c0_i32_2 = arith.constant 0 : i32
    return %c0_i32, %c0_i32_0, %c0_i32_1 : i32, i32, i32
  }
  func.func @transform_2(%arg0: i32) -> (i32, i32) {
    %c0_i32 = arith.constant 0 : i32
    %c0_i32_0 = arith.constant 0 : i32
    %c0_i32_1 = arith.constant 0 : i32
    return %c0_i32, %c0_i32_0 : i32, i32
  }
  func.func @transform_3(%arg0: i32) -> (i32, i32) {
    %c0_i32 = arith.constant 0 : i32
    %c0_i32_0 = arith.constant 0 : i32
    %c0_i32_1 = arith.constant 0 : i32
    return %c0_i32, %c0_i32_0 : i32, i32
  }
  func.func @transform_4(%arg0: i32) -> (i32, i32, i32) {
    %c0_i32 = arith.constant 0 : i32
    %c0_i32_0 = arith.constant 0 : i32
    %c0_i32_1 = arith.constant 0 : i32
    %c0_i32_2 = arith.constant 0 : i32
    return %c0_i32, %c0_i32_0, %c0_i32_1 : i32, i32, i32
  }
  func.func @transform_5(%arg0: i32) -> (i32, i32) {
    %c0_i32 = arith.constant 0 : i32
    %c0_i32_0 = arith.constant 0 : i32
    %c0_i32_1 = arith.constant 0 : i32
    return %c0_i32, %c0_i32_0 : i32, i32
  }
  func.func @transform_6(%arg0: i32) -> (i32, i32) {
    %c0_i32 = arith.constant 0 : i32
    %c0_i32_0 = arith.constant 0 : i32
    return %arg0, %c0_i32 : i32, i32
  }
  func.func @transform_7(%arg0: i32) -> (i32, i32) {
    %c0_i32 = arith.constant 0 : i32
    %c0_i32_0 = arith.constant 0 : i32
    return %arg0, %c0_i32 : i32, i32
  }
}

</mosaic_0001>

<llo_original>
// kernel: face_encoder_forward.1
$region0: #{face_encoder_forward.1}
  #allocation0 [shape = 'u32[]', space=smem, size = 0x4, offset = 0x4, fixed_abs, tag = 'smem constant byte address 0x4 - core index']
  #allocation1 [shape = 'u32[72,128]{1,0:T(1,128)}', space=vmem, size = 0x9000, scoped, tag = 'internal scratch']
  #allocation2 [shape = 'f32[288,128]{1,0:T(8,128)}', space=vmem, size = 0x24000, scoped, tag = 'scratch operand']
  %s0 = inlined_call_operand.vmem [shape: bf16[2,344,3], index: 0, kind: input, shape index: {}]
  %s1 = inlined_call_operand.vmem [shape: bf16[9,3,128], index: 1, kind: input, shape index: {}]
  %s2 = inlined_call_operand.vmem [shape: f32[1,128], index: 2, kind: input, shape index: {}]
  %s3 = inlined_call_operand.vmem [shape: bf16[4,288], index: 3, kind: input, shape index: {}]
  %s4 = inlined_call_operand.vmem [shape: bf16[4,128,128], index: 4, kind: input, shape index: {}]
  %s5 = inlined_call_operand.vmem [shape: f32[1,128], index: 5, kind: input, shape index: {}]
  %s6 = inlined_call_operand.vmem [shape: bf16[576,32], index: 6, kind: output, shape index: {0}]
  %s7 = inlined_call_operand.vmem [shape: f32[16,128], index: 7, kind: output, shape index: {1}]
  %8 = xla_tuple %s6, %s7
  %s9 = sld [smem:[#allocation0]]
  $region65: #{face_encoder_forward.1} parent=0
    _
  %s11 = ssub.s32 1, %s9
  %s12 = scalar_select 0, %s11, %s9
  loop: start=0, step=1, limit=4
  $region2: #{face_encoder_forward.1} parent=0 // loop_pre_header
    _
  $region3: #{face_encoder_forward.1} parent=0 // loop_header
    %s14 = sphi 0, %s18
    %p15 = scmp.ge.s32.totalorder %s14, 4
    %s24 = sphi 0, %s26
    %s27 = sphi 0, %s24
    %s28 = sphi 0, %s27
    %s44 = sphi 0, %s28
    %s48 = sphi 0, %s48
    %s50 = sphi 0, %s48
    %s51 = sphi 0, %s50
    %s65 = sphi 0, %s51
    %s69 = sphi 0, %s69
    %s71 = sphi 0, %s69
    %s72 = sphi 0, %s71
    %s86 = sphi 0, %s72
    %s90 = sphi 0, %s90
    %s92 = sphi 0, %s90
    %s93 = sphi 0, %s92
    %s107 = sphi 0, %s93
    %s111 = sphi 0, %s111
    %s113 = sphi 0, %s111
    %s114 = sphi 0, %s113
    %s128 = sphi 0, %s114
    %s132 = sphi 0, %s132
    %s134 = sphi 0, %s132
    %s135 = sphi 0, %s134
    %s149 = sphi 0, %s135
    %s155 = sphi 0, %s157
    %s158 = sphi 0, %s155
    %s159 = sphi 0, %s158
    %s175 = sphi 0, %s159
    %s181 = sphi 0, %s183
    %s184 = sphi 0, %s181
    %s185 = sphi 0, %s184
    %s201 = sphi 0, %s185
  $region4: #{face_encoder_forward.1} parent=0 // loop_header_branch
    %17 = sbr.rel (%p15) target = $region8
  $region5: #{face_encoder_forward.1} parent=0 // loop_body
    %s19 = ssub.s32 %s14, 1
    %s20 = ssub.s32 %s14, 2
    %s21 = sadd.s32 %s14, 1
    %s22 = ssub.s32 %s14, %s21
    %p23 = scmp.eq.s32.totalorder %s22, 0
    %s25 = sadd.s32 %s24, 1
    %s26 = scalar_select %p23, %s24, %s25
    %p29 = pneg %p23
    %p30 = scmp.eq.s32.totalorder %s14, 1
    %p31 = por %p29, %p30
    %p32 = scmp.ne.s32.totalorder %s24, %s27
    %p33 = scmp.eq.s32.totalorder %s14, 0
    %p34 = por %p32, %p33
    %p35 = scmp.ne.s32.totalorder %s24, %s27
    %p36 = scmp.eq.s32.totalorder %s19, 1
    %p37 = por %p35, %p36
    %p38 = scmp.ne.s32.totalorder %s27, %s28
    %p39 = scmp.eq.s32.totalorder %s19, 0
    %p40 = por %p38, %p39
    %p41 = scmp.ne.s32.totalorder %s27, %s28
    %p42 = scmp.eq.s32.totalorder %s20, 1
    %p43 = por %p41, %p42
    %p45 = scmp.ne.s32.totalorder %s28, %s44
    %p46 = scmp.eq.s32.totalorder %s20, 0
    %p47 = por %p45, %p46
    %s49 = sadd.s32 %s48, 1
    %p52 = scmp.eq.s32.totalorder %s14, 1
    %p53 = scmp.ne.s32.totalorder %s48, %s50
    %p54 = scmp.eq.s32.totalorder %s14, 0
    %p55 = por %p53, %p54
    %p56 = scmp.ne.s32.totalorder %s48, %s50
    %p57 = scmp.eq.s32.totalorder %s19, 1
    %p58 = por %p56, %p57
    %p59 = scmp.ne.s32.totalorder %s50, %s51
    %p60 = scmp.eq.s32.totalorder %s19, 0
    %p61 = por %p59, %p60
    %p62 = scmp.ne.s32.totalorder %s50, %s51
    %p63 = scmp.eq.s32.totalorder %s20, 1
    %p64 = por %p62, %p63
    %p66 = scmp.ne.s32.totalorder %s51, %s65
    %p67 = scmp.eq.s32.totalorder %s20, 0
    %p68 = por %p66, %p67
    %s70 = sadd.s32 %s69, 1
    %p73 = scmp.eq.s32.totalorder %s14, 1
    %p74 = scmp.ne.s32.totalorder %s69, %s71
    %p75 = scmp.eq.s32.totalorder %s14, 0
    %p76 = por %p74, %p75
    %p77 = scmp.ne.s32.totalorder %s69, %s71
    %p78 = scmp.eq.s32.totalorder %s19, 1
    %p79 = por %p77, %p78
    %p80 = scmp.ne.s32.totalorder %s71, %s72
    %p81 = scmp.eq.s32.totalorder %s19, 0
    %p82 = por %p80, %p81
    %p83 = scmp.ne.s32.totalorder %s71, %s72
    %p84 = scmp.eq.s32.totalorder %s20, 1
    %p85 = por %p83, %p84
    %p87 = scmp.ne.s32.totalorder %s72, %s86
    %p88 = scmp.eq.s32.totalorder %s20, 0
    %p89 = por %p87, %p88
    %s91 = sadd.s32 %s90, 1
    %p94 = scmp.eq.s32.totalorder %s14, 1
    %p95 = scmp.ne.s32.totalorder %s90, %s92
    %p96 = scmp.eq.s32.totalorder %s14, 0
    %p97 = por %p95, %p96
    %p98 = scmp.ne.s32.totalorder %s90, %s92
    %p99 = scmp.eq.s32.totalorder %s19, 1
    %p100 = por %p98, %p99
    %p101 = scmp.ne.s32.totalorder %s92, %s93
    %p102 = scmp.eq.s32.totalorder %s19, 0
    %p103 = por %p101, %p102
    %p104 = scmp.ne.s32.totalorder %s92, %s93
    %p105 = scmp.eq.s32.totalorder %s20, 1
    %p106 = por %p104, %p105
    %p108 = scmp.ne.s32.totalorder %s93, %s107
    %p109 = scmp.eq.s32.totalorder %s20, 0
    %p110 = por %p108, %p109
    %s112 = sadd.s32 %s111, 1
    %p115 = scmp.eq.s32.totalorder %s14, 1
    %p116 = scmp.ne.s32.totalorder %s111, %s113
    %p117 = scmp.eq.s32.totalorder %s14, 0
    %p118 = por %p116, %p117
    %p119 = scmp.ne.s32.totalorder %s111, %s113
    %p120 = scmp.eq.s32.totalorder %s19, 1
    %p121 = por %p119, %p120
    %p122 = scmp.ne.s32.totalorder %s113, %s114
    %p123 = scmp.eq.s32.totalorder %s19, 0
    %p124 = por %p122, %p123
    %p125 = scmp.ne.s32.totalorder %s113, %s114
    %p126 = scmp.eq.s32.totalorder %s20, 1
    %p127 = por %p125, %p126
    %p129 = scmp.ne.s32.totalorder %s114, %s128
    %p130 = scmp.eq.s32.totalorder %s20, 0
    %p131 = por %p129, %p130
    %s133 = sadd.s32 %s132, 1
    %p136 = scmp.eq.s32.totalorder %s14, 1
    %p137 = scmp.ne.s32.totalorder %s132, %s134
    %p138 = scmp.eq.s32.totalorder %s14, 0
    %p139 = por %p137, %p138
    %p140 = scmp.ne.s32.totalorder %s132, %s134
    %p141 = scmp.eq.s32.totalorder %s19, 1
    %p142 = por %p140, %p141
    %p143 = scmp.ne.s32.totalorder %s134, %s135
    %p144 = scmp.eq.s32.totalorder %s19, 0
    %p145 = por %p143, %p144
    %p146 = scmp.ne.s32.totalorder %s134, %s135
    %p147 = scmp.eq.s32.totalorder %s20, 1
    %p148 = por %p146, %p147
    %p150 = scmp.ne.s32.totalorder %s135, %s149
    %p151 = scmp.eq.s32.totalorder %s20, 0
    %p152 = por %p150, %p151
    %s153 = ssub.s32 %s14, %s21
    %p154 = scmp.eq.s32.totalorder %s153, 0
    %s156 = sadd.s32 %s155, 1
    %s157 = scalar_select %p154, %s155, %s156
    %p160 = pneg %p154
    %p161 = scmp.eq.s32.totalorder %s14, 1
    %p162 = por %p160, %p161
    %p163 = scmp.ne.s32.totalorder %s155, %s158
    %p164 = scmp.eq.s32.totalorder %s14, 0
    %p165 = por %p163, %p164
    %p166 = scmp.ne.s32.totalorder %s155, %s158
    %p167 = scmp.eq.s32.totalorder %s19, 1
    %p168 = por %p166, %p167
    %p169 = scmp.ne.s32.totalorder %s158, %s159
    %p170 = scmp.eq.s32.totalorder %s19, 0
    %p171 = por %p169, %p170
    %p172 = scmp.ne.s32.totalorder %s158, %s159
    %p173 = scmp.eq.s32.totalorder %s20, 1
    %p174 = por %p172, %p173
    %p176 = scmp.ne.s32.totalorder %s159, %s175
    %p177 = scmp.eq.s32.totalorder %s20, 0
    %p178 = por %p176, %p177
    %s179 = ssub.s32 %s14, %s21
    %p180 = scmp.eq.s32.totalorder %s179, 0
    %s182 = sadd.s32 %s181, 1
    %s183 = scalar_select %p180, %s181, %s182
    %p186 = pneg %p180
    %p187 = scmp.eq.s32.totalorder %s14, 1
    %p188 = por %p186, %p187
    %p189 = scmp.ne.s32.totalorder %s181, %s184
    %p190 = scmp.eq.s32.totalorder %s14, 0
    %p191 = por %p189, %p190
    %p192 = scmp.ne.s32.totalorder %s181, %s184
    %p193 = scmp.eq.s32.totalorder %s19, 1
    %p194 = por %p192, %p193
    %p195 = scmp.ne.s32.totalorder %s184, %s185
    %p196 = scmp.eq.s32.totalorder %s19, 0
    %p197 = por %p195, %p196
    %p198 = scmp.ne.s32.totalorder %s184, %s185
    %p199 = scmp.eq.s32.totalorder %s20, 1
    %p200 = por %p198, %p199
    %p202 = scmp.ne.s32.totalorder %s185, %s201
    %p203 = scmp.eq.s32.totalorder %s20, 0
    %p204 = por %p202, %p203
    %p205 = scmp.le.s32.totalorder 1, %s14
    %p206 = scmp.lt.s32.totalorder %s14, 3
    %p207 = pnand %p205, %p206
    %p208 = pneg %p207
    // Predicated region
    $region9: #{face_encoder_forward.1} parent=5 // pred_check
      _
    $region10: #{face_encoder_forward.1} parent=5 // pred_check_branch
      %210 = sbr.rel (%p207) target = $region12
    $region11: #{face_encoder_forward.1} parent=5 // pred_region
      %s211 = ssub.s32 %s14, 1
      // Predicated region
      $region13: #{face_encoder_forward.1} parent=11 // pred_check
        %p212 = pneg %p61
      $region14: #{face_encoder_forward.1} parent=11 // pred_check_branch
        %214 = sbr.rel (%p212) target = $region16
      $region15: #{face_encoder_forward.1} parent=11 // pred_region
        _
      $region16: #{face_encoder_forward.1} parent=11 // pred_fallthru
        _
      // Predicated region
      $region17: #{face_encoder_forward.1} parent=11 // pred_check
        %p215 = pneg %p82
      $region18: #{face_encoder_forward.1} parent=11 // pred_check_branch
        %217 = sbr.rel (%p215) target = $region20
      $region19: #{face_encoder_forward.1} parent=11 // pred_region
        _
      $region20: #{face_encoder_forward.1} parent=11 // pred_fallthru
        _
      // Predicated region
      $region21: #{face_encoder_forward.1} parent=11 // pred_check
        %p218 = pneg %p103
      $region22: #{face_encoder_forward.1} parent=11 // pred_check_branch
        %220 = sbr.rel (%p218) target = $region24
      $region23: #{face_encoder_forward.1} parent=11 // pred_region
        _
      $region24: #{face_encoder_forward.1} parent=11 // pred_fallthru
        _
      // Predicated region
      $region25: #{face_encoder_forward.1} parent=11 // pred_check
        %p221 = pneg %p124
      $region26: #{face_encoder_forward.1} parent=11 // pred_check_branch
        %223 = sbr.rel (%p221) target = $region28
      $region27: #{face_encoder_forward.1} parent=11 // pred_region
        _
      $region28: #{face_encoder_forward.1} parent=11 // pred_fallthru
        _
      // Predicated region
      $region29: #{face_encoder_forward.1} parent=11 // pred_check
        %p224 = pneg %p145
      $region30: #{face_encoder_forward.1} parent=11 // pred_check_branch
        %226 = sbr.rel (%p224) target = $region32
      $region31: #{face_encoder_forward.1} parent=11 // pred_region
        _
      $region32: #{face_encoder_forward.1} parent=11 // pred_fallthru
        _
    $region12: #{face_encoder_forward.1} parent=5 // pred_fallthru
      _
    %p227 = scmp.lt.s32.totalorder %s14, 2
    // Predicated region
    $region33: #{face_encoder_forward.1} parent=5 // pred_check
      %p228 = pneg %p227
    $region34: #{face_encoder_forward.1} parent=5 // pred_check_branch
      %230 = sbr.rel (%p228) target = $region36
    $region35: #{face_encoder_forward.1} parent=5 // pred_region
      // Predicated region
      $region37: #{face_encoder_forward.1} parent=35 // pred_check
        %p231 = pneg %p34
      $region38: #{face_encoder_forward.1} parent=35 // pred_check_branch
        %233 = sbr.rel (%p231) target = $region40
      $region39: #{face_encoder_forward.1} parent=35 // pred_region
        %p234 = scmp.lt.s32.totalorder %s14, 1
        %s235 = scalar_select %p234, %s14, 1
        %s236 = smul.addr %s235, 43
        %s237 = smul.addr %s236, 4
        %s238 = scalar_lea.vmem %s0, %s237
      $region40: #{face_encoder_forward.1} parent=35 // pred_fallthru
        _
    $region36: #{face_encoder_forward.1} parent=5 // pred_fallthru
      _
    %p239 = scmp.le.s32.totalorder 1, %s14
    %p240 = scmp.lt.s32.totalorder %s14, 3
    %p241 = pnand %p239, %p240
    %p242 = pneg %p241
    // Predicated region
    $region41: #{face_encoder_forward.1} parent=5 // pred_check
      _
    $region42: #{face_encoder_forward.1} parent=5 // pred_check_branch
      %244 = sbr.rel (%p241) target = $region44
    $region43: #{face_encoder_forward.1} parent=5 // pred_region
      %s245 = ssub.s32 %s14, 1
      %p246 = scmp.lt.s32.totalorder %s19, 1
      %s247 = scalar_select %p246, %s19, 1
      %s248 = smul.addr %s247, 43
      %s249 = smul.addr %s248, 4
      %s250 = scalar_lea.vmem %s0, %s249
      %p251 = pneg %p40
      %p252 = pneg %p37
      %p253 = pneg %p61
      %p254 = pneg %p58
      %p255 = pneg %p82
      %p256 = pneg %p79
      %p257 = pneg %p103
      %p258 = pneg %p100
      %p259 = pneg %p124
      %p260 = pneg %p121
      %p261 = pneg %p145
      %p262 = pneg %p142
      %p263 = pneg %p171
      %p264 = pneg %p168
      %s265 = smul.u32 36, %s19
      %p266 = scmp.lt.s32.totalorder %s265, 71
      %s267 = scalar_select %p266, %s265, 71
      %s268 = smul.addr %s267, 4
      %s269 = scalar_lea.vmem %s6, %s268
      %p270 = pneg %p197
      %p271 = pneg %p194
      %p272 = scmp.lt.s32.totalorder %s19, 1
      %s273 = scalar_select %p272, %s19, 1
      %s274 = smul.addr %s273, 8
      %s275 = scalar_lea.vmem %s7, %s274
      %p276 = scmp.lt.s32.totalorder %s19, 1
      %s277 = scalar_select %p276, %s19, 1
      %s278 = smul.addr %s277, 43
      %s279 = smul.addr %s278, 4
      %s280 = scalar_lea.vmem %s0, %s279
      %s281 = smul.u32 36, %s19
      %p282 = scmp.lt.s32.totalorder %s281, 71
      %s283 = scalar_select %p282, %s281, 71
      %s284 = smul.addr %s283, 4
      %s285 = scalar_lea.vmem %s6, %s284
      %s286 = smul.u32 36, %s19
      %p287 = scmp.lt.s32.totalorder %s19, 1
      %s288 = scalar_select %p287, %s19, 1
      %s289 = smul.addr %s288, 8
      %s290 = scalar_lea.vmem %s7, %s289
      %v292 = vld [vmem:[%s2] sm:$0x1]
      %v294 = vperm.slane %v292, 0
      %296 = vst [vmem:[#allocation2] sm:$0xff] %v294
      %297 = vst [vmem:[#allocation2 + $0x8] sm:$0xff] %v294
      %298 = vst [vmem:[#allocation2 + $0x10] sm:$0xff] %v294
      %299 = vst [vmem:[#allocation2 + $0x18] sm:$0xff] %v294
      %300 = vst [vmem:[#allocation2 + $0x20] sm:$0xff] %v294
      %301 = vst [vmem:[#allocation2 + $0x28] sm:$0xff] %v294
      %302 = vst [vmem:[#allocation2 + $0x30] sm:$0xff] %v294
      %303 = vst [vmem:[#allocation2 + $0x38] sm:$0xff] %v294
      %304 = vst [vmem:[#allocation2 + $0x40] sm:$0xff] %v294
      %305 = vst [vmem:[#allocation2 + $0x48] sm:$0xff] %v294
      %306 = vst [vmem:[#allocation2 + $0x50] sm:$0xff] %v294
      %307 = vst [vmem:[#allocation2 + $0x58] sm:$0xff] %v294
      %308 = vst [vmem:[#allocation2 + $0x60] sm:$0xff] %v294
      %309 = vst [vmem:[#allocation2 + $0x68] sm:$0xff] %v294
      %310 = vst [vmem:[#allocation2 + $0x70] sm:$0xff] %v294
      %311 = vst [vmem:[#allocation2 + $0x78] sm:$0xff] %v294
      %312 = vst [vmem:[#allocation2 + $0x80] sm:$0xff] %v294
      %313 = vst [vmem:[#allocation2 + $0x88] sm:$0xff] %v294
      %314 = vst [vmem:[#allocation2 + $0x90] sm:$0xff] %v294
      %315 = vst [vmem:[#allocation2 + $0x98] sm:$0xff] %v294
      %316 = vst [vmem:[#allocation2 + $0xa0] sm:$0xff] %v294
      %317 = vst [vmem:[#allocation2 + $0xa8] sm:$0xff] %v294
      %318 = vst [vmem:[#allocation2 + $0xb0] sm:$0xff] %v294
      %319 = vst [vmem:[#allocation2 + $0xb8] sm:$0xff] %v294
      %320 = vst [vmem:[#allocation2 + $0xc0] sm:$0xff] %v294
      %321 = vst [vmem:[#allocation2 + $0xc8] sm:$0xff] %v294
      %322 = vst [vmem:[#allocation2 + $0xd0] sm:$0xff] %v294
      %323 = vst [vmem:[#allocation2 + $0xd8] sm:$0xff] %v294
      %324 = vst [vmem:[#allocation2 + $0xe0] sm:$0xff] %v294
      %325 = vst [vmem:[#allocation2 + $0xe8] sm:$0xff] %v294
      %326 = vst [vmem:[#allocation2 + $0xf0] sm:$0xff] %v294
      %327 = vst [vmem:[#allocation2 + $0xf8] sm:$0xff] %v294
      %328 = vst [vmem:[#allocation2 + $0x100] sm:$0xff] %v294
      %329 = vst [vmem:[#allocation2 + $0x108] sm:$0xff] %v294
      %330 = vst [vmem:[#allocation2 + $0x110] sm:$0xff] %v294
      %331 = vst [vmem:[#allocation2 + $0x118] sm:$0xff] %v294
      %v332 = vld [vmem:[%s280] sm:$0xf]
      %v333 = vld [vmem:[%s280 + $0x4] sm:$0xf]
      %v334 = vld [vmem:[%s280 + $0x8] sm:$0xf]
      %v335 = vld [vmem:[%s280 + $0xc] sm:$0xf]
      %v336 = vld [vmem:[%s280 + $0x10] sm:$0xf]
      %v337 = vld [vmem:[%s280 + $0x14] sm:$0xf]
      %v338 = vld [vmem:[%s280 + $0x18] sm:$0xf]
      %v339 = vld [vmem:[%s280 + $0x1c] sm:$0xf]
      %v340 = vld [vmem:[%s280 + $0x20] sm:$0xf]
      %v341 = vld [vmem:[%s280 + $0x24] sm:$0xf]
      %v342 = vld [vmem:[%s280 + $0x28] sm:$0xf]
      %v343 = vld [vmem:[%s280 + $0x2c] sm:$0xf]
      %v344 = vld [vmem:[%s280 + $0x30] sm:$0xf]
      %v345 = vld [vmem:[%s280 + $0x34] sm:$0xf]
      %v346 = vld [vmem:[%s280 + $0x38] sm:$0xf]
      %v347 = vld [vmem:[%s280 + $0x3c] sm:$0xf]
      %v348 = vld [vmem:[%s280 + $0x40] sm:$0xf]
      %v349 = vld [vmem:[%s280 + $0x44] sm:$0xf]
      %v350 = vld [vmem:[%s280 + $0x48] sm:$0xf]
      %v351 = vld [vmem:[%s280 + $0x4c] sm:$0xf]
      %v352 = vld [vmem:[%s280 + $0x50] sm:$0xf]
      %v353 = vld [vmem:[%s280 + $0x54] sm:$0xf]
      %v354 = vld [vmem:[%s280 + $0x58] sm:$0xf]
      %v355 = vld [vmem:[%s280 + $0x5c] sm:$0xf]
      %v356 = vld [vmem:[%s280 + $0x60] sm:$0xf]
      %v357 = vld [vmem:[%s280 + $0x64] sm:$0xf]
      %v358 = vld [vmem:[%s280 + $0x68] sm:$0xf]
      %v359 = vld [vmem:[%s280 + $0x6c] sm:$0xf]
      %v360 = vld [vmem:[%s280 + $0x70] sm:$0xf]
      %v361 = vld [vmem:[%s280 + $0x74] sm:$0xf]
      %v362 = vld [vmem:[%s280 + $0x78] sm:$0xf]
      %v363 = vld [vmem:[%s280 + $0x7c] sm:$0xf]
      %v364 = vld [vmem:[%s280 + $0x80] sm:$0xf]
      %v365 = vld [vmem:[%s280 + $0x84] sm:$0xf]
      %v366 = vld [vmem:[%s280 + $0x88] sm:$0xf]
      %v367 = vld [vmem:[%s280 + $0x8c] sm:$0xf]
      %v368 = vld [vmem:[#allocation2] sm:$0xff]
      %v369 = vld [vmem:[#allocation2 + $0x8] sm:$0xff]
      %v370 = vld [vmem:[#allocation2 + $0x10] sm:$0xff]
      %v371 = vld [vmem:[#allocation2 + $0x18] sm:$0xff]
      %v372 = vld [vmem:[#allocation2 + $0x20] sm:$0xff]
      %v373 = vld [vmem:[#allocation2 + $0x28] sm:$0xff]
      %v374 = vld [vmem:[#allocation2 + $0x30] sm:$0xff]
      %v375 = vld [vmem:[#allocation2 + $0x38] sm:$0xff]
      %v376 = vld [vmem:[#allocation2 + $0x40] sm:$0xff]
      %v377 = vld [vmem:[#allocation2 + $0x48] sm:$0xff]
      %v378 = vld [vmem:[#allocation2 + $0x50] sm:$0xff]
      %v379 = vld [vmem:[#allocation2 + $0x58] sm:$0xff]
      %v380 = vld [vmem:[#allocation2 + $0x60] sm:$0xff]
      %v381 = vld [vmem:[#allocation2 + $0x68] sm:$0xff]
      %v382 = vld [vmem:[#allocation2 + $0x70] sm:$0xff]
      %v383 = vld [vmem:[#allocation2 + $0x78] sm:$0xff]
      %v384 = vld [vmem:[#allocation2 + $0x80] sm:$0xff]
      %v385 = vld [vmem:[#allocation2 + $0x88] sm:$0xff]
      %v386 = vld [vmem:[#allocation2 + $0x90] sm:$0xff]
      %v387 = vld [vmem:[#allocation2 + $0x98] sm:$0xff]
      %v388 = vld [vmem:[#allocation2 + $0xa0] sm:$0xff]
      %v389 = vld [vmem:[#allocation2 + $0xa8] sm:$0xff]
      %v390 = vld [vmem:[#allocation2 + $0xb0] sm:$0xff]
      %v391 = vld [vmem:[#allocation2 + $0xb8] sm:$0xff]
      %v392 = vld [vmem:[#allocation2 + $0xc0] sm:$0xff]
      %v393 = vld [vmem:[#allocation2 + $0xc8] sm:$0xff]
      %v394 = vld [vmem:[#allocation2 + $0xd0] sm:$0xff]
      %v395 = vld [vmem:[#allocation2 + $0xd8] sm:$0xff]
      %v396 = vld [vmem:[#allocation2 + $0xe0] sm:$0xff]
      %v397 = vld [vmem:[#allocation2 + $0xe8] sm:$0xff]
      %v398 = vld [vmem:[#allocation2 + $0xf0] sm:$0xff]
      %v399 = vld [vmem:[#allocation2 + $0xf8] sm:$0xff]
      %v400 = vld [vmem:[#allocation2 + $0x100] sm:$0xff]
      %v401 = vld [vmem:[#allocation2 + $0x108] sm:$0xff]
      %v402 = vld [vmem:[#allocation2 + $0x110] sm:$0xff]
      %v403 = vld [vmem:[#allocation2 + $0x118] sm:$0xff]
      %v404 = vld [vmem:[%s1] sm:$0x3]
      %v441 = vunpack.c.l.b16 %v332
      %v442 = vunpack.c.l.b16 %v333
      %v443 = vunpack.c.l.b16 %v334
      %v444 = vunpack.c.l.b16 %v335
      %v445 = vunpack.c.l.b16 %v336
      %v446 = vunpack.c.l.b16 %v337
      %v447 = vunpack.c.l.b16 %v338
      %v448 = vunpack.c.l.b16 %v339
      %v449 = vunpack.c.l.b16 %v340
      %v450 = vunpack.c.l.b16 %v341
      %v451 = vunpack.c.l.b16 %v342
      %v452 = vunpack.c.l.b16 %v343
      %v453 = vunpack.c.l.b16 %v344
      %v454 = vunpack.c.l.b16 %v345
      %v455 = vunpack.c.l.b16 %v346
      %v456 = vunpack.c.l.b16 %v347
      %v457 = vunpack.c.l.b16 %v348
      %v458 = vunpack.c.l.b16 %v349
      %v459 = vunpack.c.l.b16 %v350
      %v460 = vunpack.c.l.b16 %v351
      %v461 = vunpack.c.l.b16 %v352
      %v462 = vunpack.c.l.b16 %v353
      %v463 = vunpack.c.l.b16 %v354
      %v464 = vunpack.c.l.b16 %v355
      %v465 = vunpack.c.l.b16 %v356
      %v466 = vunpack.c.l.b16 %v357
      %v467 = vunpack.c.l.b16 %v358
      %v468 = vunpack.c.l.b16 %v359
      %v469 = vunpack.c.l.b16 %v360
      %v470 = vunpack.c.l.b16 %v361
      %v471 = vunpack.c.l.b16 %v362
      %v472 = vunpack.c.l.b16 %v363
      %v473 = vunpack.c.l.b16 %v364
      %v474 = vunpack.c.l.b16 %v365
      %v475 = vunpack.c.l.b16 %v366
      %v476 = vunpack.c.l.b16 %v367
      %v477 = vpack.c.b16 %v442, %v441
      %v478 = vpack.c.b16 %v444, %v443
      %v479 = vpack.c.b16 %v446, %v445
      %v480 = vpack.c.b16 %v448, %v447
      %v481 = vpack.c.b16 %v450, %v449
      %v482 = vpack.c.b16 %v452, %v451
      %v483 = vpack.c.b16 %v454, %v453
      %v484 = vpack.c.b16 %v456, %v455
      %v485 = vpack.c.b16 %v458, %v457
      %v486 = vpack.c.b16 %v460, %v459
      %v487 = vpack.c.b16 %v462, %v461
      %v488 = vpack.c.b16 %v464, %v463
      %v489 = vpack.c.b16 %v466, %v465
      %v490 = vpack.c.b16 %v468, %v467
      %v491 = vpack.c.b16 %v470, %v469
      %v492 = vpack.c.b16 %v472, %v471
      %v493 = vpack.c.b16 %v474, %v473
      %v494 = vpack.c.b16 %v476, %v475
      %vm495 = vcmask 23552
      %v497 = vsel %vm495, %v477, 0
      %v500 = vsel %vm495, %v478, 0
      %v503 = vsel %vm495, %v479, 0
      %v506 = vsel %vm495, %v480, 0
      %v509 = vsel %vm495, %v481, 0
      %v512 = vsel %vm495, %v482, 0
      %v515 = vsel %vm495, %v483, 0
      %v518 = vsel %vm495, %v484, 0
      %v521 = vsel %vm495, %v485, 0
      %v524 = vsel %vm495, %v486, 0
      %v527 = vsel %vm495, %v487, 0
      %v530 = vsel %vm495, %v488, 0
      %v533 = vsel %vm495, %v489, 0
      %v536 = vsel %vm495, %v490, 0
      %v539 = vsel %vm495, %v491, 0
      %v542 = vsel %vm495, %v492, 0
      %v545 = vsel %vm495, %v493, 0
      %v548 = vsel %vm495, %v494, 0
      %vm550 = vcmask 1040384
      %vm551 = vcmask 1041408
      %v552 = vsel %vm550, 4294967295, 65535
      %v553 = vsel %vm551, %v552, 0
      %v555 = vand.u32 %v404, %v553
      %557 = vmatpush.bf16.msra.mxu0 0
      %558 = vmatpush.bf16.msra.mxu0 0
      %559 = vmatpush.bf16.msra.mxu0 0
      %560 = vmatpush.bf16.msra.mxu0 0
      %561 = vmatpush.bf16.msra.mxu0 0
      %562 = vmatpush.bf16.msra.mxu0 0
      %563 = vmatpush.bf16.msra.mxu0 0
      %564 = vmatpush.bf16.msra.mxu0 %v555
      %565 = vmatmul.bf16.gmra.mxu0 %v497
      %v566 = vpop.f32.mrf.mxu0
      %v567 = vadd.f32 0.0, %v566
      %v568 = vpop.f32.mrf.mxu0
      %v569 = vadd.f32 0.0, %v568
      %570 = vmatmul.bf16.gmra.mxu0 %v500
      %v571 = vpop.f32.mrf.mxu0
      %v572 = vadd.f32 0.0, %v571
      %v573 = vpop.f32.mrf.mxu0
      %v574 = vadd.f32 0.0, %v573
      %575 = vmatmul.bf16.gmra.mxu0 %v503
      %v576 = vpop.f32.mrf.mxu0
      %v577 = vadd.f32 0.0, %v576
      %v578 = vpop.f32.mrf.mxu0
      %v579 = vadd.f32 0.0, %v578
      %580 = vmatmul.bf16.gmra.mxu0 %v506
      %v581 = vpop.f32.mrf.mxu0
      %v582 = vadd.f32 0.0, %v581
      %v583 = vpop.f32.mrf.mxu0
      %v584 = vadd.f32 0.0, %v583
      %585 = vmatmul.bf16.gmra.mxu0 %v509
      %v586 = vpop.f32.mrf.mxu0
      %v587 = vadd.f32 0.0, %v586
      %v588 = vpop.f32.mrf.mxu0
      %v589 = vadd.f32 0.0, %v588
      %590 = vmatmul.bf16.gmra.mxu0 %v512
      %v591 = vpop.f32.mrf.mxu0
      %v592 = vadd.f32 0.0, %v591
      %v593 = vpop.f32.mrf.mxu0
      %v594 = vadd.f32 0.0, %v593
      %595 = vmatmul.bf16.gmra.mxu0 %v515
      %v596 = vpop.f32.mrf.mxu0
      %v597 = vadd.f32 0.0, %v596
      %v598 = vpop.f32.mrf.mxu0
      %v599 = vadd.f32 0.0, %v598
      %600 = vmatmul.bf16.gmra.mxu0 %v518
      %v601 = vpop.f32.mrf.mxu0
      %v602 = vadd.f32 0.0, %v601
      %v603 = vpop.f32.mrf.mxu0
      %v604 = vadd.f32 0.0, %v603
      %605 = vmatmul.bf16.gmra.mxu0 %v521
      %v606 = vpop.f32.mrf.mxu0
      %v607 = vadd.f32 0.0, %v606
      %v608 = vpop.f32.mrf.mxu0
      %v609 = vadd.f32 0.0, %v608
      %610 = vmatmul.bf16.gmra.mxu0 %v524
      %v611 = vpop.f32.mrf.mxu0
      %v612 = vadd.f32 0.0, %v611
      %v613 = vpop.f32.mrf.mxu0
      %v614 = vadd.f32 0.0, %v613
      %615 = vmatmul.bf16.gmra.mxu0 %v527
      %v616 = vpop.f32.mrf.mxu0
      %v617 = vadd.f32 0.0, %v616
      %v618 = vpop.f32.mrf.mxu0
      %v619 = vadd.f32 0.0, %v618
      %620 = vmatmul.bf16.gmra.mxu0 %v530
      %v621 = vpop.f32.mrf.mxu0
      %v622 = vadd.f32 0.0, %v621
      %v623 = vpop.f32.mrf.mxu0
      %v624 = vadd.f32 0.0, %v623
      %625 = vmatmul.bf16.gmra.mxu0 %v533
      %v626 = vpop.f32.mrf.mxu0
      %v627 = vadd.f32 0.0, %v626
      %v628 = vpop.f32.mrf.mxu0
      %v629 = vadd.f32 0.0, %v628
      %630 = vmatmul.bf16.gmra.mxu0 %v536
      %v631 = vpop.f32.mrf.mxu0
      %v632 = vadd.f32 0.0, %v631
      %v633 = vpop.f32.mrf.mxu0
      %v634 = vadd.f32 0.0, %v633
      %635 = vmatmul.bf16.gmra.mxu0 %v539
      %v636 = vpop.f32.mrf.mxu0
      %v637 = vadd.f32 0.0, %v636
      %v638 = vpop.f32.mrf.mxu0
      %v639 = vadd.f32 0.0, %v638
      %640 = vmatmul.bf16.gmra.mxu0 %v542
      %v641 = vpop.f32.mrf.mxu0
      %v642 = vadd.f32 0.0, %v641
      %v643 = vpop.f32.mrf.mxu0
      %v644 = vadd.f32 0.0, %v643
      %645 = vmatmul.bf16.gmra.mxu0 %v545
      %v646 = vpop.f32.mrf.mxu0
      %v647 = vadd.f32 0.0, %v646
      %v648 = vpop.f32.mrf.mxu0
      %v649 = vadd.f32 0.0, %v648
      %650 = vmatmul.bf16.gmra.mxu0 %v548
      %v651 = vpop.f32.mrf.mxu0
      %v652 = vadd.f32 0.0, %v651
      %v653 = vpop.f32.mrf.mxu0
      %v654 = vadd.f32 0.0, %v653
      %655 = vdwg.mxu0
      %v656 = vadd.f32 %v368, %v567
      %v657 = vadd.f32 %v369, %v569
      %v658 = vadd.f32 %v370, %v572
      %v659 = vadd.f32 %v371, %v574
      %v660 = vadd.f32 %v372, %v577
      %v661 = vadd.f32 %v373, %v579
      %v662 = vadd.f32 %v374, %v582
      %v663 = vadd.f32 %v375, %v584
      %v664 = vadd.f32 %v376, %v587
      %v665 = vadd.f32 %v377, %v589
      %v666 = vadd.f32 %v378, %v592
      %v667 = vadd.f32 %v379, %v594
      %v668 = vadd.f32 %v380, %v597
      %v669 = vadd.f32 %v381, %v599
      %v670 = vadd.f32 %v382, %v602
      %v671 = vadd.f32 %v383, %v604
      %v672 = vadd.f32 %v384, %v607
      %v673 = vadd.f32 %v385, %v609
      %v674 = vadd.f32 %v386, %v612
      %v675 = vadd.f32 %v387, %v614
      %v676 = vadd.f32 %v388, %v617
      %v677 = vadd.f32 %v389, %v619
      %v678 = vadd.f32 %v390, %v622
      %v679 = vadd.f32 %v391, %v624
      %v680 = vadd.f32 %v392, %v627
      %v681 = vadd.f32 %v393, %v629
      %v682 = vadd.f32 %v394, %v632
      %v683 = vadd.f32 %v395, %v634
      %v684 = vadd.f32 %v396, %v637
      %v685 = vadd.f32 %v397, %v639
      %v686 = vadd.f32 %v398, %v642
      %v687 = vadd.f32 %v399, %v644
      %v688 = vadd.f32 %v400, %v647
      %v689 = vadd.f32 %v401, %v649
      %v690 = vadd.f32 %v402, %v652
      %v691 = vadd.f32 %v403, %v654
      %692 = vst [vmem:[#allocation2] sm:$0xff] %v656
      %693 = vst [vmem:[#allocation2 + $0x8] sm:$0xff] %v657
      %694 = vst [vmem:[#allocation2 + $0x10] sm:$0xff] %v658
      %695 = vst [vmem:[#allocation2 + $0x18] sm:$0xff] %v659
      %696 = vst [vmem:[#allocation2 + $0x20] sm:$0xff] %v660
      %697 = vst [vmem:[#allocation2 + $0x28] sm:$0xff] %v661
      %698 = vst [vmem:[#allocation2 + $0x30] sm:$0xff] %v662
      %699 = vst [vmem:[#allocation2 + $0x38] sm:$0xff] %v663
      %700 = vst [vmem:[#allocation2 + $0x40] sm:$0xff] %v664
      %701 = vst [vmem:[#allocation2 + $0x48] sm:$0xff] %v665
      %702 = vst [vmem:[#allocation2 + $0x50] sm:$0xff] %v666
      %703 = vst [vmem:[#allocation2 + $0x58] sm:$0xff] %v667
      %704 = vst [vmem:[#allocation2 + $0x60] sm:$0xff] %v668
      %705 = vst [vmem:[#allocation2 + $0x68] sm:$0xff] %v669
      %706 = vst [vmem:[#allocation2 + $0x70] sm:$0xff] %v670
      %707 = vst [vmem:[#allocation2 + $0x78] sm:$0xff] %v671
      %708 = vst [vmem:[#allocation2 + $0x80] sm:$0xff] %v672
      %709 = vst [vmem:[#allocation2 + $0x88] sm:$0xff] %v673
      %710 = vst [vmem:[#allocation2 + $0x90] sm:$0xff] %v674
      %711 = vst [vmem:[#allocation2 + $0x98] sm:$0xff] %v675
      %712 = vst [vmem:[#allocation2 + $0xa0] sm:$0xff] %v676
      %713 = vst [vmem:[#allocation2 + $0xa8] sm:$0xff] %v677
      %714 = vst [vmem:[#allocation2 + $0xb0] sm:$0xff] %v678
      %715 = vst [vmem:[#allocation2 + $0xb8] sm:$0xff] %v679
      %716 = vst [vmem:[#allocation2 + $0xc0] sm:$0xff] %v680
      %717 = vst [vmem:[#allocation2 + $0xc8] sm:$0xff] %v681
      %718 = vst [vmem:[#allocation2 + $0xd0] sm:$0xff] %v682
      %719 = vst [vmem:[#allocation2 + $0xd8] sm:$0xff] %v683
      %720 = vst [vmem:[#allocation2 + $0xe0] sm:$0xff] %v684
      %721 = vst [vmem:[#allocation2 + $0xe8] sm:$0xff] %v685
      %722 = vst [vmem:[#allocation2 + $0xf0] sm:$0xff] %v686
      %723 = vst [vmem:[#allocation2 + $0xf8] sm:$0xff] %v687
      %724 = vst [vmem:[#allocation2 + $0x100] sm:$0xff] %v688
      %725 = vst [vmem:[#allocation2 + $0x108] sm:$0xff] %v689
      %726 = vst [vmem:[#allocation2 + $0x110] sm:$0xff] %v690
      %727 = vst [vmem:[#allocation2 + $0x118] sm:$0xff] %v691
      %v728 = vld [vmem:[%s280] sm:$0xf]
      %v729 = vld [vmem:[%s280 + $0x4] sm:$0xf]
      %v730 = vld [vmem:[%s280 + $0x8] sm:$0xf]
      %v731 = vld [vmem:[%s280 + $0xc] sm:$0xf]
      %v732 = vld [vmem:[%s280 + $0x10] sm:$0xf]
      %v733 = vld [vmem:[%s280 + $0x14] sm:$0xf]
      %v734 = vld [vmem:[%s280 + $0x18] sm:$0xf]
      %v735 = vld [vmem:[%s280 + $0x1c] sm:$0xf]
      %v736 = vld [vmem:[%s280 + $0x20] sm:$0xf]
      %v737 = vld [vmem:[%s280 + $0x24] sm:$0xf]
      %v738 = vld [vmem:[%s280 + $0x28] sm:$0xf]
      %v739 = vld [vmem:[%s280 + $0x2c] sm:$0xf]
      %v740 = vld [vmem:[%s280 + $0x30] sm:$0xf]
      %v741 = vld [vmem:[%s280 + $0x34] sm:$0xf]
      %v742 = vld [vmem:[%s280 + $0x38] sm:$0xf]
      %v743 = vld [vmem:[%s280 + $0x3c] sm:$0xf]
      %v744 = vld [vmem:[%s280 + $0x40] sm:$0xf]
      %v745 = vld [vmem:[%s280 + $0x44] sm:$0xf]
      %v746 = vld [vmem:[%s280 + $0x48] sm:$0xf]
      %v747 = vld [vmem:[%s280 + $0x4c] sm:$0xf]
      %v748 = vld [vmem:[%s280 + $0x50] sm:$0xf]
      %v749 = vld [vmem:[%s280 + $0x54] sm:$0xf]
      %v750 = vld [vmem:[%s280 + $0x58] sm:$0xf]
      %v751 = vld [vmem:[%s280 + $0x5c] sm:$0xf]
      %v752 = vld [vmem:[%s280 + $0x60] sm:$0xf]
      %v753 = vld [vmem:[%s280 + $0x64] sm:$0xf]
      %v754 = vld [vmem:[%s280 + $0x68] sm:$0xf]
      %v755 = vld [vmem:[%s280 + $0x6c] sm:$0xf]
      %v756 = vld [vmem:[%s280 + $0x70] sm:$0xf]
      %v757 = vld [vmem:[%s280 + $0x74] sm:$0xf]
      %v758 = vld [vmem:[%s280 + $0x78] sm:$0xf]
      %v759 = vld [vmem:[%s280 + $0x7c] sm:$0xf]
      %v760 = vld [vmem:[%s280 + $0x80] sm:$0xf]
      %v761 = vld [vmem:[%s280 + $0x84] sm:$0xf]
      %v762 = vld [vmem:[%s280 + $0x88] sm:$0xf]
      %v763 = vld [vmem:[%s280 + $0x8c] sm:$0xf]
      %v764 = vld [vmem:[%s280 + $0x90] sm:$0x1]
      %v765 = vld [vmem:[#allocation2] sm:$0xff]
      %v766 = vld [vmem:[#allocation2 + $0x8] sm:$0xff]
      %v767 = vld [vmem:[#allocation2 + $0x10] sm:$0xff]
      %v768 = vld [vmem:[#allocation2 + $0x18] sm:$0xff]
      %v769 = vld [vmem:[#allocation2 + $0x20] sm:$0xff]
      %v770 = vld [vmem:[#allocation2 + $0x28] sm:$0xff]
      %v771 = vld [vmem:[#allocation2 + $0x30] sm:$0xff]
      %v772 = vld [vmem:[#allocation2 + $0x38] sm:$0xff]
      %v773 = vld [vmem:[#allocation2 + $0x40] sm:$0xff]
      %v774 = vld [vmem:[#allocation2 + $0x48] sm:$0xff]
      %v775 = vld [vmem:[#allocation2 + $0x50] sm:$0xff]
      %v776 = vld [vmem:[#allocation2 + $0x58] sm:$0xff]
      %v777 = vld [vmem:[#allocation2 + $0x60] sm:$0xff]
      %v778 = vld [vmem:[#allocation2 + $0x68] sm:$0xff]
      %v779 = vld [vmem:[#allocation2 + $0x70] sm:$0xff]
      %v780 = vld [vmem:[#allocation2 + $0x78] sm:$0xff]
      %v781 = vld [vmem:[#allocation2 + $0x80] sm:$0xff]
      %v782 = vld [vmem:[#allocation2 + $0x88] sm:$0xff]
      %v783 = vld [vmem:[#allocation2 + $0x90] sm:$0xff]
      %v784 = vld [vmem:[#allocation2 + $0x98] sm:$0xff]
      %v785 = vld [vmem:[#allocation2 + $0xa0] sm:$0xff]
      %v786 = vld [vmem:[#allocation2 + $0xa8] sm:$0xff]
      %v787 = vld [vmem:[#allocation2 + $0xb0] sm:$0xff]
      %v788 = vld [vmem:[#allocation2 + $0xb8] sm:$0xff]
      %v789 = vld [vmem:[#allocation2 + $0xc0] sm:$0xff]
      %v790 = vld [vmem:[#allocation2 + $0xc8] sm:$0xff]
      %v791 = vld [vmem:[#allocation2 + $0xd0] sm:$0xff]
      %v792 = vld [vmem:[#allocation2 + $0xd8] sm:$0xff]
      %v793 = vld [vmem:[#allocation2 + $0xe0] sm:$0xff]
      %v794 = vld [vmem:[#allocation2 + $0xe8] sm:$0xff]
      %v795 = vld [vmem:[#allocation2 + $0xf0] sm:$0xff]
      %v796 = vld [vmem:[#allocation2 + $0xf8] sm:$0xff]
      %v797 = vld [vmem:[#allocation2 + $0x100] sm:$0xff]
      %v798 = vld [vmem:[#allocation2 + $0x108] sm:$0xff]
      %v799 = vld [vmem:[#allocation2 + $0x110] sm:$0xff]
      %v800 = vld [vmem:[#allocation2 + $0x118] sm:$0xff]
      %s801 = scalar_lea.vmem %s1, 2
      %v802 = vld [vmem:[%s801] sm:$0x3]
      %v840 = vunpack.c.l.b16 %v728
      %v841 = vunpack.c.l.b16 %v729
      %v842 = vunpack.c.l.b16 %v730
      %v843 = vunpack.c.l.b16 %v731
      %v844 = vunpack.c.l.b16 %v732
      %v845 = vunpack.c.l.b16 %v733
      %v846 = vunpack.c.l.b16 %v734
      %v847 = vunpack.c.l.b16 %v735
      %v848 = vunpack.c.l.b16 %v736
      %v849 = vunpack.c.l.b16 %v737
      %v850 = vunpack.c.l.b16 %v738
      %v851 = vunpack.c.l.b16 %v739
      %v852 = vunpack.c.l.b16 %v740
      %v853 = vunpack.c.l.b16 %v741
      %v854 = vunpack.c.l.b16 %v742
      %v855 = vunpack.c.l.b16 %v743
      %v856 = vunpack.c.l.b16 %v744
      %v857 = vunpack.c.l.b16 %v745
      %v858 = vunpack.c.l.b16 %v746
      %v859 = vunpack.c.l.b16 %v747
      %v860 = vunpack.c.l.b16 %v748
      %v861 = vunpack.c.l.b16 %v749
      %v862 = vunpack.c.l.b16 %v750
      %v863 = vunpack.c.l.b16 %v751
      %v864 = vunpack.c.l.b16 %v752
      %v865 = vunpack.c.l.b16 %v753
      %v866 = vunpack.c.l.b16 %v754
      %v867 = vunpack.c.l.b16 %v755
      %v868 = vunpack.c.l.b16 %v756
      %v869 = vunpack.c.l.b16 %v757
      %v870 = vunpack.c.l.b16 %v758
      %v871 = vunpack.c.l.b16 %v759
      %v872 = vunpack.c.l.b16 %v760
      %v873 = vunpack.c.l.b16 %v761
      %v874 = vunpack.c.l.b16 %v762
      %v875 = vunpack.c.l.b16 %v763
      %v876 = vunpack.c.l.b16 %v764
      %v877 = vpack.c.b16 %v841, %v840
      %v878 = vpack.c.b16 %v843, %v842
      %v879 = vpack.c.b16 %v845, %v844
      %v880 = vpack.c.b16 %v847, %v846
      %v881 = vpack.c.b16 %v849, %v848
      %v882 = vpack.c.b16 %v851, %v850
      %v883 = vpack.c.b16 %v853, %v852
      %v884 = vpack.c.b16 %v855, %v854
      %v885 = vpack.c.b16 %v857, %v856
      %v886 = vpack.c.b16 %v859, %v858
      %v887 = vpack.c.b16 %v861, %v860
      %v888 = vpack.c.b16 %v863, %v862
      %v889 = vpack.c.b16 %v865, %v864
      %v890 = vpack.c.b16 %v867, %v866
      %v891 = vpack.c.b16 %v869, %v868
      %v892 = vpack.c.b16 %v871, %v870
      %v893 = vpack.c.b16 %v873, %v872
      %v894 = vpack.c.b16 %v875, %v874
      %v895 = vpack.c.b16 %v876, %v876
      %vm896 = vsmask.f32 7424
      %v898 = vshrl.u32 %v877, 16
      %v900 = vshll.u32 %v877, 16
      %v902 = vrot.slane %v900, 1
      %v903 = vor.u32 %v898, %v902
      %v905 = vshll.u32 %v878, 16
      %v907 = vrot.slane %v905, 1
      %v908 = vsel %vm896, %v903, %v907
      %v909 = vshrl.u32 %v878, 16
      %v911 = vor.u32 %v909, %v907
      %v913 = vshll.u32 %v879, 16
      %v915 = vrot.slane %v913, 1
      %v916 = vsel %vm896, %v911, %v915
      %v917 = vshrl.u32 %v879, 16
      %v919 = vor.u32 %v917, %v915
      %v921 = vshll.u32 %v880, 16
      %v923 = vrot.slane %v921, 1
      %v924 = vsel %vm896, %v919, %v923
      %v925 = vshrl.u32 %v880, 16
      %v927 = vor.u32 %v925, %v923
      %v929 = vshll.u32 %v881, 16
      %v931 = vrot.slane %v929, 1
      %v932 = vsel %vm896, %v927, %v931
      %v933 = vshrl.u32 %v881, 16
      %v935 = vor.u32 %v933, %v931
      %v937 = vshll.u32 %v882, 16
      %v939 = vrot.slane %v937, 1
      %v940 = vsel %vm896, %v935, %v939
      %v941 = vshrl.u32 %v882, 16
      %v943 = vor.u32 %v941, %v939
      %v945 = vshll.u32 %v883, 16
      %v947 = vrot.slane %v945, 1
      %v948 = vsel %vm896, %v943, %v947
      %v949 = vshrl.u32 %v883, 16
      %v951 = vor.u32 %v949, %v947
      %v953 = vshll.u32 %v884, 16
      %v955 = vrot.slane %v953, 1
      %v956 = vsel %vm896, %v951, %v955
      %v957 = vshrl.u32 %v884, 16
      %v959 = vor.u32 %v957, %v955
      %v961 = vshll.u32 %v885, 16
      %v963 = vrot.slane %v961, 1
      %v964 = vsel %vm896, %v959, %v963
      %v965 = vshrl.u32 %v885, 16
      %v967 = vor.u32 %v965, %v963
      %v969 = vshll.u32 %v886, 16
      %v971 = vrot.slane %v969, 1
      %v972 = vsel %vm896, %v967, %v971
      %v973 = vshrl.u32 %v886, 16
      %v975 = vor.u32 %v973, %v971
      %v977 = vshll.u32 %v887, 16
      %v979 = vrot.slane %v977, 1
      %v980 = vsel %vm896, %v975, %v979
      %v981 = vshrl.u32 %v887, 16
      %v983 = vor.u32 %v981, %v979
      %v985 = vshll.u32 %v888, 16
      %v987 = vrot.slane %v985, 1
      %v988 = vsel %vm896, %v983, %v987
      %v989 = vshrl.u32 %v888, 16
      %v991 = vor.u32 %v989, %v987
      %v993 = vshll.u32 %v889, 16
      %v995 = vrot.slane %v993, 1
      %v996 = vsel %vm896, %v991, %v995
      %v997 = vshrl.u32 %v889, 16
      %v999 = vor.u32 %v997, %v995
      %v1001 = vshll.u32 %v890, 16
      %v1003 = vrot.slane %v1001, 1
      %v1004 = vsel %vm896, %v999, %v1003
      %v1005 = vshrl.u32 %v890, 16
      %v1007 = vor.u32 %v1005, %v1003
      %v1009 = vshll.u32 %v891, 16
      %v1011 = vrot.slane %v1009, 1
      %v1012 = vsel %vm896, %v1007, %v1011
      %v1013 = vshrl.u32 %v891, 16
      %v1015 = vor.u32 %v1013, %v1011
      %v1017 = vshll.u32 %v892, 16
      %v1019 = vrot.slane %v1017, 1
      %v1020 = vsel %vm896, %v1015, %v1019
      %v1021 = vshrl.u32 %v892, 16
      %v1023 = vor.u32 %v1021, %v1019
      %v1025 = vshll.u32 %v893, 16
      %v1027 = vrot.slane %v1025, 1
      %v1028 = vsel %vm896, %v1023, %v1027
      %v1029 = vshrl.u32 %v893, 16
      %v1031 = vor.u32 %v1029, %v1027
      %v1033 = vshll.u32 %v894, 16
      %v1035 = vrot.slane %v1033, 1
      %v1036 = vsel %vm896, %v1031, %v1035
      %v1037 = vshrl.u32 %v894, 16
      %v1039 = vor.u32 %v1037, %v1035
      %v1041 = vshll.u32 %v895, 16
      %v1043 = vrot.slane %v1041, 1
      %v1044 = vsel %vm896, %v1039, %v1043
      %v1046 = vsel %vm495, %v908, 0
      %v1049 = vsel %vm495, %v916, 0
      %v1052 = vsel %vm495, %v924, 0
      %v1055 = vsel %vm495, %v932, 0
      %v1058 = vsel %vm495, %v940, 0
      %v1061 = vsel %vm495, %v948, 0
      %v1064 = vsel %vm495, %v956, 0
      %v1067 = vsel %vm495, %v964, 0
      %v1070 = vsel %vm495, %v972, 0
      %v1073 = vsel %vm495, %v980, 0
      %v1076 = vsel %vm495, %v988, 0
      %v1079 = vsel %vm495, %v996, 0
      %v1082 = vsel %vm495, %v1004, 0
      %v1085 = vsel %vm495, %v1012, 0
      %v1088 = vsel %vm495, %v1020, 0
      %v1091 = vsel %vm495, %v1028, 0
      %v1094 = vsel %vm495, %v1036, 0
      %v1097 = vsel %vm495, %v1044, 0
      %v1100 = vand.u32 %v802, %v553
      %1102 = vmatpush.bf16.msra.mxu0 0
      %1103 = vmatpush.bf16.msra.mxu0 0
      %1104 = vmatpush.bf16.msra.mxu0 0
      %1105 = vmatpush.bf16.msra.mxu0 0
      %1106 = vmatpush.bf16.msra.mxu0 0
      %1107 = vmatpush.bf16.msra.mxu0 0
      %1108 = vmatpush.bf16.msra.mxu0 0
      %1109 = vmatpush.bf16.msra.mxu0 %v1100
      %1110 = vmatmul.bf16.gmra.mxu0 %v1046
      %v1111 = vpop.f32.mrf.mxu0
      %v1112 = vadd.f32 0.0, %v1111
      %v1113 = vpop.f32.mrf.mxu0
      %v1114 = vadd.f32 0.0, %v1113
      %1115 = vmatmul.bf16.gmra.mxu0 %v1049
      %v1116 = vpop.f32.mrf.mxu0
      %v1117 = vadd.f32 0.0, %v1116
      %v1118 = vpop.f32.mrf.mxu0
      %v1119 = vadd.f32 0.0, %v1118
      %1120 = vmatmul.bf16.gmra.mxu0 %v1052
      %v1121 = vpop.f32.mrf.mxu0
      %v1122 = vadd.f32 0.0, %v1121
      %v1123 = vpop.f32.mrf.mxu0
      %v1124 = vadd.f32 0.0, %v1123
      %1125 = vmatmul.bf16.gmra.mxu0 %v1055
      %v1126 = vpop.f32.mrf.mxu0
      %v1127 = vadd.f32 0.0, %v1126
      %v1128 = vpop.f32.mrf.mxu0
      %v1129 = vadd.f32 0.0, %v1128
      %1130 = vmatmul.bf16.gmra.mxu0 %v1058
      %v1131 = vpop.f32.mrf.mxu0
      %v1132 = vadd.f32 0.0, %v1131
      %v1133 = vpop.f32.mrf.mxu0
      %v1134 = vadd.f32 0.0, %v1133
      %1135 = vmatmul.bf16.gmra.mxu0 %v1061
      %v1136 = vpop.f32.mrf.mxu0
      %v1137 = vadd.f32 0.0, %v1136
      %v1138 = vpop.f32.mrf.mxu0
      %v1139 = vadd.f32 0.0, %v1138
      %1140 = vmatmul.bf16.gmra.mxu0 %v1064
      %v1141 = vpop.f32.mrf.mxu0
      %v1142 = vadd.f32 0.0, %v1141
      %v1143 = vpop.f32.mrf.mxu0
      %v1144 = vadd.f32 0.0, %v1143
      %1145 = vmatmul.bf16.gmra.mxu0 %v1067
      %v1146 = vpop.f32.mrf.mxu0
      %v1147 = vadd.f32 0.0, %v1146
      %v1148 = vpop.f32.mrf.mxu0
      %v1149 = vadd.f32 0.0, %v1148
      %1150 = vmatmul.bf16.gmra.mxu0 %v1070
      %v1151 = vpop.f32.mrf.mxu0
      %v1152 = vadd.f32 0.0, %v1151
      %v1153 = vpop.f32.mrf.mxu0
      %v1154 = vadd.f32 0.0, %v1153
      %1155 = vmatmul.bf16.gmra.mxu0 %v1073
      %v1156 = vpop.f32.mrf.mxu0
      %v1157 = vadd.f32 0.0, %v1156
      %v1158 = vpop.f32.mrf.mxu0
      %v1159 = vadd.f32 0.0, %v1158
      %1160 = vmatmul.bf16.gmra.mxu0 %v1076
      %v1161 = vpop.f32.mrf.mxu0
      %v1162 = vadd.f32 0.0, %v1161
      %v1163 = vpop.f32.mrf.mxu0
      %v1164 = vadd.f32 0.0, %v1163
      %1165 = vmatmul.bf16.gmra.mxu0 %v1079
      %v1166 = vpop.f32.mrf.mxu0
      %v1167 = vadd.f32 0.0, %v1166
      %v1168 = vpop.f32.mrf.mxu0
      %v1169 = vadd.f32 0.0, %v1168
      %1170 = vmatmul.bf16.gmra.mxu0 %v1082
      %v1171 = vpop.f32.mrf.mxu0
      %v1172 = vadd.f32 0.0, %v1171
      %v1173 = vpop.f32.mrf.mxu0
      %v1174 = vadd.f32 0.0, %v1173
      %1175 = vmatmul.bf16.gmra.mxu0 %v1085
      %v1176 = vpop.f32.mrf.mxu0
      %v1177 = vadd.f32 0.0, %v1176
      %v1178 = vpop.f32.mrf.mxu0
      %v1179 = vadd.f32 0.0, %v1178
      %1180 = vmatmul.bf16.gmra.mxu0 %v1088
      %v1181 = vpop.f32.mrf.mxu0
      %v1182 = vadd.f32 0.0, %v1181
      %v1183 = vpop.f32.mrf.mxu0
      %v1184 = vadd.f32 0.0, %v1183
      %1185 = vmatmul.bf16.gmra.mxu0 %v1091
      %v1186 = vpop.f32.mrf.mxu0
      %v1187 = vadd.f32 0.0, %v1186
      %v1188 = vpop.f32.mrf.mxu0
      %v1189 = vadd.f32 0.0, %v1188
      %1190 = vmatmul.bf16.gmra.mxu0 %v1094
      %v1191 = vpop.f32.mrf.mxu0
      %v1192 = vadd.f32 0.0, %v1191
      %v1193 = vpop.f32.mrf.mxu0
      %v1194 = vadd.f32 0.0, %v1193
      %1195 = vmatmul.bf16.gmra.mxu0 %v1097
      %v1196 = vpop.f32.mrf.mxu0
      %v1197 = vadd.f32 0.0, %v1196
      %v1198 = vpop.f32.mrf.mxu0
      %v1199 = vadd.f32 0.0, %v1198
      %1200 = vdwg.mxu0
      %v1201 = vadd.f32 %v765, %v1112
      %v1202 = vadd.f32 %v766, %v1114
      %v1203 = vadd.f32 %v767, %v1117
      %v1204 = vadd.f32 %v768, %v1119
      %v1205 = vadd.f32 %v769, %v1122
      %v1206 = vadd.f32 %v770, %v1124
      %v1207 = vadd.f32 %v771, %v1127
      %v1208 = vadd.f32 %v772, %v1129
      %v1209 = vadd.f32 %v773, %v1132
      %v1210 = vadd.f32 %v774, %v1134
      %v1211 = vadd.f32 %v775, %v1137
      %v1212 = vadd.f32 %v776, %v1139
      %v1213 = vadd.f32 %v777, %v1142
      %v1214 = vadd.f32 %v778, %v1144
      %v1215 = vadd.f32 %v779, %v1147
      %v1216 = vadd.f32 %v780, %v1149
      %v1217 = vadd.f32 %v781, %v1152
      %v1218 = vadd.f32 %v782, %v1154
      %v1219 = vadd.f32 %v783, %v1157
      %v1220 = vadd.f32 %v784, %v1159
      %v1221 = vadd.f32 %v785, %v1162
      %v1222 = vadd.f32 %v786, %v1164
      %v1223 = vadd.f32 %v787, %v1167
      %v1224 = vadd.f32 %v788, %v1169
      %v1225 = vadd.f32 %v789, %v1172
      %v1226 = vadd.f32 %v790, %v1174
      %v1227 = vadd.f32 %v791, %v1177
      %v1228 = vadd.f32 %v792, %v1179
      %v1229 = vadd.f32 %v793, %v1182
      %v1230 = vadd.f32 %v794, %v1184
      %v1231 = vadd.f32 %v795, %v1187
      %v1232 = vadd.f32 %v796, %v1189
      %v1233 = vadd.f32 %v797, %v1192
      %v1234 = vadd.f32 %v798, %v1194
      %v1235 = vadd.f32 %v799, %v1197
      %v1236 = vadd.f32 %v800, %v1199
      %1237 = vst [vmem:[#allocation2] sm:$0xff] %v1201
      %1238 = vst [vmem:[#allocation2 + $0x8] sm:$0xff] %v1202
      %1239 = vst [vmem:[#allocation2 + $0x10] sm:$0xff] %v1203
      %1240 = vst [vmem:[#allocation2 + $0x18] sm:$0xff] %v1204
      %1241 = vst [vmem:[#allocation2 + $0x20] sm:$0xff] %v1205
      %1242 = vst [vmem:[#allocation2 + $0x28] sm:$0xff] %v1206
      %1243 = vst [vmem:[#allocation2 + $0x30] sm:$0xff] %v1207
      %1244 = vst [vmem:[#allocation2 + $0x38] sm:$0xff] %v1208
      %1245 = vst [vmem:[#allocation2 + $0x40] sm:$0xff] %v1209
      %1246 = vst [vmem:[#allocation2 + $0x48] sm:$0xff] %v1210
      %1247 = vst [vmem:[#allocation2 + $0x50] sm:$0xff] %v1211
      %1248 = vst [vmem:[#allocation2 + $0x58] sm:$0xff] %v1212
      %1249 = vst [vmem:[#allocation2 + $0x60] sm:$0xff] %v1213
      %1250 = vst [vmem:[#allocation2 + $0x68] sm:$0xff] %v1214
      %1251 = vst [vmem:[#allocation2 + $0x70] sm:$0xff] %v1215
      %1252 = vst [vmem:[#allocation2 + $0x78] sm:$0xff] %v1216
      %1253 = vst [vmem:[#allocation2 + $0x80] sm:$0xff] %v1217
      %1254 = vst [vmem:[#allocation2 + $0x88] sm:$0xff] %v1218
      %1255 = vst [vmem:[#allocation2 + $0x90] sm:$0xff] %v1219
      %1256 = vst [vmem:[#allocation2 + $0x98] sm:$0xff] %v1220
      %1257 = vst [vmem:[#allocation2 + $0xa0] sm:$0xff] %v1221
      %1258 = vst [vmem:[#allocation2 + $0xa8] sm:$0xff] %v1222
      %1259 = vst [vmem:[#allocation2 + $0xb0] sm:$0xff] %v1223
      %1260 = vst [vmem:[#allocation2 + $0xb8] sm:$0xff] %v1224
      %1261 = vst [vmem:[#allocation2 + $0xc0] sm:$0xff] %v1225
      %1262 = vst [vmem:[#allocation2 + $0xc8] sm:$0xff] %v1226
      %1263 = vst [vmem:[#allocation2 + $0xd0] sm:$0xff] %v1227
      %1264 = vst [vmem:[#allocation2 + $0xd8] sm:$0xff] %v1228
      %1265 = vst [vmem:[#allocation2 + $0xe0] sm:$0xff] %v1229
      %1266 = vst [vmem:[#allocation2 + $0xe8] sm:$0xff] %v1230
      %1267 = vst [vmem:[#allocation2 + $0xf0] sm:$0xff] %v1231
      %1268 = vst [vmem:[#allocation2 + $0xf8] sm:$0xff] %v1232
      %1269 = vst [vmem:[#allocation2 + $0x100] sm:$0xff] %v1233
      %1270 = vst [vmem:[#allocation2 + $0x108] sm:$0xff] %v1234
      %1271 = vst [vmem:[#allocation2 + $0x110] sm:$0xff] %v1235
      %1272 = vst [vmem:[#allocation2 + $0x118] sm:$0xff] %v1236
      %v1273 = vld [vmem:[%s280] sm:$0xe]
      %v1274 = vld [vmem:[%s280 + $0x4] sm:$0xf]
      %v1275 = vld [vmem:[%s280 + $0x8] sm:$0xf]
      %v1276 = vld [vmem:[%s280 + $0xc] sm:$0xf]
      %v1277 = vld [vmem:[%s280 + $0x10] sm:$0xf]
      %v1278 = vld [vmem:[%s280 + $0x14] sm:$0xf]
      %v1279 = vld [vmem:[%s280 + $0x18] sm:$0xf]
      %v1280 = vld [vmem:[%s280 + $0x1c] sm:$0xf]
      %v1281 = vld [vmem:[%s280 + $0x20] sm:$0xf]
      %v1282 = vld [vmem:[%s280 + $0x24] sm:$0xf]
      %v1283 = vld [vmem:[%s280 + $0x28] sm:$0xf]
      %v1284 = vld [vmem:[%s280 + $0x2c] sm:$0xf]
      %v1285 = vld [vmem:[%s280 + $0x30] sm:$0xf]
      %v1286 = vld [vmem:[%s280 + $0x34] sm:$0xf]
      %v1287 = vld [vmem:[%s280 + $0x38] sm:$0xf]
      %v1288 = vld [vmem:[%s280 + $0x3c] sm:$0xf]
      %v1289 = vld [vmem:[%s280 + $0x40] sm:$0xf]
      %v1290 = vld [vmem:[%s280 + $0x44] sm:$0xf]
      %v1291 = vld [vmem:[%s280 + $0x48] sm:$0xf]
      %v1292 = vld [vmem:[%s280 + $0x4c] sm:$0xf]
      %v1293 = vld [vmem:[%s280 + $0x50] sm:$0xf]
      %v1294 = vld [vmem:[%s280 + $0x54] sm:$0xf]
      %v1295 = vld [vmem:[%s280 + $0x58] sm:$0xf]
      %v1296 = vld [vmem:[%s280 + $0x5c] sm:$0xf]
      %v1297 = vld [vmem:[%s280 + $0x60] sm:$0xf]
      %v1298 = vld [vmem:[%s280 + $0x64] sm:$0xf]
      %v1299 = vld [vmem:[%s280 + $0x68] sm:$0xf]
      %v1300 = vld [vmem:[%s280 + $0x6c] sm:$0xf]
      %v1301 = vld [vmem:[%s280 + $0x70] sm:$0xf]
      %v1302 = vld [vmem:[%s280 + $0x74] sm:$0xf]
      %v1303 = vld [vmem:[%s280 + $0x78] sm:$0xf]
      %v1304 = vld [vmem:[%s280 + $0x7c] sm:$0xf]
      %v1305 = vld [vmem:[%s280 + $0x80] sm:$0xf]
      %v1306 = vld [vmem:[%s280 + $0x84] sm:$0xf]
      %v1307 = vld [vmem:[%s280 + $0x88] sm:$0xf]
      %v1308 = vld [vmem:[%s280 + $0x8c] sm:$0xf]
      %v1309 = vld [vmem:[%s280 + $0x90] sm:$0x1]
      %v1310 = vld [vmem:[#allocation2] sm:$0xff]
      %v1311 = vld [vmem:[#allocation2 + $0x8] sm:$0xff]
      %v1312 = vld [vmem:[#allocation2 + $0x10] sm:$0xff]
      %v1313 = vld [vmem:[#allocation2 + $0x18] sm:$0xff]
      %v1314 = vld [vmem:[#allocation2 + $0x20] sm:$0xff]
      %v1315 = vld [vmem:[#allocation2 + $0x28] sm:$0xff]
      %v1316 = vld [vmem:[#allocation2 + $0x30] sm:$0xff]
      %v1317 = vld [vmem:[#allocation2 + $0x38] sm:$0xff]
      %v1318 = vld [vmem:[#allocation2 + $0x40] sm:$0xff]
      %v1319 = vld [vmem:[#allocation2 + $0x48] sm:$0xff]
      %v1320 = vld [vmem:[#allocation2 + $0x50] sm:$0xff]
      %v1321 = vld [vmem:[#allocation2 + $0x58] sm:$0xff]
      %v1322 = vld [vmem:[#allocation2 + $0x60] sm:$0xff]
      %v1323 = vld [vmem:[#allocation2 + $0x68] sm:$0xff]
      %v1324 = vld [vmem:[#allocation2 + $0x70] sm:$0xff]
      %v1325 = vld [vmem:[#allocation2 + $0x78] sm:$0xff]
      %v1326 = vld [vmem:[#allocation2 + $0x80] sm:$0xff]
      %v1327 = vld [vmem:[#allocation2 + $0x88] sm:$0xff]
      %v1328 = vld [vmem:[#allocation2 + $0x90] sm:$0xff]
      %v1329 = vld [vmem:[#allocation2 + $0x98] sm:$0xff]
      %v1330 = vld [vmem:[#allocation2 + $0xa0] sm:$0xff]
      %v1331 = vld [vmem:[#allocation2 + $0xa8] sm:$0xff]
      %v1332 = vld [vmem:[#allocation2 + $0xb0] sm:$0xff]
      %v1333 = vld [vmem:[#allocation2 + $0xb8] sm:$0xff]
      %v1334 = vld [vmem:[#allocation2 + $0xc0] sm:$0xff]
      %v1335 = vld [vmem:[#allocation2 + $0xc8] sm:$0xff]
      %v1336 = vld [vmem:[#allocation2 + $0xd0] sm:$0xff]
      %v1337 = vld [vmem:[#allocation2 + $0xd8] sm:$0xff]
      %v1338 = vld [vmem:[#allocation2 + $0xe0] sm:$0xff]
      %v1339 = vld [vmem:[#allocation2 + $0xe8] sm:$0xff]
      %v1340 = vld [vmem:[#allocation2 + $0xf0] sm:$0xff]
      %v1341 = vld [vmem:[#allocation2 + $0xf8] sm:$0xff]
      %v1342 = vld [vmem:[#allocation2 + $0x100] sm:$0xff]
      %v1343 = vld [vmem:[#allocation2 + $0x108] sm:$0xff]
      %v1344 = vld [vmem:[#allocation2 + $0x110] sm:$0xff]
      %v1345 = vld [vmem:[#allocation2 + $0x118] sm:$0xff]
      %s1346 = scalar_lea.vmem %s1, 4
      %v1347 = vld [vmem:[%s1346] sm:$0x3]
      %v1385 = vunpack.c.l.b16 %v1273
      %v1386 = vunpack.c.l.b16 %v1274
      %v1387 = vunpack.c.l.b16 %v1275
      %v1388 = vunpack.c.l.b16 %v1276
      %v1389 = vunpack.c.l.b16 %v1277
      %v1390 = vunpack.c.l.b16 %v1278
      %v1391 = vunpack.c.l.b16 %v1279
      %v1392 = vunpack.c.l.b16 %v1280
      %v1393 = vunpack.c.l.b16 %v1281
      %v1394 = vunpack.c.l.b16 %v1282
      %v1395 = vunpack.c.l.b16 %v1283
      %v1396 = vunpack.c.l.b16 %v1284
      %v1397 = vunpack.c.l.b16 %v1285
      %v1398 = vunpack.c.l.b16 %v1286
      %v1399 = vunpack.c.l.b16 %v1287
      %v1400 = vunpack.c.l.b16 %v1288
      %v1401 = vunpack.c.l.b16 %v1289
      %v1402 = vunpack.c.l.b16 %v1290
      %v1403 = vunpack.c.l.b16 %v1291
      %v1404 = vunpack.c.l.b16 %v1292
      %v1405 = vunpack.c.l.b16 %v1293
      %v1406 = vunpack.c.l.b16 %v1294
      %v1407 = vunpack.c.l.b16 %v1295
      %v1408 = vunpack.c.l.b16 %v1296
      %v1409 = vunpack.c.l.b16 %v1297
      %v1410 = vunpack.c.l.b16 %v1298
      %v1411 = vunpack.c.l.b16 %v1299
      %v1412 = vunpack.c.l.b16 %v1300
      %v1413 = vunpack.c.l.b16 %v1301
      %v1414 = vunpack.c.l.b16 %v1302
      %v1415 = vunpack.c.l.b16 %v1303
      %v1416 = vunpack.c.l.b16 %v1304
      %v1417 = vunpack.c.l.b16 %v1305
      %v1418 = vunpack.c.l.b16 %v1306
      %v1419 = vunpack.c.l.b16 %v1307
      %v1420 = vunpack.c.l.b16 %v1308
      %v1421 = vunpack.c.l.b16 %v1309
      %v1422 = vpack.c.b16 %v1386, %v1385
      %v1423 = vpack.c.b16 %v1388, %v1387
      %v1424 = vpack.c.b16 %v1390, %v1389
      %v1425 = vpack.c.b16 %v1392, %v1391
      %v1426 = vpack.c.b16 %v1394, %v1393
      %v1427 = vpack.c.b16 %v1396, %v1395
      %v1428 = vpack.c.b16 %v1398, %v1397
      %v1429 = vpack.c.b16 %v1400, %v1399
      %v1430 = vpack.c.b16 %v1402, %v1401
      %v1431 = vpack.c.b16 %v1404, %v1403
      %v1432 = vpack.c.b16 %v1406, %v1405
      %v1433 = vpack.c.b16 %v1408, %v1407
      %v1434 = vpack.c.b16 %v1410, %v1409
      %v1435 = vpack.c.b16 %v1412, %v1411
      %v1436 = vpack.c.b16 %v1414, %v1413
      %v1437 = vpack.c.b16 %v1416, %v1415
      %v1438 = vpack.c.b16 %v1418, %v1417
      %v1439 = vpack.c.b16 %v1420, %v1419
      %v1440 = vpack.c.b16 %v1421, %v1421
      %vm1441 = vcmask 1046528
      %v1442 = vrot.slane %v1422, 1
      %v1443 = vrot.slane %v1423, 1
      %v1444 = vsel %vm1441, %v1442, %v1443
      %v1445 = vrot.slane %v1424, 1
      %v1446 = vsel %vm1441, %v1443, %v1445
      %v1447 = vrot.slane %v1425, 1
      %v1448 = vsel %vm1441, %v1445, %v1447
      %v1449 = vrot.slane %v1426, 1
      %v1450 = vsel %vm1441, %v1447, %v1449
      %v1451 = vrot.slane %v1427, 1
      %v1452 = vsel %vm1441, %v1449, %v1451
      %v1453 = vrot.slane %v1428, 1
      %v1454 = vsel %vm1441, %v1451, %v1453
      %v1455 = vrot.slane %v1429, 1
      %v1456 = vsel %vm1441, %v1453, %v1455
      %v1457 = vrot.slane %v1430, 1
      %v1458 = vsel %vm1441, %v1455, %v1457
      %v1459 = vrot.slane %v1431, 1
      %v1460 = vsel %vm1441, %v1457, %v1459
      %v1461 = vrot.slane %v1432, 1
      %v1462 = vsel %vm1441, %v1459, %v1461
      %v1463 = vrot.slane %v1433, 1
      %v1464 = vsel %vm1441, %v1461, %v1463
      %v1465 = vrot.slane %v1434, 1
      %v1466 = vsel %vm1441, %v1463, %v1465
      %v1467 = vrot.slane %v1435, 1
      %v1468 = vsel %vm1441, %v1465, %v1467
      %v1469 = vrot.slane %v1436, 1
      %v1470 = vsel %vm1441, %v1467, %v1469
      %v1471 = vrot.slane %v1437, 1
      %v1472 = vsel %vm1441, %v1469, %v1471
      %v1473 = vrot.slane %v1438, 1
      %v1474 = vsel %vm1441, %v1471, %v1473
      %v1475 = vrot.slane %v1439, 1
      %v1476 = vsel %vm1441, %v1473, %v1475
      %v1477 = vrot.slane %v1440, 1
      %v1478 = vsel %vm1441, %v1475, %v1477
      %v1480 = vsel %vm495, %v1444, 0
      %v1483 = vsel %vm495, %v1446, 0
      %v1486 = vsel %vm495, %v1448, 0
      %v1489 = vsel %vm495, %v1450, 0
      %v1492 = vsel %vm495, %v1452, 0
      %v1495 = vsel %vm495, %v1454, 0
      %v1498 = vsel %vm495, %v1456, 0
      %v1501 = vsel %vm495, %v1458, 0
      %v1504 = vsel %vm495, %v1460, 0
      %v1507 = vsel %vm495, %v1462, 0
      %v1510 = vsel %vm495, %v1464, 0
      %v1513 = vsel %vm495, %v1466, 0
      %v1516 = vsel %vm495, %v1468, 0
      %v1519 = vsel %vm495, %v1470, 0
      %v1522 = vsel %vm495, %v1472, 0
      %v1525 = vsel %vm495, %v1474, 0
      %v1528 = vsel %vm495, %v1476, 0
      %v1531 = vsel %vm495, %v1478, 0
      %v1534 = vand.u32 %v1347, %v553
      %1536 = vmatpush.bf16.msra.mxu0 0
      %1537 = vmatpush.bf16.msra.mxu0 0
      %1538 = vmatpush.bf16.msra.mxu0 0
      %1539 = vmatpush.bf16.msra.mxu0 0
      %1540 = vmatpush.bf16.msra.mxu0 0
      %1541 = vmatpush.bf16.msra.mxu0 0
      %1542 = vmatpush.bf16.msra.mxu0 0
      %1543 = vmatpush.bf16.msra.mxu0 %v1534
      %1544 = vmatmul.bf16.gmra.mxu0 %v1480
      %v1545 = vpop.f32.mrf.mxu0
      %v1546 = vadd.f32 0.0, %v1545
      %v1547 = vpop.f32.mrf.mxu0
      %v1548 = vadd.f32 0.0, %v1547
      %1549 = vmatmul.bf16.gmra.mxu0 %v1483
      %v1550 = vpop.f32.mrf.mxu0
      %v1551 = vadd.f32 0.0, %v1550
      %v1552 = vpop.f32.mrf.mxu0
      %v1553 = vadd.f32 0.0, %v1552
      %1554 = vmatmul.bf16.gmra.mxu0 %v1486
      %v1555 = vpop.f32.mrf.mxu0
      %v1556 = vadd.f32 0.0, %v1555
      %v1557 = vpop.f32.mrf.mxu0
      %v1558 = vadd.f32 0.0, %v1557
      %1559 = vmatmul.bf16.gmra.mxu0 %v1489
      %v1560 = vpop.f32.mrf.mxu0
      %v1561 = vadd.f32 0.0, %v1560
      %v1562 = vpop.f32.mrf.mxu0
      %v1563 = vadd.f32 0.0, %v1562
      %1564 = vmatmul.bf16.gmra.mxu0 %v1492
      %v1565 = vpop.f32.mrf.mxu0
      %v1566 = vadd.f32 0.0, %v1565
      %v1567 = vpop.f32.mrf.mxu0
      %v1568 = vadd.f32 0.0, %v1567
      %1569 = vmatmul.bf16.gmra.mxu0 %v1495
      %v1570 = vpop.f32.mrf.mxu0
      %v1571 = vadd.f32 0.0, %v1570
      %v1572 = vpop.f32.mrf.mxu0
      %v1573 = vadd.f32 0.0, %v1572
      %1574 = vmatmul.bf16.gmra.mxu0 %v1498
      %v1575 = vpop.f32.mrf.mxu0
      %v1576 = vadd.f32 0.0, %v1575
      %v1577 = vpop.f32.mrf.mxu0
      %v1578 = vadd.f32 0.0, %v1577
      %1579 = vmatmul.bf16.gmra.mxu0 %v1501
      %v1580 = vpop.f32.mrf.mxu0
      %v1581 = vadd.f32 0.0, %v1580
      %v1582 = vpop.f32.mrf.mxu0
      %v1583 = vadd.f32 0.0, %v1582
      %1584 = vmatmul.bf16.gmra.mxu0 %v1504
      %v1585 = vpop.f32.mrf.mxu0
      %v1586 = vadd.f32 0.0, %v1585
      %v1587 = vpop.f32.mrf.mxu0
      %v1588 = vadd.f32 0.0, %v1587
      %1589 = vmatmul.bf16.gmra.mxu0 %v1507
      %v1590 = vpop.f32.mrf.mxu0
      %v1591 = vadd.f32 0.0, %v1590
      %v1592 = vpop.f32.mrf.mxu0
      %v1593 = vadd.f32 0.0, %v1592
      %1594 = vmatmul.bf16.gmra.mxu0 %v1510
      %v1595 = vpop.f32.mrf.mxu0
      %v1596 = vadd.f32 0.0, %v1595
      %v1597 = vpop.f32.mrf.mxu0
      %v1598 = vadd.f32 0.0, %v1597
      %1599 = vmatmul.bf16.gmra.mxu0 %v1513
      %v1600 = vpop.f32.mrf.mxu0
      %v1601 = vadd.f32 0.0, %v1600
      %v1602 = vpop.f32.mrf.mxu0
      %v1603 = vadd.f32 0.0, %v1602
      %1604 = vmatmul.bf16.gmra.mxu0 %v1516
      %v1605 = vpop.f32.mrf.mxu0
      %v1606 = vadd.f32 0.0, %v1605
      %v1607 = vpop.f32.mrf.mxu0
      %v1608 = vadd.f32 0.0, %v1607
      %1609 = vmatmul.bf16.gmra.mxu0 %v1519
      %v1610 = vpop.f32.mrf.mxu0
      %v1611 = vadd.f32 0.0, %v1610
      %v1612 = vpop.f32.mrf.mxu0
      %v1613 = vadd.f32 0.0, %v1612
      %1614 = vmatmul.bf16.gmra.mxu0 %v1522
      %v1615 = vpop.f32.mrf.mxu0
      %v1616 = vadd.f32 0.0, %v1615
      %v1617 = vpop.f32.mrf.mxu0
      %v1618 = vadd.f32 0.0, %v1617
      %1619 = vmatmul.bf16.gmra.mxu0 %v1525
      %v1620 = vpop.f32.mrf.mxu0
      %v1621 = vadd.f32 0.0, %v1620
      %v1622 = vpop.f32.mrf.mxu0
      %v1623 = vadd.f32 0.0, %v1622
      %1624 = vmatmul.bf16.gmra.mxu0 %v1528
      %v1625 = vpop.f32.mrf.mxu0
      %v1626 = vadd.f32 0.0, %v1625
      %v1627 = vpop.f32.mrf.mxu0
      %v1628 = vadd.f32 0.0, %v1627
      %1629 = vmatmul.bf16.gmra.mxu0 %v1531
      %v1630 = vpop.f32.mrf.mxu0
      %v1631 = vadd.f32 0.0, %v1630
      %v1632 = vpop.f32.mrf.mxu0
      %v1633 = vadd.f32 0.0, %v1632
      %1634 = vdwg.mxu0
      %v1635 = vadd.f32 %v1310, %v1546
      %v1636 = vadd.f32 %v1311, %v1548
      %v1637 = vadd.f32 %v1312, %v1551
      %v1638 = vadd.f32 %v1313, %v1553
      %v1639 = vadd.f32 %v1314, %v1556
      %v1640 = vadd.f32 %v1315, %v1558
      %v1641 = vadd.f32 %v1316, %v1561
      %v1642 = vadd.f32 %v1317, %v1563
      %v1643 = vadd.f32 %v1318, %v1566
      %v1644 = vadd.f32 %v1319, %v1568
      %v1645 = vadd.f32 %v1320, %v1571
      %v1646 = vadd.f32 %v1321, %v1573
      %v1647 = vadd.f32 %v1322, %v1576
      %v1648 = vadd.f32 %v1323, %v1578
      %v1649 = vadd.f32 %v1324, %v1581
      %v1650 = vadd.f32 %v1325, %v1583
      %v1651 = vadd.f32 %v1326, %v1586
      %v1652 = vadd.f32 %v1327, %v1588
      %v1653 = vadd.f32 %v1328, %v1591
      %v1654 = vadd.f32 %v1329, %v1593
      %v1655 = vadd.f32 %v1330, %v1596
      %v1656 = vadd.f32 %v1331, %v1598
      %v1657 = vadd.f32 %v1332, %v1601
      %v1658 = vadd.f32 %v1333, %v1603
      %v1659 = vadd.f32 %v1334, %v1606
      %v1660 = vadd.f32 %v1335, %v1608
      %v1661 = vadd.f32 %v1336, %v1611
      %v1662 = vadd.f32 %v1337, %v1613
      %v1663 = vadd.f32 %v1338, %v1616
      %v1664 = vadd.f32 %v1339, %v1618
      %v1665 = vadd.f32 %v1340, %v1621
      %v1666 = vadd.f32 %v1341, %v1623
      %v1667 = vadd.f32 %v1342, %v1626
      %v1668 = vadd.f32 %v1343, %v1628
      %v1669 = vadd.f32 %v1344, %v1631
      %v1670 = vadd.f32 %v1345, %v1633
      %1671 = vst [vmem:[#allocation2] sm:$0xff] %v1635
      %1672 = vst [vmem:[#allocation2 + $0x8] sm:$0xff] %v1636
      %1673 = vst [vmem:[#allocation2 + $0x10] sm:$0xff] %v1637
      %1674 = vst [vmem:[#allocation2 + $0x18] sm:$0xff] %v1638
      %1675 = vst [vmem:[#allocation2 + $0x20] sm:$0xff] %v1639
      %1676 = vst [vmem:[#allocation2 + $0x28] sm:$0xff] %v1640
      %1677 = vst [vmem:[#allocation2 + $0x30] sm:$0xff] %v1641
      %1678 = vst [vmem:[#allocation2 + $0x38] sm:$0xff] %v1642
      %1679 = vst [vmem:[#allocation2 + $0x40] sm:$0xff] %v1643
      %1680 = vst [vmem:[#allocation2 + $0x48] sm:$0xff] %v1644
      %1681 = vst [vmem:[#allocation2 + $0x50] sm:$0xff] %v1645
      %1682 = vst [vmem:[#allocation2 + $0x58] sm:$0xff] %v1646
      %1683 = vst [vmem:[#allocation2 + $0x60] sm:$0xff] %v1647
      %1684 = vst [vmem:[#allocation2 + $0x68] sm:$0xff] %v1648
      %1685 = vst [vmem:[#allocation2 + $0x70] sm:$0xff] %v1649
      %1686 = vst [vmem:[#allocation2 + $0x78] sm:$0xff] %v1650
      %1687 = vst [vmem:[#allocation2 + $0x80] sm:$0xff] %v1651
      %1688 = vst [vmem:[#allocation2 + $0x88] sm:$0xff] %v1652
      %1689 = vst [vmem:[#allocation2 + $0x90] sm:$0xff] %v1653
      %1690 = vst [vmem:[#allocation2 + $0x98] sm:$0xff] %v1654
      %1691 = vst [vmem:[#allocation2 + $0xa0] sm:$0xff] %v1655
      %1692 = vst [vmem:[#allocation2 + $0xa8] sm:$0xff] %v1656
      %1693 = vst [vmem:[#allocation2 + $0xb0] sm:$0xff] %v1657
      %1694 = vst [vmem:[#allocation2 + $0xb8] sm:$0xff] %v1658
      %1695 = vst [vmem:[#allocation2 + $0xc0] sm:$0xff] %v1659
      %1696 = vst [vmem:[#allocation2 + $0xc8] sm:$0xff] %v1660
      %1697 = vst [vmem:[#allocation2 + $0xd0] sm:$0xff] %v1661
      %1698 = vst [vmem:[#allocation2 + $0xd8] sm:$0xff] %v1662
      %1699 = vst [vmem:[#allocation2 + $0xe0] sm:$0xff] %v1663
      %1700 = vst [vmem:[#allocation2 + $0xe8] sm:$0xff] %v1664
      %1701 = vst [vmem:[#allocation2 + $0xf0] sm:$0xff] %v1665
      %1702 = vst [vmem:[#allocation2 + $0xf8] sm:$0xff] %v1666
      %1703 = vst [vmem:[#allocation2 + $0x100] sm:$0xff] %v1667
      %1704 = vst [vmem:[#allocation2 + $0x108] sm:$0xff] %v1668
      %1705 = vst [vmem:[#allocation2 + $0x110] sm:$0xff] %v1669
      %1706 = vst [vmem:[#allocation2 + $0x118] sm:$0xff] %v1670
      %v1707 = vld [vmem:[%s280 + $0x8] sm:$0xe]
      %v1708 = vld [vmem:[%s280 + $0xc] sm:$0xf]
      %v1709 = vld [vmem:[%s280 + $0x10] sm:$0xf]
      %v1710 = vld [vmem:[%s280 + $0x14] sm:$0xf]
      %v1711 = vld [vmem:[%s280 + $0x18] sm:$0xf]
      %v1712 = vld [vmem:[%s280 + $0x1c] sm:$0xf]
      %v1713 = vld [vmem:[%s280 + $0x20] sm:$0xf]
      %v1714 = vld [vmem:[%s280 + $0x24] sm:$0xf]
      %v1715 = vld [vmem:[%s280 + $0x28] sm:$0xf]
      %v1716 = vld [vmem:[%s280 + $0x2c] sm:$0xf]
      %v1717 = vld [vmem:[%s280 + $0x30] sm:$0xf]
      %v1718 = vld [vmem:[%s280 + $0x34] sm:$0xf]
      %v1719 = vld [vmem:[%s280 + $0x38] sm:$0xf]
      %v1720 = vld [vmem:[%s280 + $0x3c] sm:$0xf]
      %v1721 = vld [vmem:[%s280 + $0x40] sm:$0xf]
      %v1722 = vld [vmem:[%s280 + $0x44] sm:$0xf]
      %v1723 = vld [vmem:[%s280 + $0x48] sm:$0xf]
      %v1724 = vld [vmem:[%s280 + $0x4c] sm:$0xf]
      %v1725 = vld [vmem:[%s280 + $0x50] sm:$0xf]
      %v1726 = vld [vmem:[%s280 + $0x54] sm:$0xf]
      %v1727 = vld [vmem:[%s280 + $0x58] sm:$0xf]
      %v1728 = vld [vmem:[%s280 + $0x5c] sm:$0xf]
      %v1729 = vld [vmem:[%s280 + $0x60] sm:$0xf]
      %v1730 = vld [vmem:[%s280 + $0x64] sm:$0xf]
      %v1731 = vld [vmem:[%s280 + $0x68] sm:$0xf]
      %v1732 = vld [vmem:[%s280 + $0x6c] sm:$0xf]
      %v1733 = vld [vmem:[%s280 + $0x70] sm:$0xf]
      %v1734 = vld [vmem:[%s280 + $0x74] sm:$0xf]
      %v1735 = vld [vmem:[%s280 + $0x78] sm:$0xf]
      %v1736 = vld [vmem:[%s280 + $0x7c] sm:$0xf]
      %v1737 = vld [vmem:[%s280 + $0x80] sm:$0xf]
      %v1738 = vld [vmem:[%s280 + $0x84] sm:$0xf]
      %v1739 = vld [vmem:[%s280 + $0x88] sm:$0xf]
      %v1740 = vld [vmem:[%s280 + $0x8c] sm:$0xf]
      %v1741 = vld [vmem:[%s280 + $0x90] sm:$0xf]
      %v1742 = vld [vmem:[%s280 + $0x94] sm:$0xf]
      %v1743 = vld [vmem:[%s280 + $0x98] sm:$0x1]
      %v1744 = vld [vmem:[#allocation2] sm:$0xff]
      %v1745 = vld [vmem:[#allocation2 + $0x8] sm:$0xff]
      %v1746 = vld [vmem:[#allocation2 + $0x10] sm:$0xff]
      %v1747 = vld [vmem:[#allocation2 + $0x18] sm:$0xff]
      %v1748 = vld [vmem:[#allocation2 + $0x20] sm:$0xff]
      %v1749 = vld [vmem:[#allocation2 + $0x28] sm:$0xff]
      %v1750 = vld [vmem:[#allocation2 + $0x30] sm:$0xff]
      %v1751 = vld [vmem:[#allocation2 + $0x38] sm:$0xff]
      %v1752 = vld [vmem:[#allocation2 + $0x40] sm:$0xff]
      %v1753 = vld [vmem:[#allocation2 + $0x48] sm:$0xff]
      %v1754 = vld [vmem:[#allocation2 + $0x50] sm:$0xff]
      %v1755 = vld [vmem:[#allocation2 + $0x58] sm:$0xff]
      %v1756 = vld [vmem:[#allocation2 + $0x60] sm:$0xff]
      %v1757 = vld [vmem:[#allocation2 + $0x68] sm:$0xff]
      %v1758 = vld [vmem:[#allocation2 + $0x70] sm:$0xff]
      %v1759 = vld [vmem:[#allocation2 + $0x78] sm:$0xff]
      %v1760 = vld [vmem:[#allocation2 + $0x80] sm:$0xff]
      %v1761 = vld [vmem:[#allocation2 + $0x88] sm:$0xff]
      %v1762 = vld [vmem:[#allocation2 + $0x90] sm:$0xff]
      %v1763 = vld [vmem:[#allocation2 + $0x98] sm:$0xff]
      %v1764 = vld [vmem:[#allocation2 + $0xa0] sm:$0xff]
      %v1765 = vld [vmem:[#allocation2 + $0xa8] sm:$0xff]
      %v1766 = vld [vmem:[#allocation2 + $0xb0] sm:$0xff]
      %v1767 = vld [vmem:[#allocation2 + $0xb8] sm:$0xff]
      %v1768 = vld [vmem:[#allocation2 + $0xc0] sm:$0xff]
      %v1769 = vld [vmem:[#allocation2 + $0xc8] sm:$0xff]
      %v1770 = vld [vmem:[#allocation2 + $0xd0] sm:$0xff]
      %v1771 = vld [vmem:[#allocation2 + $0xd8] sm:$0xff]
      %v1772 = vld [vmem:[#allocation2 + $0xe0] sm:$0xff]
      %v1773 = vld [vmem:[#allocation2 + $0xe8] sm:$0xff]
      %v1774 = vld [vmem:[#allocation2 + $0xf0] sm:$0xff]
      %v1775 = vld [vmem:[#allocation2 + $0xf8] sm:$0xff]
      %v1776 = vld [vmem:[#allocation2 + $0x100] sm:$0xff]
      %v1777 = vld [vmem:[#allocation2 + $0x108] sm:$0xff]
      %v1778 = vld [vmem:[#allocation2 + $0x110] sm:$0xff]
      %v1779 = vld [vmem:[#allocation2 + $0x118] sm:$0xff]
      %s1780 = scalar_lea.vmem %s1, 6
      %v1781 = vld [vmem:[%s1780] sm:$0x3]
      %v1819 = vunpack.c.l.b16 %v1707
      %v1820 = vunpack.c.l.b16 %v1708
      %v1821 = vunpack.c.l.b16 %v1709
      %v1822 = vunpack.c.l.b16 %v1710
      %v1823 = vunpack.c.l.b16 %v1711
      %v1824 = vunpack.c.l.b16 %v1712
      %v1825 = vunpack.c.l.b16 %v1713
      %v1826 = vunpack.c.l.b16 %v1714
      %v1827 = vunpack.c.l.b16 %v1715
      %v1828 = vunpack.c.l.b16 %v1716
      %v1829 = vunpack.c.l.b16 %v1717
      %v1830 = vunpack.c.l.b16 %v1718
      %v1831 = vunpack.c.l.b16 %v1719
      %v1832 = vunpack.c.l.b16 %v1720
      %v1833 = vunpack.c.l.b16 %v1721
      %v1834 = vunpack.c.l.b16 %v1722
      %v1835 = vunpack.c.l.b16 %v1723
      %v1836 = vunpack.c.l.b16 %v1724
      %v1837 = vunpack.c.l.b16 %v1725
      %v1838 = vunpack.c.l.b16 %v1726
      %v1839 = vunpack.c.l.b16 %v1727
      %v1840 = vunpack.c.l.b16 %v1728
      %v1841 = vunpack.c.l.b16 %v1729
      %v1842 = vunpack.c.l.b16 %v1730
      %v1843 = vunpack.c.l.b16 %v1731
      %v1844 = vunpack.c.l.b16 %v1732
      %v1845 = vunpack.c.l.b16 %v1733
      %v1846 = vunpack.c.l.b16 %v1734
      %v1847 = vunpack.c.l.b16 %v1735
      %v1848 = vunpack.c.l.b16 %v1736
      %v1849 = vunpack.c.l.b16 %v1737
      %v1850 = vunpack.c.l.b16 %v1738
      %v1851 = vunpack.c.l.b16 %v1739
      %v1852 = vunpack.c.l.b16 %v1740
      %v1853 = vunpack.c.l.b16 %v1741
      %v1854 = vunpack.c.l.b16 %v1742
      %v1855 = vunpack.c.l.b16 %v1743
      %v1856 = vpack.c.b16 %v1820, %v1819
      %v1857 = vpack.c.b16 %v1822, %v1821
      %v1858 = vpack.c.b16 %v1824, %v1823
      %v1859 = vpack.c.b16 %v1826, %v1825
      %v1860 = vpack.c.b16 %v1828, %v1827
      %v1861 = vpack.c.b16 %v1830, %v1829
      %v1862 = vpack.c.b16 %v1832, %v1831
      %v1863 = vpack.c.b16 %v1834, %v1833
      %v1864 = vpack.c.b16 %v1836, %v1835
      %v1865 = vpack.c.b16 %v1838, %v1837
      %v1866 = vpack.c.b16 %v1840, %v1839
      %v1867 = vpack.c.b16 %v1842, %v1841
      %v1868 = vpack.c.b16 %v1844, %v1843
      %v1869 = vpack.c.b16 %v1846, %v1845
      %v1870 = vpack.c.b16 %v1848, %v1847
      %v1871 = vpack.c.b16 %v1850, %v1849
      %v1872 = vpack.c.b16 %v1852, %v1851
      %v1873 = vpack.c.b16 %v1854, %v1853
      %v1874 = vpack.c.b16 %v1855, %v1855
      %v1875 = vrot.slane %v1856, 1
      %v1876 = vrot.slane %v1857, 1
      %v1877 = vsel %vm1441, %v1875, %v1876
      %v1878 = vrot.slane %v1858, 1
      %v1879 = vsel %vm1441, %v1876, %v1878
      %v1880 = vrot.slane %v1859, 1
      %v1881 = vsel %vm1441, %v1878, %v1880
      %v1882 = vrot.slane %v1860, 1
      %v1883 = vsel %vm1441, %v1880, %v1882
      %v1884 = vrot.slane %v1861, 1
      %v1885 = vsel %vm1441, %v1882, %v1884
      %v1886 = vrot.slane %v1862, 1
      %v1887 = vsel %vm1441, %v1884, %v1886
      %v1888 = vrot.slane %v1863, 1
      %v1889 = vsel %vm1441, %v1886, %v1888
      %v1890 = vrot.slane %v1864, 1
      %v1891 = vsel %vm1441, %v1888, %v1890
      %v1892 = vrot.slane %v1865, 1
      %v1893 = vsel %vm1441, %v1890, %v1892
      %v1894 = vrot.slane %v1866, 1
      %v1895 = vsel %vm1441, %v1892, %v1894
      %v1896 = vrot.slane %v1867, 1
      %v1897 = vsel %vm1441, %v1894, %v1896
      %v1898 = vrot.slane %v1868, 1
      %v1899 = vsel %vm1441, %v1896, %v1898
      %v1900 = vrot.slane %v1869, 1
      %v1901 = vsel %vm1441, %v1898, %v1900
      %v1902 = vrot.slane %v1870, 1
      %v1903 = vsel %vm1441, %v1900, %v1902
      %v1904 = vrot.slane %v1871, 1
      %v1905 = vsel %vm1441, %v1902, %v1904
      %v1906 = vrot.slane %v1872, 1
      %v1907 = vsel %vm1441, %v1904, %v1906
      %v1908 = vrot.slane %v1873, 1
      %v1909 = vsel %vm1441, %v1906, %v1908
      %v1910 = vrot.slane %v1874, 1
      %v1911 = vsel %vm1441, %v1908, %v1910
      %v1913 = vsel %vm495, %v1877, 0
      %v1916 = vsel %vm495, %v1879, 0
      %v1919 = vsel %vm495, %v1881, 0
      %v1922 = vsel %vm495, %v1883, 0
      %v1925 = vsel %vm495, %v1885, 0
      %v1928 = vsel %vm495, %v1887, 0
      %v1931 = vsel %vm495, %v1889, 0
      %v1934 = vsel %vm495, %v1891, 0
      %v1937 = vsel %vm495, %v1893, 0
      %v1940 = vsel %vm495, %v1895, 0
      %v1943 = vsel %vm495, %v1897, 0
      %v1946 = vsel %vm495, %v1899, 0
      %v1949 = vsel %vm495, %v1901, 0
      %v1952 = vsel %vm495, %v1903, 0
      %v1955 = vsel %vm495, %v1905, 0
      %v1958 = vsel %vm495, %v1907, 0
      %v1961 = vsel %vm495, %v1909, 0
      %v1964 = vsel %vm495, %v1911, 0
      %v1967 = vand.u32 %v1781, %v553
      %1969 = vmatpush.bf16.msra.mxu0 0
      %1970 = vmatpush.bf16.msra.mxu0 0
      %1971 = vmatpush.bf16.msra.mxu0 0
      %1972 = vmatpush.bf16.msra.mxu0 0
      %1973 = vmatpush.bf16.msra.mxu0 0
      %1974 = vmatpush.bf16.msra.mxu0 0
      %1975 = vmatpush.bf16.msra.mxu0 0
      %1976 = vmatpush.bf16.msra.mxu0 %v1967
      %1977 = vmatmul.bf16.gmra.mxu0 %v1913
      %v1978 = vpop.f32.mrf.mxu0
      %v1979 = vadd.f32 0.0, %v1978
      %v1980 = vpop.f32.mrf.mxu0
      %v1981 = vadd.f32 0.0, %v1980
      %1982 = vmatmul.bf16.gmra.mxu0 %v1916
      %v1983 = vpop.f32.mrf.mxu0
      %v1984 = vadd.f32 0.0, %v1983
      %v1985 = vpop.f32.mrf.mxu0
      %v1986 = vadd.f32 0.0, %v1985
      %1987 = vmatmul.bf16.gmra.mxu0 %v1919
      %v1988 = vpop.f32.mrf.mxu0
      %v1989 = vadd.f32 0.0, %v1988
      %v1990 = vpop.f32.mrf.mxu0
      %v1991 = vadd.f32 0.0, %v1990
      %1992 = vmatmul.bf16.gmra.mxu0 %v1922
      %v1993 = vpop.f32.mrf.mxu0
      %v1994 = vadd.f32 0.0, %v1993
      %v1995 = vpop.f32.mrf.mxu0
      %v1996 = vadd.f32 0.0, %v1995
      %1997 = vmatmul.bf16.gmra.mxu0 %v1925
      %v1998 = vpop.f32.mrf.mxu0
      %v1999 = vadd.f32 0.0, %v1998
      %v2000 = vpop.f32.mrf.mxu0
      %v2001 = vadd.f32 0.0, %v2000
      %2002 = vmatmul.bf16.gmra.mxu0 %v1928
      %v2003 = vpop.f32.mrf.mxu0
      %v2004 = vadd.f32 0.0, %v2003
      %v2005 = vpop.f32.mrf.mxu0
      %v2006 = vadd.f32 0.0, %v2005
      %2007 = vmatmul.bf16.gmra.mxu0 %v1931
      %v2008 = vpop.f32.mrf.mxu0
      %v2009 = vadd.f32 0.0, %v2008
      %v2010 = vpop.f32.mrf.mxu0
      %v2011 = vadd.f32 0.0, %v2010
      %2012 = vmatmul.bf16.gmra.mxu0 %v1934
      %v2013 = vpop.f32.mrf.mxu0
      %v2014 = vadd.f32 0.0, %v2013
      %v2015 = vpop.f32.mrf.mxu0
      %v2016 = vadd.f32 0.0, %v2015
      %2017 = vmatmul.bf16.gmra.mxu0 %v1937
      %v2018 = vpop.f32.mrf.mxu0
      %v2019 = vadd.f32 0.0, %v2018
      %v2020 = vpop.f32.mrf.mxu0
      %v2021 = vadd.f32 0.0, %v2020
      %2022 = vmatmul.bf16.gmra.mxu0 %v1940
      %v2023 = vpop.f32.mrf.mxu0
      %v2024 = vadd.f32 0.0, %v2023
      %v2025 = vpop.f32.mrf.mxu0
      %v2026 = vadd.f32 0.0, %v2025
      %2027 = vmatmul.bf16.gmra.mxu0 %v1943
      %v2028 = vpop.f32.mrf.mxu0
      %v2029 = vadd.f32 0.0, %v2028
      %v2030 = vpop.f32.mrf.mxu0
      %v2031 = vadd.f32 0.0, %v2030
      %2032 = vmatmul.bf16.gmra.mxu0 %v1946
      %v2033 = vpop.f32.mrf.mxu0
      %v2034 = vadd.f32 0.0, %v2033
      %v2035 = vpop.f32.mrf.mxu0
      %v2036 = vadd.f32 0.0, %v2035
      %2037 = vmatmul.bf16.gmra.mxu0 %v1949
      %v2038 = vpop.f32.mrf.mxu0
      %v2039 = vadd.f32 0.0, %v2038
      %v2040 = vpop.f32.mrf.mxu0
      %v2041 = vadd.f32 0.0, %v2040
      %2042 = vmatmul.bf16.gmra.mxu0 %v1952
      %v2043 = vpop.f32.mrf.mxu0
      %v2044 = vadd.f32 0.0, %v2043
      %v2045 = vpop.f32.mrf.mxu0
      %v2046 = vadd.f32 0.0, %v2045
      %2047 = vmatmul.bf16.gmra.mxu0 %v1955
      %v2048 = vpop.f32.mrf.mxu0
      %v2049 = vadd.f32 0.0, %v2048
      %v2050 = vpop.f32.mrf.mxu0
      %v2051 = vadd.f32 0.0, %v2050
      %2052 = vmatmul.bf16.gmra.mxu0 %v1958
      %v2053 = vpop.f32.mrf.mxu0
      %v2054 = vadd.f32 0.0, %v2053
      %v2055 = vpop.f32.mrf.mxu0
      %v2056 = vadd.f32 0.0, %v2055
      %2057 = vmatmul.bf16.gmra.mxu0 %v1961
      %v2058 = vpop.f32.mrf.mxu0
      %v2059 = vadd.f32 0.0, %v2058
      %v2060 = vpop.f32.mrf.mxu0
      %v2061 = vadd.f32 0.0, %v2060
      %2062 = vmatmul.bf16.gmra.mxu0 %v1964
      %v2063 = vpop.f32.mrf.mxu0
      %v2064 = vadd.f32 0.0, %v2063
      %v2065 = vpop.f32.mrf.mxu0
      %v2066 = vadd.f32 0.0, %v2065
      %2067 = vdwg.mxu0
      %v2068 = vadd.f32 %v1744, %v1979
      %v2069 = vadd.f32 %v1745, %v1981
      %v2070 = vadd.f32 %v1746, %v1984
      %v2071 = vadd.f32 %v1747, %v1986
      %v2072 = vadd.f32 %v1748, %v1989
      %v2073 = vadd.f32 %v1749, %v1991
      %v2074 = vadd.f32 %v1750, %v1994
      %v2075 = vadd.f32 %v1751, %v1996
      %v2076 = vadd.f32 %v1752, %v1999
      %v2077 = vadd.f32 %v1753, %v2001
      %v2078 = vadd.f32 %v1754, %v2004
      %v2079 = vadd.f32 %v1755, %v2006
      %v2080 = vadd.f32 %v1756, %v2009
      %v2081 = vadd.f32 %v1757, %v2011
      %v2082 = vadd.f32 %v1758, %v2014
      %v2083 = vadd.f32 %v1759, %v2016
      %v2084 = vadd.f32 %v1760, %v2019
      %v2085 = vadd.f32 %v1761, %v2021
      %v2086 = vadd.f32 %v1762, %v2024
      %v2087 = vadd.f32 %v1763, %v2026
      %v2088 = vadd.f32 %v1764, %v2029
      %v2089 = vadd.f32 %v1765, %v2031
      %v2090 = vadd.f32 %v1766, %v2034
      %v2091 = vadd.f32 %v1767, %v2036
      %v2092 = vadd.f32 %v1768, %v2039
      %v2093 = vadd.f32 %v1769, %v2041
      %v2094 = vadd.f32 %v1770, %v2044
      %v2095 = vadd.f32 %v1771, %v2046
      %v2096 = vadd.f32 %v1772, %v2049
      %v2097 = vadd.f32 %v1773, %v2051
      %v2098 = vadd.f32 %v1774, %v2054
      %v2099 = vadd.f32 %v1775, %v2056
      %v2100 = vadd.f32 %v1776, %v2059
      %v2101 = vadd.f32 %v1777, %v2061
      %v2102 = vadd.f32 %v1778, %v2064
      %v2103 = vadd.f32 %v1779, %v2066
      %2104 = vst [vmem:[#allocation2] sm:$0xff] %v2068
      %2105 = vst [vmem:[#allocation2 + $0x8] sm:$0xff] %v2069
      %2106 = vst [vmem:[#allocation2 + $0x10] sm:$0xff] %v2070
      %2107 = vst [vmem:[#allocation2 + $0x18] sm:$0xff] %v2071
      %2108 = vst [vmem:[#allocation2 + $0x20] sm:$0xff] %v2072
      %2109 = vst [vmem:[#allocation2 + $0x28] sm:$0xff] %v2073
      %2110 = vst [vmem:[#allocation2 + $0x30] sm:$0xff] %v2074
      %2111 = vst [vmem:[#allocation2 + $0x38] sm:$0xff] %v2075
      %2112 = vst [vmem:[#allocation2 + $0x40] sm:$0xff] %v2076
      %2113 = vst [vmem:[#allocation2 + $0x48] sm:$0xff] %v2077
      %2114 = vst [vmem:[#allocation2 + $0x50] sm:$0xff] %v2078
      %2115 = vst [vmem:[#allocation2 + $0x58] sm:$0xff] %v2079
      %2116 = vst [vmem:[#allocation2 + $0x60] sm:$0xff] %v2080
      %2117 = vst [vmem:[#allocation2 + $0x68] sm:$0xff] %v2081
      %2118 = vst [vmem:[#allocation2 + $0x70] sm:$0xff] %v2082
      %2119 = vst [vmem:[#allocation2 + $0x78] sm:$0xff] %v2083
      %2120 = vst [vmem:[#allocation2 + $0x80] sm:$0xff] %v2084
      %2121 = vst [vmem:[#allocation2 + $0x88] sm:$0xff] %v2085
      %2122 = vst [vmem:[#allocation2 + $0x90] sm:$0xff] %v2086
      %2123 = vst [vmem:[#allocation2 + $0x98] sm:$0xff] %v2087
      %2124 = vst [vmem:[#allocation2 + $0xa0] sm:$0xff] %v2088
      %2125 = vst [vmem:[#allocation2 + $0xa8] sm:$0xff] %v2089
      %2126 = vst [vmem:[#allocation2 + $0xb0] sm:$0xff] %v2090
      %2127 = vst [vmem:[#allocation2 + $0xb8] sm:$0xff] %v2091
      %2128 = vst [vmem:[#allocation2 + $0xc0] sm:$0xff] %v2092
      %2129 = vst [vmem:[#allocation2 + $0xc8] sm:$0xff] %v2093
      %2130 = vst [vmem:[#allocation2 + $0xd0] sm:$0xff] %v2094
      %2131 = vst [vmem:[#allocation2 + $0xd8] sm:$0xff] %v2095
      %2132 = vst [vmem:[#allocation2 + $0xe0] sm:$0xff] %v2096
      %2133 = vst [vmem:[#allocation2 + $0xe8] sm:$0xff] %v2097
      %2134 = vst [vmem:[#allocation2 + $0xf0] sm:$0xff] %v2098
      %2135 = vst [vmem:[#allocation2 + $0xf8] sm:$0xff] %v2099
      %2136 = vst [vmem:[#allocation2 + $0x100] sm:$0xff] %v2100
      %2137 = vst [vmem:[#allocation2 + $0x108] sm:$0xff] %v2101
      %2138 = vst [vmem:[#allocation2 + $0x110] sm:$0xff] %v2102
      %2139 = vst [vmem:[#allocation2 + $0x118] sm:$0xff] %v2103
      %v2140 = vld [vmem:[%s280 + $0x8] sm:$0xe]
      %v2141 = vld [vmem:[%s280 + $0xc] sm:$0xf]
      %v2142 = vld [vmem:[%s280 + $0x10] sm:$0xf]
      %v2143 = vld [vmem:[%s280 + $0x14] sm:$0xf]
      %v2144 = vld [vmem:[%s280 + $0x18] sm:$0xf]
      %v2145 = vld [vmem:[%s280 + $0x1c] sm:$0xf]
      %v2146 = vld [vmem:[%s280 + $0x20] sm:$0xf]
      %v2147 = vld [vmem:[%s280 + $0x24] sm:$0xf]
      %v2148 = vld [vmem:[%s280 + $0x28] sm:$0xf]
      %v2149 = vld [vmem:[%s280 + $0x2c] sm:$0xf]
      %v2150 = vld [vmem:[%s280 + $0x30] sm:$0xf]
      %v2151 = vld [vmem:[%s280 + $0x34] sm:$0xf]
      %v2152 = vld [vmem:[%s280 + $0x38] sm:$0xf]
      %v2153 = vld [vmem:[%s280 + $0x3c] sm:$0xf]
      %v2154 = vld [vmem:[%s280 + $0x40] sm:$0xf]
      %v2155 = vld [vmem:[%s280 + $0x44] sm:$0xf]
      %v2156 = vld [vmem:[%s280 + $0x48] sm:$0xf]
      %v2157 = vld [vmem:[%s280 + $0x4c] sm:$0xf]
      %v2158 = vld [vmem:[%s280 + $0x50] sm:$0xf]
      %v2159 = vld [vmem:[%s280 + $0x54] sm:$0xf]
      %v2160 = vld [vmem:[%s280 + $0x58] sm:$0xf]
      %v2161 = vld [vmem:[%s280 + $0x5c] sm:$0xf]
      %v2162 = vld [vmem:[%s280 + $0x60] sm:$0xf]
      %v2163 = vld [vmem:[%s280 + $0x64] sm:$0xf]
      %v2164 = vld [vmem:[%s280 + $0x68] sm:$0xf]
      %v2165 = vld [vmem:[%s280 + $0x6c] sm:$0xf]
      %v2166 = vld [vmem:[%s280 + $0x70] sm:$0xf]
      %v2167 = vld [vmem:[%s280 + $0x74] sm:$0xf]
      %v2168 = vld [vmem:[%s280 + $0x78] sm:$0xf]
      %v2169 = vld [vmem:[%s280 + $0x7c] sm:$0xf]
      %v2170 = vld [vmem:[%s280 + $0x80] sm:$0xf]
      %v2171 = vld [vmem:[%s280 + $0x84] sm:$0xf]
      %v2172 = vld [vmem:[%s280 + $0x88] sm:$0xf]
      %v2173 = vld [vmem:[%s280 + $0x8c] sm:$0xf]
      %v2174 = vld [vmem:[%s280 + $0x90] sm:$0xf]
      %v2175 = vld [vmem:[%s280 + $0x94] sm:$0xf]
      %v2176 = vld [vmem:[%s280 + $0x98] sm:$0x3]
      %v2177 = vld [vmem:[#allocation2] sm:$0xff]
      %v2178 = vld [vmem:[#allocation2 + $0x8] sm:$0xff]
      %v2179 = vld [vmem:[#allocation2 + $0x10] sm:$0xff]
      %v2180 = vld [vmem:[#allocation2 + $0x18] sm:$0xff]
      %v2181 = vld [vmem:[#allocation2 + $0x20] sm:$0xff]
      %v2182 = vld [vmem:[#allocation2 + $0x28] sm:$0xff]
      %v2183 = vld [vmem:[#allocation2 + $0x30] sm:$0xff]
      %v2184 = vld [vmem:[#allocation2 + $0x38] sm:$0xff]
      %v2185 = vld [vmem:[#allocation2 + $0x40] sm:$0xff]
      %v2186 = vld [vmem:[#allocation2 + $0x48] sm:$0xff]
      %v2187 = vld [vmem:[#allocation2 + $0x50] sm:$0xff]
      %v2188 = vld [vmem:[#allocation2 + $0x58] sm:$0xff]
      %v2189 = vld [vmem:[#allocation2 + $0x60] sm:$0xff]
      %v2190 = vld [vmem:[#allocation2 + $0x68] sm:$0xff]
      %v2191 = vld [vmem:[#allocation2 + $0x70] sm:$0xff]
      %v2192 = vld [vmem:[#allocation2 + $0x78] sm:$0xff]
      %v2193 = vld [vmem:[#allocation2 + $0x80] sm:$0xff]
      %v2194 = vld [vmem:[#allocation2 + $0x88] sm:$0xff]
      %v2195 = vld [vmem:[#allocation2 + $0x90] sm:$0xff]
      %v2196 = vld [vmem:[#allocation2 + $0x98] sm:$0xff]
      %v2197 = vld [vmem:[#allocation2 + $0xa0] sm:$0xff]
      %v2198 = vld [vmem:[#allocation2 + $0xa8] sm:$0xff]
      %v2199 = vld [vmem:[#allocation2 + $0xb0] sm:$0xff]
      %v2200 = vld [vmem:[#allocation2 + $0xb8] sm:$0xff]
      %v2201 = vld [vmem:[#allocation2 + $0xc0] sm:$0xff]
      %v2202 = vld [vmem:[#allocation2 + $0xc8] sm:$0xff]
      %v2203 = vld [vmem:[#allocation2 + $0xd0] sm:$0xff]
      %v2204 = vld [vmem:[#allocation2 + $0xd8] sm:$0xff]
      %v2205 = vld [vmem:[#allocation2 + $0xe0] sm:$0xff]
      %v2206 = vld [vmem:[#allocation2 + $0xe8] sm:$0xff]
      %v2207 = vld [vmem:[#allocation2 + $0xf0] sm:$0xff]
      %v2208 = vld [vmem:[#allocation2 + $0xf8] sm:$0xff]
      %v2209 = vld [vmem:[#allocation2 + $0x100] sm:$0xff]
      %v2210 = vld [vmem:[#allocation2 + $0x108] sm:$0xff]
      %v2211 = vld [vmem:[#allocation2 + $0x110] sm:$0xff]
      %v2212 = vld [vmem:[#allocation2 + $0x118] sm:$0xff]
      %s2213 = scalar_lea.vmem %s1, 8
      %v2214 = vld [vmem:[%s2213] sm:$0x3]
      %v2252 = vunpack.c.l.b16 %v2140
      %v2253 = vunpack.c.l.b16 %v2141
      %v2254 = vunpack.c.l.b16 %v2142
      %v2255 = vunpack.c.l.b16 %v2143
      %v2256 = vunpack.c.l.b16 %v2144
      %v2257 = vunpack.c.l.b16 %v2145
      %v2258 = vunpack.c.l.b16 %v2146
      %v2259 = vunpack.c.l.b16 %v2147
      %v2260 = vunpack.c.l.b16 %v2148
      %v2261 = vunpack.c.l.b16 %v2149
      %v2262 = vunpack.c.l.b16 %v2150
      %v2263 = vunpack.c.l.b16 %v2151
      %v2264 = vunpack.c.l.b16 %v2152
      %v2265 = vunpack.c.l.b16 %v2153
      %v2266 = vunpack.c.l.b16 %v2154
      %v2267 = vunpack.c.l.b16 %v2155
      %v2268 = vunpack.c.l.b16 %v2156
      %v2269 = vunpack.c.l.b16 %v2157
      %v2270 = vunpack.c.l.b16 %v2158
      %v2271 = vunpack.c.l.b16 %v2159
      %v2272 = vunpack.c.l.b16 %v2160
      %v2273 = vunpack.c.l.b16 %v2161
      %v2274 = vunpack.c.l.b16 %v2162
      %v2275 = vunpack.c.l.b16 %v2163
      %v2276 = vunpack.c.l.b16 %v2164
      %v2277 = vunpack.c.l.b16 %v2165
      %v2278 = vunpack.c.l.b16 %v2166
      %v2279 = vunpack.c.l.b16 %v2167
      %v2280 = vunpack.c.l.b16 %v2168
      %v2281 = vunpack.c.l.b16 %v2169
      %v2282 = vunpack.c.l.b16 %v2170
      %v2283 = vunpack.c.l.b16 %v2171
      %v2284 = vunpack.c.l.b16 %v2172
      %v2285 = vunpack.c.l.b16 %v2173
      %v2286 = vunpack.c.l.b16 %v2174
      %v2287 = vunpack.c.l.b16 %v2175
      %v2288 = vunpack.c.l.b16 %v2176
      %v2289 = vpack.c.b16 %v2253, %v2252
      %v2290 = vpack.c.b16 %v2255, %v2254
      %v2291 = vpack.c.b16 %v2257, %v2256
      %v2292 = vpack.c.b16 %v2259, %v2258
      %v2293 = vpack.c.b16 %v2261, %v2260
      %v2294 = vpack.c.b16 %v2263, %v2262
      %v2295 = vpack.c.b16 %v2265, %v2264
      %v2296 = vpack.c.b16 %v2267, %v2266
      %v2297 = vpack.c.b16 %v2269, %v2268
      %v2298 = vpack.c.b16 %v2271, %v2270
      %v2299 = vpack.c.b16 %v2273, %v2272
      %v2300 = vpack.c.b16 %v2275, %v2274
      %v2301 = vpack.c.b16 %v2277, %v2276
      %v2302 = vpack.c.b16 %v2279, %v2278
      %v2303 = vpack.c.b16 %v2281, %v2280
      %v2304 = vpack.c.b16 %v2283, %v2282
      %v2305 = vpack.c.b16 %v2285, %v2284
      %v2306 = vpack.c.b16 %v2287, %v2286
      %v2307 = vpack.c.b16 %v2288, %v2288
      %vm2308 = vsmask.f32 6400
      %v2310 = vshrl.u32 %v2289, 16
      %v2312 = vrot.slane %v2310, 1
      %v2313 = vshll.u32 %v2289, 16
      %v2315 = vrot.slane %v2313, 2
      %v2316 = vor.u32 %v2312, %v2315
      %v2318 = vshrl.u32 %v2290, 16
      %v2320 = vrot.slane %v2318, 1
      %v2321 = vshll.u32 %v2290, 16
      %v2323 = vrot.slane %v2321, 2
      %v2324 = vor.u32 %v2320, %v2323
      %v2325 = vsel %vm2308, %v2316, %v2324
      %v2327 = vshrl.u32 %v2291, 16
      %v2329 = vrot.slane %v2327, 1
      %v2330 = vshll.u32 %v2291, 16
      %v2332 = vrot.slane %v2330, 2
      %v2333 = vor.u32 %v2329, %v2332
      %v2334 = vsel %vm2308, %v2324, %v2333
      %v2336 = vshrl.u32 %v2292, 16
      %v2338 = vrot.slane %v2336, 1
      %v2339 = vshll.u32 %v2292, 16
      %v2341 = vrot.slane %v2339, 2
      %v2342 = vor.u32 %v2338, %v2341
      %v2343 = vsel %vm2308, %v2333, %v2342
      %v2345 = vshrl.u32 %v2293, 16
      %v2347 = vrot.slane %v2345, 1
      %v2348 = vshll.u32 %v2293, 16
      %v2350 = vrot.slane %v2348, 2
      %v2351 = vor.u32 %v2347, %v2350
      %v2352 = vsel %vm2308, %v2342, %v2351
      %v2354 = vshrl.u32 %v2294, 16
      %v2356 = vrot.slane %v2354, 1
      %v2357 = vshll.u32 %v2294, 16
      %v2359 = vrot.slane %v2357, 2
      %v2360 = vor.u32 %v2356, %v2359
      %v2361 = vsel %vm2308, %v2351, %v2360
      %v2363 = vshrl.u32 %v2295, 16
      %v2365 = vrot.slane %v2363, 1
      %v2366 = vshll.u32 %v2295, 16
      %v2368 = vrot.slane %v2366, 2
      %v2369 = vor.u32 %v2365, %v2368
      %v2370 = vsel %vm2308, %v2360, %v2369
      %v2372 = vshrl.u32 %v2296, 16
      %v2374 = vrot.slane %v2372, 1
      %v2375 = vshll.u32 %v2296, 16
      %v2377 = vrot.slane %v2375, 2
      %v2378 = vor.u32 %v2374, %v2377
      %v2379 = vsel %vm2308, %v2369, %v2378
      %v2381 = vshrl.u32 %v2297, 16
      %v2383 = vrot.slane %v2381, 1
      %v2384 = vshll.u32 %v2297, 16
      %v2386 = vrot.slane %v2384, 2
      %v2387 = vor.u32 %v2383, %v2386
      %v2388 = vsel %vm2308, %v2378, %v2387
      %v2390 = vshrl.u32 %v2298, 16
      %v2392 = vrot.slane %v2390, 1
      %v2393 = vshll.u32 %v2298, 16
      %v2395 = vrot.slane %v2393, 2
      %v2396 = vor.u32 %v2392, %v2395
      %v2397 = vsel %vm2308, %v2387, %v2396
      %v2399 = vshrl.u32 %v2299, 16
      %v2401 = vrot.slane %v2399, 1
      %v2402 = vshll.u32 %v2299, 16
      %v2404 = vrot.slane %v2402, 2
      %v2405 = vor.u32 %v2401, %v2404
      %v2406 = vsel %vm2308, %v2396, %v2405
      %v2408 = vshrl.u32 %v2300, 16
      %v2410 = vrot.slane %v2408, 1
      %v2411 = vshll.u32 %v2300, 16
      %v2413 = vrot.slane %v2411, 2
      %v2414 = vor.u32 %v2410, %v2413
      %v2415 = vsel %vm2308, %v2405, %v2414
      %v2417 = vshrl.u32 %v2301, 16
      %v2419 = vrot.slane %v2417, 1
      %v2420 = vshll.u32 %v2301, 16
      %v2422 = vrot.slane %v2420, 2
      %v2423 = vor.u32 %v2419, %v2422
      %v2424 = vsel %vm2308, %v2414, %v2423
      %v2426 = vshrl.u32 %v2302, 16
      %v2428 = vrot.slane %v2426, 1
      %v2429 = vshll.u32 %v2302, 16
      %v2431 = vrot.slane %v2429, 2
      %v2432 = vor.u32 %v2428, %v2431
      %v2433 = vsel %vm2308, %v2423, %v2432
      %v2435 = vshrl.u32 %v2303, 16
      %v2437 = vrot.slane %v2435, 1
      %v2438 = vshll.u32 %v2303, 16
      %v2440 = vrot.slane %v2438, 2
      %v2441 = vor.u32 %v2437, %v2440
      %v2442 = vsel %vm2308, %v2432, %v2441
      %v2444 = vshrl.u32 %v2304, 16
      %v2446 = vrot.slane %v2444, 1
      %v2447 = vshll.u32 %v2304, 16
      %v2449 = vrot.slane %v2447, 2
      %v2450 = vor.u32 %v2446, %v2449
      %v2451 = vsel %vm2308, %v2441, %v2450
      %v2453 = vshrl.u32 %v2305, 16
      %v2455 = vrot.slane %v2453, 1
      %v2456 = vshll.u32 %v2305, 16
      %v2458 = vrot.slane %v2456, 2
      %v2459 = vor.u32 %v2455, %v2458
      %v2460 = vsel %vm2308, %v2450, %v2459
      %v2462 = vshrl.u32 %v2306, 16
      %v2464 = vrot.slane %v2462, 1
      %v2465 = vshll.u32 %v2306, 16
      %v2467 = vrot.slane %v2465, 2
      %v2468 = vor.u32 %v2464, %v2467
      %v2469 = vsel %vm2308, %v2459, %v2468
      %v2471 = vshrl.u32 %v2307, 16
      %v2473 = vrot.slane %v2471, 1
      %v2474 = vshll.u32 %v2307, 16
      %v2476 = vrot.slane %v2474, 2
      %v2477 = vor.u32 %v2473, %v2476
      %v2478 = vsel %vm2308, %v2468, %v2477
      %v2480 = vsel %vm495, %v2325, 0
      %v2483 = vsel %vm495, %v2334, 0
      %v2486 = vsel %vm495, %v2343, 0
      %v2489 = vsel %vm495, %v2352, 0
      %v2492 = vsel %vm495, %v2361, 0
      %v2495 = vsel %vm495, %v2370, 0
      %v2498 = vsel %vm495, %v2379, 0
      %v2501 = vsel %vm495, %v2388, 0
      %v2504 = vsel %vm495, %v2397, 0
      %v2507 = vsel %vm495, %v2406, 0
      %v2510 = vsel %vm495, %v2415, 0
      %v2513 = vsel %vm495, %v2424, 0
      %v2516 = vsel %vm495, %v2433, 0
      %v2519 = vsel %vm495, %v2442, 0
      %v2522 = vsel %vm495, %v2451, 0
      %v2525 = vsel %vm495, %v2460, 0
      %v2528 = vsel %vm495, %v2469, 0
      %v2531 = vsel %vm495, %v2478, 0
      %v2534 = vand.u32 %v2214, %v553
      %2536 = vmatpush.bf16.msra.mxu0 0
      %2537 = vmatpush.bf16.msra.mxu0 0
      %2538 = vmatpush.bf16.msra.mxu0 0
      %2539 = vmatpush.bf16.msra.mxu0 0
      %2540 = vmatpush.bf16.msra.mxu0 0
      %2541 = vmatpush.bf16.msra.mxu0 0
      %2542 = vmatpush.bf16.msra.mxu0 0
      %2543 = vmatpush.bf16.msra.mxu0 %v2534
      %2544 = vmatmul.bf16.gmra.mxu0 %v2480
      %v2545 = vpop.f32.mrf.mxu0
      %v2546 = vadd.f32 0.0, %v2545
      %v2547 = vpop.f32.mrf.mxu0
      %v2548 = vadd.f32 0.0, %v2547
      %2549 = vmatmul.bf16.gmra.mxu0 %v2483
      %v2550 = vpop.f32.mrf.mxu0
      %v2551 = vadd.f32 0.0, %v2550
      %v2552 = vpop.f32.mrf.mxu0
      %v2553 = vadd.f32 0.0, %v2552
      %2554 = vmatmul.bf16.gmra.mxu0 %v2486
      %v2555 = vpop.f32.mrf.mxu0
      %v2556 = vadd.f32 0.0, %v2555
      %v2557 = vpop.f32.mrf.mxu0
      %v2558 = vadd.f32 0.0, %v2557
      %2559 = vmatmul.bf16.gmra.mxu0 %v2489
      %v2560 = vpop.f32.mrf.mxu0
      %v2561 = vadd.f32 0.0, %v2560
      %v2562 = vpop.f32.mrf.mxu0
      %v2563 = vadd.f32 0.0, %v2562
      %2564 = vmatmul.bf16.gmra.mxu0 %v2492
      %v2565 = vpop.f32.mrf.mxu0
      %v2566 = vadd.f32 0.0, %v2565
      %v2567 = vpop.f32.mrf.mxu0
      %v2568 = vadd.f32 0.0, %v2567
      %2569 = vmatmul.bf16.gmra.mxu0 %v2495
      %v2570 = vpop.f32.mrf.mxu0
      %v2571 = vadd.f32 0.0, %v2570
      %v2572 = vpop.f32.mrf.mxu0
      %v2573 = vadd.f32 0.0, %v2572
      %2574 = vmatmul.bf16.gmra.mxu0 %v2498
      %v2575 = vpop.f32.mrf.mxu0
      %v2576 = vadd.f32 0.0, %v2575
      %v2577 = vpop.f32.mrf.mxu0
      %v2578 = vadd.f32 0.0, %v2577
      %2579 = vmatmul.bf16.gmra.mxu0 %v2501
      %v2580 = vpop.f32.mrf.mxu0
      %v2581 = vadd.f32 0.0, %v2580
      %v2582 = vpop.f32.mrf.mxu0
      %v2583 = vadd.f32 0.0, %v2582
      %2584 = vmatmul.bf16.gmra.mxu0 %v2504
      %v2585 = vpop.f32.mrf.mxu0
      %v2586 = vadd.f32 0.0, %v2585
      %v2587 = vpop.f32.mrf.mxu0
      %v2588 = vadd.f32 0.0, %v2587
      %2589 = vmatmul.bf16.gmra.mxu0 %v2507
      %v2590 = vpop.f32.mrf.mxu0
      %v2591 = vadd.f32 0.0, %v2590
      %v2592 = vpop.f32.mrf.mxu0
      %v2593 = vadd.f32 0.0, %v2592
      %2594 = vmatmul.bf16.gmra.mxu0 %v2510
      %v2595 = vpop.f32.mrf.mxu0
      %v2596 = vadd.f32 0.0, %v2595
      %v2597 = vpop.f32.mrf.mxu0
      %v2598 = vadd.f32 0.0, %v2597
      %2599 = vmatmul.bf16.gmra.mxu0 %v2513
      %v2600 = vpop.f32.mrf.mxu0
      %v2601 = vadd.f32 0.0, %v2600
      %v2602 = vpop.f32.mrf.mxu0
      %v2603 = vadd.f32 0.0, %v2602
      %2604 = vmatmul.bf16.gmra.mxu0 %v2516
      %v2605 = vpop.f32.mrf.mxu0
      %v2606 = vadd.f32 0.0, %v2605
      %v2607 = vpop.f32.mrf.mxu0
      %v2608 = vadd.f32 0.0, %v2607
      %2609 = vmatmul.bf16.gmra.mxu0 %v2519
      %v2610 = vpop.f32.mrf.mxu0
      %v2611 = vadd.f32 0.0, %v2610
      %v2612 = vpop.f32.mrf.mxu0
      %v2613 = vadd.f32 0.0, %v2612
      %2614 = vmatmul.bf16.gmra.mxu0 %v2522
      %v2615 = vpop.f32.mrf.mxu0
      %v2616 = vadd.f32 0.0, %v2615
      %v2617 = vpop.f32.mrf.mxu0
      %v2618 = vadd.f32 0.0, %v2617
      %2619 = vmatmul.bf16.gmra.mxu0 %v2525
      %v2620 = vpop.f32.mrf.mxu0
      %v2621 = vadd.f32 0.0, %v2620
      %v2622 = vpop.f32.mrf.mxu0
      %v2623 = vadd.f32 0.0, %v2622
      %2624 = vmatmul.bf16.gmra.mxu0 %v2528
      %v2625 = vpop.f32.mrf.mxu0
      %v2626 = vadd.f32 0.0, %v2625
      %v2627 = vpop.f32.mrf.mxu0
      %v2628 = vadd.f32 0.0, %v2627
      %2629 = vmatmul.bf16.gmra.mxu0 %v2531
      %v2630 = vpop.f32.mrf.mxu0
      %v2631 = vadd.f32 0.0, %v2630
      %v2632 = vpop.f32.mrf.mxu0
      %v2633 = vadd.f32 0.0, %v2632
      %2634 = vdwg.mxu0
      %v2635 = vadd.f32 %v2177, %v2546
      %v2636 = vadd.f32 %v2178, %v2548
      %v2637 = vadd.f32 %v2179, %v2551
      %v2638 = vadd.f32 %v2180, %v2553
      %v2639 = vadd.f32 %v2181, %v2556
      %v2640 = vadd.f32 %v2182, %v2558
      %v2641 = vadd.f32 %v2183, %v2561
      %v2642 = vadd.f32 %v2184, %v2563
      %v2643 = vadd.f32 %v2185, %v2566
      %v2644 = vadd.f32 %v2186, %v2568
      %v2645 = vadd.f32 %v2187, %v2571
      %v2646 = vadd.f32 %v2188, %v2573
      %v2647 = vadd.f32 %v2189, %v2576
      %v2648 = vadd.f32 %v2190, %v2578
      %v2649 = vadd.f32 %v2191, %v2581
      %v2650 = vadd.f32 %v2192, %v2583
      %v2651 = vadd.f32 %v2193, %v2586
      %v2652 = vadd.f32 %v2194, %v2588
      %v2653 = vadd.f32 %v2195, %v2591
      %v2654 = vadd.f32 %v2196, %v2593
      %v2655 = vadd.f32 %v2197, %v2596
      %v2656 = vadd.f32 %v2198, %v2598
      %v2657 = vadd.f32 %v2199, %v2601
      %v2658 = vadd.f32 %v2200, %v2603
      %v2659 = vadd.f32 %v2201, %v2606
      %v2660 = vadd.f32 %v2202, %v2608
      %v2661 = vadd.f32 %v2203, %v2611
      %v2662 = vadd.f32 %v2204, %v2613
      %v2663 = vadd.f32 %v2205, %v2616
      %v2664 = vadd.f32 %v2206, %v2618
      %v2665 = vadd.f32 %v2207, %v2621
      %v2666 = vadd.f32 %v2208, %v2623
      %v2667 = vadd.f32 %v2209, %v2626
      %v2668 = vadd.f32 %v2210, %v2628
      %v2669 = vadd.f32 %v2211, %v2631
      %v2670 = vadd.f32 %v2212, %v2633
      %2671 = vst [vmem:[#allocation2] sm:$0xff] %v2635
      %2672 = vst [vmem:[#allocation2 + $0x8] sm:$0xff] %v2636
      %2673 = vst [vmem:[#allocation2 + $0x10] sm:$0xff] %v2637
      %2674 = vst [vmem:[#allocation2 + $0x18] sm:$0xff] %v2638
      %2675 = vst [vmem:[#allocation2 + $0x20] sm:$0xff] %v2639
      %2676 = vst [vmem:[#allocation2 + $0x28] sm:$0xff] %v2640
      %2677 = vst [vmem:[#allocation2 + $0x30] sm:$0xff] %v2641
      %2678 = vst [vmem:[#allocation2 + $0x38] sm:$0xff] %v2642
      %2679 = vst [vmem:[#allocation2 + $0x40] sm:$0xff] %v2643
      %2680 = vst [vmem:[#allocation2 + $0x48] sm:$0xff] %v2644
      %2681 = vst [vmem:[#allocation2 + $0x50] sm:$0xff] %v2645
      %2682 = vst [vmem:[#allocation2 + $0x58] sm:$0xff] %v2646
      %2683 = vst [vmem:[#allocation2 + $0x60] sm:$0xff] %v2647
      %2684 = vst [vmem:[#allocation2 + $0x68] sm:$0xff] %v2648
      %2685 = vst [vmem:[#allocation2 + $0x70] sm:$0xff] %v2649
      %2686 = vst [vmem:[#allocation2 + $0x78] sm:$0xff] %v2650
      %2687 = vst [vmem:[#allocation2 + $0x80] sm:$0xff] %v2651
      %2688 = vst [vmem:[#allocation2 + $0x88] sm:$0xff] %v2652
      %2689 = vst [vmem:[#allocation2 + $0x90] sm:$0xff] %v2653
      %2690 = vst [vmem:[#allocation2 + $0x98] sm:$0xff] %v2654
      %2691 = vst [vmem:[#allocation2 + $0xa0] sm:$0xff] %v2655
      %2692 = vst [vmem:[#allocation2 + $0xa8] sm:$0xff] %v2656
      %2693 = vst [vmem:[#allocation2 + $0xb0] sm:$0xff] %v2657
      %2694 = vst [vmem:[#allocation2 + $0xb8] sm:$0xff] %v2658
      %2695 = vst [vmem:[#allocation2 + $0xc0] sm:$0xff] %v2659
      %2696 = vst [vmem:[#allocation2 + $0xc8] sm:$0xff] %v2660
      %2697 = vst [vmem:[#allocation2 + $0xd0] sm:$0xff] %v2661
      %2698 = vst [vmem:[#allocation2 + $0xd8] sm:$0xff] %v2662
      %2699 = vst [vmem:[#allocation2 + $0xe0] sm:$0xff] %v2663
      %2700 = vst [vmem:[#allocation2 + $0xe8] sm:$0xff] %v2664
      %2701 = vst [vmem:[#allocation2 + $0xf0] sm:$0xff] %v2665
      %2702 = vst [vmem:[#allocation2 + $0xf8] sm:$0xff] %v2666
      %2703 = vst [vmem:[#allocation2 + $0x100] sm:$0xff] %v2667
      %2704 = vst [vmem:[#allocation2 + $0x108] sm:$0xff] %v2668
      %2705 = vst [vmem:[#allocation2 + $0x110] sm:$0xff] %v2669
      %2706 = vst [vmem:[#allocation2 + $0x118] sm:$0xff] %v2670
      %v2707 = vld [vmem:[%s280 + $0x8] sm:$0xc]
      %v2708 = vld [vmem:[%s280 + $0xc] sm:$0xf]
      %v2709 = vld [vmem:[%s280 + $0x10] sm:$0xf]
      %v2710 = vld [vmem:[%s280 + $0x14] sm:$0xf]
      %v2711 = vld [vmem:[%s280 + $0x18] sm:$0xf]
      %v2712 = vld [vmem:[%s280 + $0x1c] sm:$0xf]
      %v2713 = vld [vmem:[%s280 + $0x20] sm:$0xf]
      %v2714 = vld [vmem:[%s280 + $0x24] sm:$0xf]
      %v2715 = vld [vmem:[%s280 + $0x28] sm:$0xf]
      %v2716 = vld [vmem:[%s280 + $0x2c] sm:$0xf]
      %v2717 = vld [vmem:[%s280 + $0x30] sm:$0xf]
      %v2718 = vld [vmem:[%s280 + $0x34] sm:$0xf]
      %v2719 = vld [vmem:[%s280 + $0x38] sm:$0xf]
      %v2720 = vld [vmem:[%s280 + $0x3c] sm:$0xf]
      %v2721 = vld [vmem:[%s280 + $0x40] sm:$0xf]
      %v2722 = vld [vmem:[%s280 + $0x44] sm:$0xf]
      %v2723 = vld [vmem:[%s280 + $0x48] sm:$0xf]
      %v2724 = vld [vmem:[%s280 + $0x4c] sm:$0xf]
      %v2725 = vld [vmem:[%s280 + $0x50] sm:$0xf]
      %v2726 = vld [vmem:[%s280 + $0x54] sm:$0xf]
      %v2727 = vld [vmem:[%s280 + $0x58] sm:$0xf]
      %v2728 = vld [vmem:[%s280 + $0x5c] sm:$0xf]
      %v2729 = vld [vmem:[%s280 + $0x60] sm:$0xf]
      %v2730 = vld [vmem:[%s280 + $0x64] sm:$0xf]
      %v2731 = vld [vmem:[%s280 + $0x68] sm:$0xf]
      %v2732 = vld [vmem:[%s280 + $0x6c] sm:$0xf]
      %v2733 = vld [vmem:[%s280 + $0x70] sm:$0xf]
      %v2734 = vld [vmem:[%s280 + $0x74] sm:$0xf]
      %v2735 = vld [vmem:[%s280 + $0x78] sm:$0xf]
      %v2736 = vld [vmem:[%s280 + $0x7c] sm:$0xf]
      %v2737 = vld [vmem:[%s280 + $0x80] sm:$0xf]
      %v2738 = vld [vmem:[%s280 + $0x84] sm:$0xf]
      %v2739 = vld [vmem:[%s280 + $0x88] sm:$0xf]
      %v2740 = vld [vmem:[%s280 + $0x8c] sm:$0xf]
      %v2741 = vld [vmem:[%s280 + $0x90] sm:$0xf]
      %v2742 = vld [vmem:[%s280 + $0x94] sm:$0xf]
      %v2743 = vld [vmem:[%s280 + $0x98] sm:$0x3]
      %v2744 = vld [vmem:[#allocation2] sm:$0xff]
      %v2745 = vld [vmem:[#allocation2 + $0x8] sm:$0xff]
      %v2746 = vld [vmem:[#allocation2 + $0x10] sm:$0xff]
      %v2747 = vld [vmem:[#allocation2 + $0x18] sm:$0xff]
      %v2748 = vld [vmem:[#allocation2 + $0x20] sm:$0xff]
      %v2749 = vld [vmem:[#allocation2 + $0x28] sm:$0xff]
      %v2750 = vld [vmem:[#allocation2 + $0x30] sm:$0xff]
      %v2751 = vld [vmem:[#allocation2 + $0x38] sm:$0xff]
      %v2752 = vld [vmem:[#allocation2 + $0x40] sm:$0xff]
      %v2753 = vld [vmem:[#allocation2 + $0x48] sm:$0xff]
      %v2754 = vld [vmem:[#allocation2 + $0x50] sm:$0xff]
      %v2755 = vld [vmem:[#allocation2 + $0x58] sm:$0xff]
      %v2756 = vld [vmem:[#allocation2 + $0x60] sm:$0xff]
      %v2757 = vld [vmem:[#allocation2 + $0x68] sm:$0xff]
      %v2758 = vld [vmem:[#allocation2 + $0x70] sm:$0xff]
      %v2759 = vld [vmem:[#allocation2 + $0x78] sm:$0xff]
      %v2760 = vld [vmem:[#allocation2 + $0x80] sm:$0xff]
      %v2761 = vld [vmem:[#allocation2 + $0x88] sm:$0xff]
      %v2762 = vld [vmem:[#allocation2 + $0x90] sm:$0xff]
      %v2763 = vld [vmem:[#allocation2 + $0x98] sm:$0xff]
      %v2764 = vld [vmem:[#allocation2 + $0xa0] sm:$0xff]
      %v2765 = vld [vmem:[#allocation2 + $0xa8] sm:$0xff]
      %v2766 = vld [vmem:[#allocation2 + $0xb0] sm:$0xff]
      %v2767 = vld [vmem:[#allocation2 + $0xb8] sm:$0xff]
      %v2768 = vld [vmem:[#allocation2 + $0xc0] sm:$0xff]
      %v2769 = vld [vmem:[#allocation2 + $0xc8] sm:$0xff]
      %v2770 = vld [vmem:[#allocation2 + $0xd0] sm:$0xff]
      %v2771 = vld [vmem:[#allocation2 + $0xd8] sm:$0xff]
      %v2772 = vld [vmem:[#allocation2 + $0xe0] sm:$0xff]
      %v2773 = vld [vmem:[#allocation2 + $0xe8] sm:$0xff]
      %v2774 = vld [vmem:[#allocation2 + $0xf0] sm:$0xff]
      %v2775 = vld [vmem:[#allocation2 + $0xf8] sm:$0xff]
      %v2776 = vld [vmem:[#allocation2 + $0x100] sm:$0xff]
      %v2777 = vld [vmem:[#allocation2 + $0x108] sm:$0xff]
      %v2778 = vld [vmem:[#allocation2 + $0x110] sm:$0xff]
      %v2779 = vld [vmem:[#allocation2 + $0x118] sm:$0xff]
      %s2780 = scalar_lea.vmem %s1, 10
      %v2781 = vld [vmem:[%s2780] sm:$0x3]
      %v2819 = vunpack.c.l.b16 %v2707
      %v2820 = vunpack.c.l.b16 %v2708
      %v2821 = vunpack.c.l.b16 %v2709
      %v2822 = vunpack.c.l.b16 %v2710
      %v2823 = vunpack.c.l.b16 %v2711
      %v2824 = vunpack.c.l.b16 %v2712
      %v2825 = vunpack.c.l.b16 %v2713
      %v2826 = vunpack.c.l.b16 %v2714
      %v2827 = vunpack.c.l.b16 %v2715
      %v2828 = vunpack.c.l.b16 %v2716
      %v2829 = vunpack.c.l.b16 %v2717
      %v2830 = vunpack.c.l.b16 %v2718
      %v2831 = vunpack.c.l.b16 %v2719
      %v2832 = vunpack.c.l.b16 %v2720
      %v2833 = vunpack.c.l.b16 %v2721
      %v2834 = vunpack.c.l.b16 %v2722
      %v2835 = vunpack.c.l.b16 %v2723
      %v2836 = vunpack.c.l.b16 %v2724
      %v2837 = vunpack.c.l.b16 %v2725
      %v2838 = vunpack.c.l.b16 %v2726
      %v2839 = vunpack.c.l.b16 %v2727
      %v2840 = vunpack.c.l.b16 %v2728
      %v2841 = vunpack.c.l.b16 %v2729
      %v2842 = vunpack.c.l.b16 %v2730
      %v2843 = vunpack.c.l.b16 %v2731
      %v2844 = vunpack.c.l.b16 %v2732
      %v2845 = vunpack.c.l.b16 %v2733
      %v2846 = vunpack.c.l.b16 %v2734
      %v2847 = vunpack.c.l.b16 %v2735
      %v2848 = vunpack.c.l.b16 %v2736
      %v2849 = vunpack.c.l.b16 %v2737
      %v2850 = vunpack.c.l.b16 %v2738
      %v2851 = vunpack.c.l.b16 %v2739
      %v2852 = vunpack.c.l.b16 %v2740
      %v2853 = vunpack.c.l.b16 %v2741
      %v2854 = vunpack.c.l.b16 %v2742
      %v2855 = vunpack.c.l.b16 %v2743
      %v2856 = vpack.c.b16 %v2820, %v2819
      %v2857 = vpack.c.b16 %v2822, %v2821
      %v2858 = vpack.c.b16 %v2824, %v2823
      %v2859 = vpack.c.b16 %v2826, %v2825
      %v2860 = vpack.c.b16 %v2828, %v2827
      %v2861 = vpack.c.b16 %v2830, %v2829
      %v2862 = vpack.c.b16 %v2832, %v2831
      %v2863 = vpack.c.b16 %v2834, %v2833
      %v2864 = vpack.c.b16 %v2836, %v2835
      %v2865 = vpack.c.b16 %v2838, %v2837
      %v2866 = vpack.c.b16 %v2840, %v2839
      %v2867 = vpack.c.b16 %v2842, %v2841
      %v2868 = vpack.c.b16 %v2844, %v2843
      %v2869 = vpack.c.b16 %v2846, %v2845
      %v2870 = vpack.c.b16 %v2848, %v2847
      %v2871 = vpack.c.b16 %v2850, %v2849
      %v2872 = vpack.c.b16 %v2852, %v2851
      %v2873 = vpack.c.b16 %v2854, %v2853
      %v2874 = vpack.c.b16 %v2855, %v2855
      %vm2875 = vcmask 1045504
      %v2876 = vrot.slane %v2856, 2
      %v2877 = vrot.slane %v2857, 2
      %v2878 = vsel %vm2875, %v2876, %v2877
      %v2879 = vrot.slane %v2858, 2
      %v2880 = vsel %vm2875, %v2877, %v2879
      %v2881 = vrot.slane %v2859, 2
      %v2882 = vsel %vm2875, %v2879, %v2881
      %v2883 = vrot.slane %v2860, 2
      %v2884 = vsel %vm2875, %v2881, %v2883
      %v2885 = vrot.slane %v2861, 2
      %v2886 = vsel %vm2875, %v2883, %v2885
      %v2887 = vrot.slane %v2862, 2
      %v2888 = vsel %vm2875, %v2885, %v2887
      %v2889 = vrot.slane %v2863, 2
      %v2890 = vsel %vm2875, %v2887, %v2889
      %v2891 = vrot.slane %v2864, 2
      %v2892 = vsel %vm2875, %v2889, %v2891
      %v2893 = vrot.slane %v2865, 2
      %v2894 = vsel %vm2875, %v2891, %v2893
      %v2895 = vrot.slane %v2866, 2
      %v2896 = vsel %vm2875, %v2893, %v2895
      %v2897 = vrot.slane %v2867, 2
      %v2898 = vsel %vm2875, %v2895, %v2897
      %v2899 = vrot.slane %v2868, 2
      %v2900 = vsel %vm2875, %v2897, %v2899
      %v2901 = vrot.slane %v2869, 2
      %v2902 = vsel %vm2875, %v2899, %v2901
      %v2903 = vrot.slane %v2870, 2
      %v2904 = vsel %vm2875, %v2901, %v2903
      %v2905 = vrot.slane %v2871, 2
      %v2906 = vsel %vm2875, %v2903, %v2905
      %v2907 = vrot.slane %v2872, 2
      %v2908 = vsel %vm2875, %v2905, %v2907
      %v2909 = vrot.slane %v2873, 2
      %v2910 = vsel %vm2875, %v2907, %v2909
      %v2911 = vrot.slane %v2874, 2
      %v2912 = vsel %vm2875, %v2909, %v2911
      %v2914 = vsel %vm495, %v2878, 0
      %v2917 = vsel %vm495, %v2880, 0
      %v2920 = vsel %vm495, %v2882, 0
      %v2923 = vsel %vm495, %v2884, 0
      %v2926 = vsel %vm495, %v2886, 0
      %v2929 = vsel %vm495, %v2888, 0
      %v2932 = vsel %vm495, %v2890, 0
      %v2935 = vsel %vm495, %v2892, 0
      %v2938 = vsel %vm495, %v2894, 0
      %v2941 = vsel %vm495, %v2896, 0
      %v2944 = vsel %vm495, %v2898, 0
      %v2947 = vsel %vm495, %v2900, 0
      %v2950 = vsel %vm495, %v2902, 0
      %v2953 = vsel %vm495, %v2904, 0
      %v2956 = vsel %vm495, %v2906, 0
      %v2959 = vsel %vm495, %v2908, 0
      %v2962 = vsel %vm495, %v2910, 0
      %v2965 = vsel %vm495, %v2912, 0
      %v2968 = vand.u32 %v2781, %v553
      %2970 = vmatpush.bf16.msra.mxu0 0
      %2971 = vmatpush.bf16.msra.mxu0 0
      %2972 = vmatpush.bf16.msra.mxu0 0
      %2973 = vmatpush.bf16.msra.mxu0 0
      %2974 = vmatpush.bf16.msra.mxu0 0
      %2975 = vmatpush.bf16.msra.mxu0 0
      %2976 = vmatpush.bf16.msra.mxu0 0
      %2977 = vmatpush.bf16.msra.mxu0 %v2968
      %2978 = vmatmul.bf16.gmra.mxu0 %v2914
      %v2979 = vpop.f32.mrf.mxu0
      %v2980 = vadd.f32 0.0, %v2979
      %v2981 = vpop.f32.mrf.mxu0
      %v2982 = vadd.f32 0.0, %v2981
      %2983 = vmatmul.bf16.gmra.mxu0 %v2917
      %v2984 = vpop.f32.mrf.mxu0
      %v2985 = vadd.f32 0.0, %v2984
      %v2986 = vpop.f32.mrf.mxu0
      %v2987 = vadd.f32 0.0, %v2986
      %2988 = vmatmul.bf16.gmra.mxu0 %v2920
      %v2989 = vpop.f32.mrf.mxu0
      %v2990 = vadd.f32 0.0, %v2989
      %v2991 = vpop.f32.mrf.mxu0
      %v2992 = vadd.f32 0.0, %v2991
      %2993 = vmatmul.bf16.gmra.mxu0 %v2923
      %v2994 = vpop.f32.mrf.mxu0
      %v2995 = vadd.f32 0.0, %v2994
      %v2996 = vpop.f32.mrf.mxu0
      %v2997 = vadd.f32 0.0, %v2996
      %2998 = vmatmul.bf16.gmra.mxu0 %v2926
      %v2999 = vpop.f32.mrf.mxu0
      %v3000 = vadd.f32 0.0, %v2999
      %v3001 = vpop.f32.mrf.mxu0
      %v3002 = vadd.f32 0.0, %v3001
      %3003 = vmatmul.bf16.gmra.mxu0 %v2929
      %v3004 = vpop.f32.mrf.mxu0
      %v3005 = vadd.f32 0.0, %v3004
      %v3006 = vpop.f32.mrf.mxu0
      %v3007 = vadd.f32 0.0, %v3006
      %3008 = vmatmul.bf16.gmra.mxu0 %v2932
      %v3009 = vpop.f32.mrf.mxu0
      %v3010 = vadd.f32 0.0, %v3009
      %v3011 = vpop.f32.mrf.mxu0
      %v3012 = vadd.f32 0.0, %v3011
      %3013 = vmatmul.bf16.gmra.mxu0 %v2935
      %v3014 = vpop.f32.mrf.mxu0
      %v3015 = vadd.f32 0.0, %v3014
      %v3016 = vpop.f32.mrf.mxu0
      %v3017 = vadd.f32 0.0, %v3016
      %3018 = vmatmul.bf16.gmra.mxu0 %v2938
      %v3019 = vpop.f32.mrf.mxu0
      %v3020 = vadd.f32 0.0, %v3019
      %v3021 = vpop.f32.mrf.mxu0
      %v3022 = vadd.f32 0.0, %v3021
      %3023 = vmatmul.bf16.gmra.mxu0 %v2941
      %v3024 = vpop.f32.mrf.mxu0
      %v3025 = vadd.f32 0.0, %v3024
      %v3026 = vpop.f32.mrf.mxu0
      %v3027 = vadd.f32 0.0, %v3026
      %3028 = vmatmul.bf16.gmra.mxu0 %v2944
      %v3029 = vpop.f32.mrf.mxu0
      %v3030 = vadd.f32 0.0, %v3029
      %v3031 = vpop.f32.mrf.mxu0
      %v3032 = vadd.f32 0.0, %v3031
      %3033 = vmatmul.bf16.gmra.mxu0 %v2947
      %v3034 = vpop.f32.mrf.mxu0
      %v3035 = vadd.f32 0.0, %v3034
      %v3036 = vpop.f32.mrf.mxu0
      %v3037 = vadd.f32 0.0, %v3036
      %3038 = vmatmul.bf16.gmra.mxu0 %v2950
      %v3039 = vpop.f32.mrf.mxu0
      %v3040 = vadd.f32 0.0, %v3039
      %v3041 = vpop.f32.mrf.mxu0
      %v3042 = vadd.f32 0.0, %v3041
      %3043 = vmatmul.bf16.gmra.mxu0 %v2953
      %v3044 = vpop.f32.mrf.mxu0
      %v3045 = vadd.f32 0.0, %v3044
      %v3046 = vpop.f32.mrf.mxu0
      %v3047 = vadd.f32 0.0, %v3046
      %3048 = vmatmul.bf16.gmra.mxu0 %v2956
      %v3049 = vpop.f32.mrf.mxu0
      %v3050 = vadd.f32 0.0, %v3049
      %v3051 = vpop.f32.mrf.mxu0
      %v3052 = vadd.f32 0.0, %v3051
      %3053 = vmatmul.bf16.gmra.mxu0 %v2959
      %v3054 = vpop.f32.mrf.mxu0
      %v3055 = vadd.f32 0.0, %v3054
      %v3056 = vpop.f32.mrf.mxu0
      %v3057 = vadd.f32 0.0, %v3056
      %3058 = vmatmul.bf16.gmra.mxu0 %v2962
      %v3059 = vpop.f32.mrf.mxu0
      %v3060 = vadd.f32 0.0, %v3059
      %v3061 = vpop.f32.mrf.mxu0
      %v3062 = vadd.f32 0.0, %v3061
      %3063 = vmatmul.bf16.gmra.mxu0 %v2965
      %v3064 = vpop.f32.mrf.mxu0
      %v3065 = vadd.f32 0.0, %v3064
      %v3066 = vpop.f32.mrf.mxu0
      %v3067 = vadd.f32 0.0, %v3066
      %3068 = vdwg.mxu0
      %v3069 = vadd.f32 %v2744, %v2980
      %v3070 = vadd.f32 %v2745, %v2982
      %v3071 = vadd.f32 %v2746, %v2985
      %v3072 = vadd.f32 %v2747, %v2987
      %v3073 = vadd.f32 %v2748, %v2990
      %v3074 = vadd.f32 %v2749, %v2992
      %v3075 = vadd.f32 %v2750, %v2995
      %v3076 = vadd.f32 %v2751, %v2997
      %v3077 = vadd.f32 %v2752, %v3000
      %v3078 = vadd.f32 %v2753, %v3002
      %v3079 = vadd.f32 %v2754, %v3005
      %v3080 = vadd.f32 %v2755, %v3007
      %v3081 = vadd.f32 %v2756, %v3010
      %v3082 = vadd.f32 %v2757, %v3012
      %v3083 = vadd.f32 %v2758, %v3015
      %v3084 = vadd.f32 %v2759, %v3017
      %v3085 = vadd.f32 %v2760, %v3020
      %v3086 = vadd.f32 %v2761, %v3022
      %v3087 = vadd.f32 %v2762, %v3025
      %v3088 = vadd.f32 %v2763, %v3027
      %v3089 = vadd.f32 %v2764, %v3030
      %v3090 = vadd.f32 %v2765, %v3032
      %v3091 = vadd.f32 %v2766, %v3035
      %v3092 = vadd.f32 %v2767, %v3037
      %v3093 = vadd.f32 %v2768, %v3040
      %v3094 = vadd.f32 %v2769, %v3042
      %v3095 = vadd.f32 %v2770, %v3045
      %v3096 = vadd.f32 %v2771, %v3047
      %v3097 = vadd.f32 %v2772, %v3050
      %v3098 = vadd.f32 %v2773, %v3052
      %v3099 = vadd.f32 %v2774, %v3055
      %v3100 = vadd.f32 %v2775, %v3057
      %v3101 = vadd.f32 %v2776, %v3060
      %v3102 = vadd.f32 %v2777, %v3062
      %v3103 = vadd.f32 %v2778, %v3065
      %v3104 = vadd.f32 %v2779, %v3067
      %3105 = vst [vmem:[#allocation2] sm:$0xff] %v3069
      %3106 = vst [vmem:[#allocation2 + $0x8] sm:$0xff] %v3070
      %3107 = vst [vmem:[#allocation2 + $0x10] sm:$0xff] %v3071
      %3108 = vst [vmem:[#allocation2 + $0x18] sm:$0xff] %v3072
      %3109 = vst [vmem:[#allocation2 + $0x20] sm:$0xff] %v3073
      %3110 = vst [vmem:[#allocation2 + $0x28] sm:$0xff] %v3074
      %3111 = vst [vmem:[#allocation2 + $0x30] sm:$0xff] %v3075
      %3112 = vst [vmem:[#allocation2 + $0x38] sm:$0xff] %v3076
      %3113 = vst [vmem:[#allocation2 + $0x40] sm:$0xff] %v3077
      %3114 = vst [vmem:[#allocation2 + $0x48] sm:$0xff] %v3078
      %3115 = vst [vmem:[#allocation2 + $0x50] sm:$0xff] %v3079
      %3116 = vst [vmem:[#allocation2 + $0x58] sm:$0xff] %v3080
      %3117 = vst [vmem:[#allocation2 + $0x60] sm:$0xff] %v3081
      %3118 = vst [vmem:[#allocation2 + $0x68] sm:$0xff] %v3082
      %3119 = vst [vmem:[#allocation2 + $0x70] sm:$0xff] %v3083
      %3120 = vst [vmem:[#allocation2 + $0x78] sm:$0xff] %v3084
      %3121 = vst [vmem:[#allocation2 + $0x80] sm:$0xff] %v3085
      %3122 = vst [vmem:[#allocation2 + $0x88] sm:$0xff] %v3086
      %3123 = vst [vmem:[#allocation2 + $0x90] sm:$0xff] %v3087
      %3124 = vst [vmem:[#allocation2 + $0x98] sm:$0xff] %v3088
      %3125 = vst [vmem:[#allocation2 + $0xa0] sm:$0xff] %v3089
      %3126 = vst [vmem:[#allocation2 + $0xa8] sm:$0xff] %v3090
      %3127 = vst [vmem:[#allocation2 + $0xb0] sm:$0xff] %v3091
      %3128 = vst [vmem:[#allocation2 + $0xb8] sm:$0xff] %v3092
      %3129 = vst [vmem:[#allocation2 + $0xc0] sm:$0xff] %v3093
      %3130 = vst [vmem:[#allocation2 + $0xc8] sm:$0xff] %v3094
      %3131 = vst [vmem:[#allocation2 + $0xd0] sm:$0xff] %v3095
      %3132 = vst [vmem:[#allocation2 + $0xd8] sm:$0xff] %v3096
      %3133 = vst [vmem:[#allocation2 + $0xe0] sm:$0xff] %v3097
      %3134 = vst [vmem:[#allocation2 + $0xe8] sm:$0xff] %v3098
      %3135 = vst [vmem:[#allocation2 + $0xf0] sm:$0xff] %v3099
      %3136 = vst [vmem:[#allocation2 + $0xf8] sm:$0xff] %v3100
      %3137 = vst [vmem:[#allocation2 + $0x100] sm:$0xff] %v3101
      %3138 = vst [vmem:[#allocation2 + $0x108] sm:$0xff] %v3102
      %3139 = vst [vmem:[#allocation2 + $0x110] sm:$0xff] %v3103
      %3140 = vst [vmem:[#allocation2 + $0x118] sm:$0xff] %v3104
      %v3141 = vld [vmem:[%s280 + $0x10] sm:$0xc]
      %v3142 = vld [vmem:[%s280 + $0x14] sm:$0xf]
      %v3143 = vld [vmem:[%s280 + $0x18] sm:$0xf]
      %v3144 = vld [vmem:[%s280 + $0x1c] sm:$0xf]
      %v3145 = vld [vmem:[%s280 + $0x20] sm:$0xf]
      %v3146 = vld [vmem:[%s280 + $0x24] sm:$0xf]
      %v3147 = vld [vmem:[%s280 + $0x28] sm:$0xf]
      %v3148 = vld [vmem:[%s280 + $0x2c] sm:$0xf]
      %v3149 = vld [vmem:[%s280 + $0x30] sm:$0xf]
      %v3150 = vld [vmem:[%s280 + $0x34] sm:$0xf]
      %v3151 = vld [vmem:[%s280 + $0x38] sm:$0xf]
      %v3152 = vld [vmem:[%s280 + $0x3c] sm:$0xf]
      %v3153 = vld [vmem:[%s280 + $0x40] sm:$0xf]
      %v3154 = vld [vmem:[%s280 + $0x44] sm:$0xf]
      %v3155 = vld [vmem:[%s280 + $0x48] sm:$0xf]
      %v3156 = vld [vmem:[%s280 + $0x4c] sm:$0xf]
      %v3157 = vld [vmem:[%s280 + $0x50] sm:$0xf]
      %v3158 = vld [vmem:[%s280 + $0x54] sm:$0xf]
      %v3159 = vld [vmem:[%s280 + $0x58] sm:$0xf]
      %v3160 = vld [vmem:[%s280 + $0x5c] sm:$0xf]
      %v3161 = vld [vmem:[%s280 + $0x60] sm:$0xf]
      %v3162 = vld [vmem:[%s280 + $0x64] sm:$0xf]
      %v3163 = vld [vmem:[%s280 + $0x68] sm:$0xf]
      %v3164 = vld [vmem:[%s280 + $0x6c] sm:$0xf]
      %v3165 = vld [vmem:[%s280 + $0x70] sm:$0xf]
      %v3166 = vld [vmem:[%s280 + $0x74] sm:$0xf]
      %v3167 = vld [vmem:[%s280 + $0x78] sm:$0xf]
      %v3168 = vld [vmem:[%s280 + $0x7c] sm:$0xf]
      %v3169 = vld [vmem:[%s280 + $0x80] sm:$0xf]
      %v3170 = vld [vmem:[%s280 + $0x84] sm:$0xf]
      %v3171 = vld [vmem:[%s280 + $0x88] sm:$0xf]
      %v3172 = vld [vmem:[%s280 + $0x8c] sm:$0xf]
      %v3173 = vld [vmem:[%s280 + $0x90] sm:$0xf]
      %v3174 = vld [vmem:[%s280 + $0x94] sm:$0xf]
      %v3175 = vld [vmem:[%s280 + $0x98] sm:$0xf]
      %v3176 = vld [vmem:[%s280 + $0x9c] sm:$0xf]
      %v3177 = vld [vmem:[%s280 + $0xa0] sm:$0x3]
      %v3178 = vld [vmem:[#allocation2] sm:$0xff]
      %v3179 = vld [vmem:[#allocation2 + $0x8] sm:$0xff]
      %v3180 = vld [vmem:[#allocation2 + $0x10] sm:$0xff]
      %v3181 = vld [vmem:[#allocation2 + $0x18] sm:$0xff]
      %v3182 = vld [vmem:[#allocation2 + $0x20] sm:$0xff]
      %v3183 = vld [vmem:[#allocation2 + $0x28] sm:$0xff]
      %v3184 = vld [vmem:[#allocation2 + $0x30] sm:$0xff]
      %v3185 = vld [vmem:[#allocation2 + $0x38] sm:$0xff]
      %v3186 = vld [vmem:[#allocation2 + $0x40] sm:$0xff]
      %v3187 = vld [vmem:[#allocation2 + $0x48] sm:$0xff]
      %v3188 = vld [vmem:[#allocation2 + $0x50] sm:$0xff]
      %v3189 = vld [vmem:[#allocation2 + $0x58] sm:$0xff]
      %v3190 = vld [vmem:[#allocation2 + $0x60] sm:$0xff]
      %v3191 = vld [vmem:[#allocation2 + $0x68] sm:$0xff]
      %v3192 = vld [vmem:[#allocation2 + $0x70] sm:$0xff]
      %v3193 = vld [vmem:[#allocation2 + $0x78] sm:$0xff]
      %v3194 = vld [vmem:[#allocation2 + $0x80] sm:$0xff]
      %v3195 = vld [vmem:[#allocation2 + $0x88] sm:$0xff]
      %v3196 = vld [vmem:[#allocation2 + $0x90] sm:$0xff]
      %v3197 = vld [vmem:[#allocation2 + $0x98] sm:$0xff]
      %v3198 = vld [vmem:[#allocation2 + $0xa0] sm:$0xff]
      %v3199 = vld [vmem:[#allocation2 + $0xa8] sm:$0xff]
      %v3200 = vld [vmem:[#allocation2 + $0xb0] sm:$0xff]
      %v3201 = vld [vmem:[#allocation2 + $0xb8] sm:$0xff]
      %v3202 = vld [vmem:[#allocation2 + $0xc0] sm:$0xff]
      %v3203 = vld [vmem:[#allocation2 + $0xc8] sm:$0xff]
      %v3204 = vld [vmem:[#allocation2 + $0xd0] sm:$0xff]
      %v3205 = vld [vmem:[#allocation2 + $0xd8] sm:$0xff]
      %v3206 = vld [vmem:[#allocation2 + $0xe0] sm:$0xff]
      %v3207 = vld [vmem:[#allocation2 + $0xe8] sm:$0xff]
      %v3208 = vld [vmem:[#allocation2 + $0xf0] sm:$0xff]
      %v3209 = vld [vmem:[#allocation2 + $0xf8] sm:$0xff]
      %v3210 = vld [vmem:[#allocation2 + $0x100] sm:$0xff]
      %v3211 = vld [vmem:[#allocation2 + $0x108] sm:$0xff]
      %v3212 = vld [vmem:[#allocation2 + $0x110] sm:$0xff]
      %v3213 = vld [vmem:[#allocation2 + $0x118] sm:$0xff]
      %s3214 = scalar_lea.vmem %s1, 12
      %v3215 = vld [vmem:[%s3214] sm:$0x3]
      %v3253 = vunpack.c.l.b16 %v3141
      %v3254 = vunpack.c.l.b16 %v3142
      %v3255 = vunpack.c.l.b16 %v3143
      %v3256 = vunpack.c.l.b16 %v3144
      %v3257 = vunpack.c.l.b16 %v3145
      %v3258 = vunpack.c.l.b16 %v3146
      %v3259 = vunpack.c.l.b16 %v3147
      %v3260 = vunpack.c.l.b16 %v3148
      %v3261 = vunpack.c.l.b16 %v3149
      %v3262 = vunpack.c.l.b16 %v3150
      %v3263 = vunpack.c.l.b16 %v3151
      %v3264 = vunpack.c.l.b16 %v3152
      %v3265 = vunpack.c.l.b16 %v3153
      %v3266 = vunpack.c.l.b16 %v3154
      %v3267 = vunpack.c.l.b16 %v3155
      %v3268 = vunpack.c.l.b16 %v3156
      %v3269 = vunpack.c.l.b16 %v3157
      %v3270 = vunpack.c.l.b16 %v3158
      %v3271 = vunpack.c.l.b16 %v3159
      %v3272 = vunpack.c.l.b16 %v3160
      %v3273 = vunpack.c.l.b16 %v3161
      %v3274 = vunpack.c.l.b16 %v3162
      %v3275 = vunpack.c.l.b16 %v3163
      %v3276 = vunpack.c.l.b16 %v3164
      %v3277 = vunpack.c.l.b16 %v3165
      %v3278 = vunpack.c.l.b16 %v3166
      %v3279 = vunpack.c.l.b16 %v3167
      %v3280 = vunpack.c.l.b16 %v3168
      %v3281 = vunpack.c.l.b16 %v3169
      %v3282 = vunpack.c.l.b16 %v3170
      %v3283 = vunpack.c.l.b16 %v3171
      %v3284 = vunpack.c.l.b16 %v3172
      %v3285 = vunpack.c.l.b16 %v3173
      %v3286 = vunpack.c.l.b16 %v3174
      %v3287 = vunpack.c.l.b16 %v3175
      %v3288 = vunpack.c.l.b16 %v3176
      %v3289 = vunpack.c.l.b16 %v3177
      %v3290 = vpack.c.b16 %v3254, %v3253
      %v3291 = vpack.c.b16 %v3256, %v3255
      %v3292 = vpack.c.b16 %v3258, %v3257
      %v3293 = vpack.c.b16 %v3260, %v3259
      %v3294 = vpack.c.b16 %v3262, %v3261
      %v3295 = vpack.c.b16 %v3264, %v3263
      %v3296 = vpack.c.b16 %v3266, %v3265
      %v3297 = vpack.c.b16 %v3268, %v3267
      %v3298 = vpack.c.b16 %v3270, %v3269
      %v3299 = vpack.c.b16 %v3272, %v3271
      %v3300 = vpack.c.b16 %v3274, %v3273
      %v3301 = vpack.c.b16 %v3276, %v3275
      %v3302 = vpack.c.b16 %v3278, %v3277
      %v3303 = vpack.c.b16 %v3280, %v3279
      %v3304 = vpack.c.b16 %v3282, %v3281
      %v3305 = vpack.c.b16 %v3284, %v3283
      %v3306 = vpack.c.b16 %v3286, %v3285
      %v3307 = vpack.c.b16 %v3288, %v3287
      %v3308 = vpack.c.b16 %v3289, %v3289
      %v3309 = vrot.slane %v3290, 2
      %v3310 = vrot.slane %v3291, 2
      %v3311 = vsel %vm2875, %v3309, %v3310
      %v3312 = vrot.slane %v3292, 2
      %v3313 = vsel %vm2875, %v3310, %v3312
      %v3314 = vrot.slane %v3293, 2
      %v3315 = vsel %vm2875, %v3312, %v3314
      %v3316 = vrot.slane %v3294, 2
      %v3317 = vsel %vm2875, %v3314, %v3316
      %v3318 = vrot.slane %v3295, 2
      %v3319 = vsel %vm2875, %v3316, %v3318
      %v3320 = vrot.slane %v3296, 2
      %v3321 = vsel %vm2875, %v3318, %v3320
      %v3322 = vrot.slane %v3297, 2
      %v3323 = vsel %vm2875, %v3320, %v3322
      %v3324 = vrot.slane %v3298, 2
      %v3325 = vsel %vm2875, %v3322, %v3324
      %v3326 = vrot.slane %v3299, 2
      %v3327 = vsel %vm2875, %v3324, %v3326
      %v3328 = vrot.slane %v3300, 2
      %v3329 = vsel %vm2875, %v3326, %v3328
      %v3330 = vrot.slane %v3301, 2
      %v3331 = vsel %vm2875, %v3328, %v3330
      %v3332 = vrot.slane %v3302, 2
      %v3333 = vsel %vm2875, %v3330, %v3332
      %v3334 = vrot.slane %v3303, 2
      %v3335 = vsel %vm2875, %v3332, %v3334
      %v3336 = vrot.slane %v3304, 2
      %v3337 = vsel %vm2875, %v3334, %v3336
      %v3338 = vrot.slane %v3305, 2
      %v3339 = vsel %vm2875, %v3336, %v3338
      %v3340 = vrot.slane %v3306, 2
      %v3341 = vsel %vm2875, %v3338, %v3340
      %v3342 = vrot.slane %v3307, 2
      %v3343 = vsel %vm2875, %v3340, %v3342
      %v3344 = vrot.slane %v3308, 2
      %v3345 = vsel %vm2875, %v3342, %v3344
      %v3347 = vsel %vm495, %v3311, 0
      %v3350 = vsel %vm495, %v3313, 0
      %v3353 = vsel %vm495, %v3315, 0
      %v3356 = vsel %vm495, %v3317, 0
      %v3359 = vsel %vm495, %v3319, 0
      %v3362 = vsel %vm495, %v3321, 0
      %v3365 = vsel %vm495, %v3323, 0
      %v3368 = vsel %vm495, %v3325, 0
      %v3371 = vsel %vm495, %v3327, 0
      %v3374 = vsel %vm495, %v3329, 0
      %v3377 = vsel %vm495, %v3331, 0
      %v3380 = vsel %vm495, %v3333, 0
      %v3383 = vsel %vm495, %v3335, 0
      %v3386 = vsel %vm495, %v3337, 0
      %v3389 = vsel %vm495, %v3339, 0
      %v3392 = vsel %vm495, %v3341, 0
      %v3395 = vsel %vm495, %v3343, 0
      %v3398 = vsel %vm495, %v3345, 0
      %v3401 = vand.u32 %v3215, %v553
      %3403 = vmatpush.bf16.msra.mxu0 0
      %3404 = vmatpush.bf16.msra.mxu0 0
      %3405 = vmatpush.bf16.msra.mxu0 0
      %3406 = vmatpush.bf16.msra.mxu0 0
      %3407 = vmatpush.bf16.msra.mxu0 0
      %3408 = vmatpush.bf16.msra.mxu0 0
      %3409 = vmatpush.bf16.msra.mxu0 0
      %3410 = vmatpush.bf16.msra.mxu0 %v3401
      %3411 = vmatmul.bf16.gmra.mxu0 %v3347
      %v3412 = vpop.f32.mrf.mxu0
      %v3413 = vadd.f32 0.0, %v3412
      %v3414 = vpop.f32.mrf.mxu0
      %v3415 = vadd.f32 0.0, %v3414
      %3416 = vmatmul.bf16.gmra.mxu0 %v3350
      %v3417 = vpop.f32.mrf.mxu0
      %v3418 = vadd.f32 0.0, %v3417
      %v3419 = vpop.f32.mrf.mxu0
      %v3420 = vadd.f32 0.0, %v3419
      %3421 = vmatmul.bf16.gmra.mxu0 %v3353
      %v3422 = vpop.f32.mrf.mxu0
      %v3423 = vadd.f32 0.0, %v3422
      %v3424 = vpop.f32.mrf.mxu0
      %v3425 = vadd.f32 0.0, %v3424
      %3426 = vmatmul.bf16.gmra.mxu0 %v3356
      %v3427 = vpop.f32.mrf.mxu0
      %v3428 = vadd.f32 0.0, %v3427
      %v3429 = vpop.f32.mrf.mxu0
      %v3430 = vadd.f32 0.0, %v3429
      %3431 = vmatmul.bf16.gmra.mxu0 %v3359
      %v3432 = vpop.f32.mrf.mxu0
      %v3433 = vadd.f32 0.0, %v3432
      %v3434 = vpop.f32.mrf.mxu0
      %v3435 = vadd.f32 0.0, %v3434
      %3436 = vmatmul.bf16.gmra.mxu0 %v3362
      %v3437 = vpop.f32.mrf.mxu0
      %v3438 = vadd.f32 0.0, %v3437
      %v3439 = vpop.f32.mrf.mxu0
      %v3440 = vadd.f32 0.0, %v3439
      %3441 = vmatmul.bf16.gmra.mxu0 %v3365
      %v3442 = vpop.f32.mrf.mxu0
      %v3443 = vadd.f32 0.0, %v3442
      %v3444 = vpop.f32.mrf.mxu0
      %v3445 = vadd.f32 0.0, %v3444
      %3446 = vmatmul.bf16.gmra.mxu0 %v3368
      %v3447 = vpop.f32.mrf.mxu0
      %v3448 = vadd.f32 0.0, %v3447
      %v3449 = vpop.f32.mrf.mxu0
      %v3450 = vadd.f32 0.0, %v3449
      %3451 = vmatmul.bf16.gmra.mxu0 %v3371
      %v3452 = vpop.f32.mrf.mxu0
      %v3453 = vadd.f32 0.0, %v3452
      %v3454 = vpop.f32.mrf.mxu0
      %v3455 = vadd.f32 0.0, %v3454
      %3456 = vmatmul.bf16.gmra.mxu0 %v3374
      %v3457 = vpop.f32.mrf.mxu0
      %v3458 = vadd.f32 0.0, %v3457
      %v3459 = vpop.f32.mrf.mxu0
      %v3460 = vadd.f32 0.0, %v3459
      %3461 = vmatmul.bf16.gmra.mxu0 %v3377
      %v3462 = vpop.f32.mrf.mxu0
      %v3463 = vadd.f32 0.0, %v3462
      %v3464 = vpop.f32.mrf.mxu0
      %v3465 = vadd.f32 0.0, %v3464
      %3466 = vmatmul.bf16.gmra.mxu0 %v3380
      %v3467 = vpop.f32.mrf.mxu0
      %v3468 = vadd.f32 0.0, %v3467
      %v3469 = vpop.f32.mrf.mxu0
      %v3470 = vadd.f32 0.0, %v3469
      %3471 = vmatmul.bf16.gmra.mxu0 %v3383
      %v3472 = vpop.f32.mrf.mxu0
      %v3473 = vadd.f32 0.0, %v3472
      %v3474 = vpop.f32.mrf.mxu0
      %v3475 = vadd.f32 0.0, %v3474
      %3476 = vmatmul.bf16.gmra.mxu0 %v3386
      %v3477 = vpop.f32.mrf.mxu0
      %v3478 = vadd.f32 0.0, %v3477
      %v3479 = vpop.f32.mrf.mxu0
      %v3480 = vadd.f32 0.0, %v3479
      %3481 = vmatmul.bf16.gmra.mxu0 %v3389
      %v3482 = vpop.f32.mrf.mxu0
      %v3483 = vadd.f32 0.0, %v3482
      %v3484 = vpop.f32.mrf.mxu0
      %v3485 = vadd.f32 0.0, %v3484
      %3486 = vmatmul.bf16.gmra.mxu0 %v3392
      %v3487 = vpop.f32.mrf.mxu0
      %v3488 = vadd.f32 0.0, %v3487
      %v3489 = vpop.f32.mrf.mxu0
      %v3490 = vadd.f32 0.0, %v3489
      %3491 = vmatmul.bf16.gmra.mxu0 %v3395
      %v3492 = vpop.f32.mrf.mxu0
      %v3493 = vadd.f32 0.0, %v3492
      %v3494 = vpop.f32.mrf.mxu0
      %v3495 = vadd.f32 0.0, %v3494
      %3496 = vmatmul.bf16.gmra.mxu0 %v3398
      %v3497 = vpop.f32.mrf.mxu0
      %v3498 = vadd.f32 0.0, %v3497
      %v3499 = vpop.f32.mrf.mxu0
      %v3500 = vadd.f32 0.0, %v3499
      %3501 = vdwg.mxu0
      %v3502 = vadd.f32 %v3178, %v3413
      %v3503 = vadd.f32 %v3179, %v3415
      %v3504 = vadd.f32 %v3180, %v3418
      %v3505 = vadd.f32 %v3181, %v3420
      %v3506 = vadd.f32 %v3182, %v3423
      %v3507 = vadd.f32 %v3183, %v3425
      %v3508 = vadd.f32 %v3184, %v3428
      %v3509 = vadd.f32 %v3185, %v3430
      %v3510 = vadd.f32 %v3186, %v3433
      %v3511 = vadd.f32 %v3187, %v3435
      %v3512 = vadd.f32 %v3188, %v3438
      %v3513 = vadd.f32 %v3189, %v3440
      %v3514 = vadd.f32 %v3190, %v3443
      %v3515 = vadd.f32 %v3191, %v3445
      %v3516 = vadd.f32 %v3192, %v3448
      %v3517 = vadd.f32 %v3193, %v3450
      %v3518 = vadd.f32 %v3194, %v3453
      %v3519 = vadd.f32 %v3195, %v3455
      %v3520 = vadd.f32 %v3196, %v3458
      %v3521 = vadd.f32 %v3197, %v3460
      %v3522 = vadd.f32 %v3198, %v3463
      %v3523 = vadd.f32 %v3199, %v3465
      %v3524 = vadd.f32 %v3200, %v3468
      %v3525 = vadd.f32 %v3201, %v3470
      %v3526 = vadd.f32 %v3202, %v3473
      %v3527 = vadd.f32 %v3203, %v3475
      %v3528 = vadd.f32 %v3204, %v3478
      %v3529 = vadd.f32 %v3205, %v3480
      %v3530 = vadd.f32 %v3206, %v3483
      %v3531 = vadd.f32 %v3207, %v3485
      %v3532 = vadd.f32 %v3208, %v3488
      %v3533 = vadd.f32 %v3209, %v3490
      %v3534 = vadd.f32 %v3210, %v3493
      %v3535 = vadd.f32 %v3211, %v3495
      %v3536 = vadd.f32 %v3212, %v3498
      %v3537 = vadd.f32 %v3213, %v3500
      %3538 = vst [vmem:[#allocation2] sm:$0xff] %v3502
      %3539 = vst [vmem:[#allocation2 + $0x8] sm:$0xff] %v3503
      %3540 = vst [vmem:[#allocation2 + $0x10] sm:$0xff] %v3504
      %3541 = vst [vmem:[#allocation2 + $0x18] sm:$0xff] %v3505
      %3542 = vst [vmem:[#allocation2 + $0x20] sm:$0xff] %v3506
      %3543 = vst [vmem:[#allocation2 + $0x28] sm:$0xff] %v3507
      %3544 = vst [vmem:[#allocation2 + $0x30] sm:$0xff] %v3508
      %3545 = vst [vmem:[#allocation2 + $0x38] sm:$0xff] %v3509
      %3546 = vst [vmem:[#allocation2 + $0x40] sm:$0xff] %v3510
      %3547 = vst [vmem:[#allocation2 + $0x48] sm:$0xff] %v3511
      %3548 = vst [vmem:[#allocation2 + $0x50] sm:$0xff] %v3512
      %3549 = vst [vmem:[#allocation2 + $0x58] sm:$0xff] %v3513
      %3550 = vst [vmem:[#allocation2 + $0x60] sm:$0xff] %v3514
      %3551 = vst [vmem:[#allocation2 + $0x68] sm:$0xff] %v3515
      %3552 = vst [vmem:[#allocation2 + $0x70] sm:$0xff] %v3516
      %3553 = vst [vmem:[#allocation2 + $0x78] sm:$0xff] %v3517
      %3554 = vst [vmem:[#allocation2 + $0x80] sm:$0xff] %v3518
      %3555 = vst [vmem:[#allocation2 + $0x88] sm:$0xff] %v3519
      %3556 = vst [vmem:[#allocation2 + $0x90] sm:$0xff] %v3520
      %3557 = vst [vmem:[#allocation2 + $0x98] sm:$0xff] %v3521
      %3558 = vst [vmem:[#allocation2 + $0xa0] sm:$0xff] %v3522
      %3559 = vst [vmem:[#allocation2 + $0xa8] sm:$0xff] %v3523
      %3560 = vst [vmem:[#allocation2 + $0xb0] sm:$0xff] %v3524
      %3561 = vst [vmem:[#allocation2 + $0xb8] sm:$0xff] %v3525
      %3562 = vst [vmem:[#allocation2 + $0xc0] sm:$0xff] %v3526
      %3563 = vst [vmem:[#allocation2 + $0xc8] sm:$0xff] %v3527
      %3564 = vst [vmem:[#allocation2 + $0xd0] sm:$0xff] %v3528
      %3565 = vst [vmem:[#allocation2 + $0xd8] sm:$0xff] %v3529
      %3566 = vst [vmem:[#allocation2 + $0xe0] sm:$0xff] %v3530
      %3567 = vst [vmem:[#allocation2 + $0xe8] sm:$0xff] %v3531
      %3568 = vst [vmem:[#allocation2 + $0xf0] sm:$0xff] %v3532
      %3569 = vst [vmem:[#allocation2 + $0xf8] sm:$0xff] %v3533
      %3570 = vst [vmem:[#allocation2 + $0x100] sm:$0xff] %v3534
      %3571 = vst [vmem:[#allocation2 + $0x108] sm:$0xff] %v3535
      %3572 = vst [vmem:[#allocation2 + $0x110] sm:$0xff] %v3536
      %3573 = vst [vmem:[#allocation2 + $0x118] sm:$0xff] %v3537
      %v3574 = vld [vmem:[%s280 + $0x10] sm:$0xc]
      %v3575 = vld [vmem:[%s280 + $0x14] sm:$0xf]
      %v3576 = vld [vmem:[%s280 + $0x18] sm:$0xf]
      %v3577 = vld [vmem:[%s280 + $0x1c] sm:$0xf]
      %v3578 = vld [vmem:[%s280 + $0x20] sm:$0xf]
      %v3579 = vld [vmem:[%s280 + $0x24] sm:$0xf]
      %v3580 = vld [vmem:[%s280 + $0x28] sm:$0xf]
      %v3581 = vld [vmem:[%s280 + $0x2c] sm:$0xf]
      %v3582 = vld [vmem:[%s280 + $0x30] sm:$0xf]
      %v3583 = vld [vmem:[%s280 + $0x34] sm:$0xf]
      %v3584 = vld [vmem:[%s280 + $0x38] sm:$0xf]
      %v3585 = vld [vmem:[%s280 + $0x3c] sm:$0xf]
      %v3586 = vld [vmem:[%s280 + $0x40] sm:$0xf]
      %v3587 = vld [vmem:[%s280 + $0x44] sm:$0xf]
      %v3588 = vld [vmem:[%s280 + $0x48] sm:$0xf]
      %v3589 = vld [vmem:[%s280 + $0x4c] sm:$0xf]
      %v3590 = vld [vmem:[%s280 + $0x50] sm:$0xf]
      %v3591 = vld [vmem:[%s280 + $0x54] sm:$0xf]
      %v3592 = vld [vmem:[%s280 + $0x58] sm:$0xf]
      %v3593 = vld [vmem:[%s280 + $0x5c] sm:$0xf]
      %v3594 = vld [vmem:[%s280 + $0x60] sm:$0xf]
      %v3595 = vld [vmem:[%s280 + $0x64] sm:$0xf]
      %v3596 = vld [vmem:[%s280 + $0x68] sm:$0xf]
      %v3597 = vld [vmem:[%s280 + $0x6c] sm:$0xf]
      %v3598 = vld [vmem:[%s280 + $0x70] sm:$0xf]
      %v3599 = vld [vmem:[%s280 + $0x74] sm:$0xf]
      %v3600 = vld [vmem:[%s280 + $0x78] sm:$0xf]
      %v3601 = vld [vmem:[%s280 + $0x7c] sm:$0xf]
      %v3602 = vld [vmem:[%s280 + $0x80] sm:$0xf]
      %v3603 = vld [vmem:[%s280 + $0x84] sm:$0xf]
      %v3604 = vld [vmem:[%s280 + $0x88] sm:$0xf]
      %v3605 = vld [vmem:[%s280 + $0x8c] sm:$0xf]
      %v3606 = vld [vmem:[%s280 + $0x90] sm:$0xf]
      %v3607 = vld [vmem:[%s280 + $0x94] sm:$0xf]
      %v3608 = vld [vmem:[%s280 + $0x98] sm:$0xf]
      %v3609 = vld [vmem:[%s280 + $0x9c] sm:$0xf]
      %v3610 = vld [vmem:[%s280 + $0xa0] sm:$0x7]
      %v3611 = vld [vmem:[#allocation2] sm:$0xff]
      %v3612 = vld [vmem:[#allocation2 + $0x8] sm:$0xff]
      %v3613 = vld [vmem:[#allocation2 + $0x10] sm:$0xff]
      %v3614 = vld [vmem:[#allocation2 + $0x18] sm:$0xff]
      %v3615 = vld [vmem:[#allocation2 + $0x20] sm:$0xff]
      %v3616 = vld [vmem:[#allocation2 + $0x28] sm:$0xff]
      %v3617 = vld [vmem:[#allocation2 + $0x30] sm:$0xff]
      %v3618 = vld [vmem:[#allocation2 + $0x38] sm:$0xff]
      %v3619 = vld [vmem:[#allocation2 + $0x40] sm:$0xff]
      %v3620 = vld [vmem:[#allocation2 + $0x48] sm:$0xff]
      %v3621 = vld [vmem:[#allocation2 + $0x50] sm:$0xff]
      %v3622 = vld [vmem:[#allocation2 + $0x58] sm:$0xff]
      %v3623 = vld [vmem:[#allocation2 + $0x60] sm:$0xff]
      %v3624 = vld [vmem:[#allocation2 + $0x68] sm:$0xff]
      %v3625 = vld [vmem:[#allocation2 + $0x70] sm:$0xff]
      %v3626 = vld [vmem:[#allocation2 + $0x78] sm:$0xff]
      %v3627 = vld [vmem:[#allocation2 + $0x80] sm:$0xff]
      %v3628 = vld [vmem:[#allocation2 + $0x88] sm:$0xff]
      %v3629 = vld [vmem:[#allocation2 + $0x90] sm:$0xff]
      %v3630 = vld [vmem:[#allocation2 + $0x98] sm:$0xff]
      %v3631 = vld [vmem:[#allocation2 + $0xa0] sm:$0xff]
      %v3632 = vld [vmem:[#allocation2 + $0xa8] sm:$0xff]
      %v3633 = vld [vmem:[#allocation2 + $0xb0] sm:$0xff]
      %v3634 = vld [vmem:[#allocation2 + $0xb8] sm:$0xff]
      %v3635 = vld [vmem:[#allocation2 + $0xc0] sm:$0xff]
      %v3636 = vld [vmem:[#allocation2 + $0xc8] sm:$0xff]
      %v3637 = vld [vmem:[#allocation2 + $0xd0] sm:$0xff]
      %v3638 = vld [vmem:[#allocation2 + $0xd8] sm:$0xff]
      %v3639 = vld [vmem:[#allocation2 + $0xe0] sm:$0xff]
      %v3640 = vld [vmem:[#allocation2 + $0xe8] sm:$0xff]
      %v3641 = vld [vmem:[#allocation2 + $0xf0] sm:$0xff]
      %v3642 = vld [vmem:[#allocation2 + $0xf8] sm:$0xff]
      %v3643 = vld [vmem:[#allocation2 + $0x100] sm:$0xff]
      %v3644 = vld [vmem:[#allocation2 + $0x108] sm:$0xff]
      %v3645 = vld [vmem:[#allocation2 + $0x110] sm:$0xff]
      %v3646 = vld [vmem:[#allocation2 + $0x118] sm:$0xff]
      %s3647 = scalar_lea.vmem %s1, 14
      %v3648 = vld [vmem:[%s3647] sm:$0x3]
      %v3686 = vunpack.c.l.b16 %v3574
      %v3687 = vunpack.c.l.b16 %v3575
      %v3688 = vunpack.c.l.b16 %v3576
      %v3689 = vunpack.c.l.b16 %v3577
      %v3690 = vunpack.c.l.b16 %v3578
      %v3691 = vunpack.c.l.b16 %v3579
      %v3692 = vunpack.c.l.b16 %v3580
      %v3693 = vunpack.c.l.b16 %v3581
      %v3694 = vunpack.c.l.b16 %v3582
      %v3695 = vunpack.c.l.b16 %v3583
      %v3696 = vunpack.c.l.b16 %v3584
      %v3697 = vunpack.c.l.b16 %v3585
      %v3698 = vunpack.c.l.b16 %v3586
      %v3699 = vunpack.c.l.b16 %v3587
      %v3700 = vunpack.c.l.b16 %v3588
      %v3701 = vunpack.c.l.b16 %v3589
      %v3702 = vunpack.c.l.b16 %v3590
      %v3703 = vunpack.c.l.b16 %v3591
      %v3704 = vunpack.c.l.b16 %v3592
      %v3705 = vunpack.c.l.b16 %v3593
      %v3706 = vunpack.c.l.b16 %v3594
      %v3707 = vunpack.c.l.b16 %v3595
      %v3708 = vunpack.c.l.b16 %v3596
      %v3709 = vunpack.c.l.b16 %v3597
      %v3710 = vunpack.c.l.b16 %v3598
      %v3711 = vunpack.c.l.b16 %v3599
      %v3712 = vunpack.c.l.b16 %v3600
      %v3713 = vunpack.c.l.b16 %v3601
      %v3714 = vunpack.c.l.b16 %v3602
      %v3715 = vunpack.c.l.b16 %v3603
      %v3716 = vunpack.c.l.b16 %v3604
      %v3717 = vunpack.c.l.b16 %v3605
      %v3718 = vunpack.c.l.b16 %v3606
      %v3719 = vunpack.c.l.b16 %v3607
      %v3720 = vunpack.c.l.b16 %v3608
      %v3721 = vunpack.c.l.b16 %v3609
      %v3722 = vunpack.c.l.b16 %v3610
      %v3723 = vpack.c.b16 %v3687, %v3686
      %v3724 = vpack.c.b16 %v3689, %v3688
      %v3725 = vpack.c.b16 %v3691, %v3690
      %v3726 = vpack.c.b16 %v3693, %v3692
      %v3727 = vpack.c.b16 %v3695, %v3694
      %v3728 = vpack.c.b16 %v3697, %v3696
      %v3729 = vpack.c.b16 %v3699, %v3698
      %v3730 = vpack.c.b16 %v3701, %v3700
      %v3731 = vpack.c.b16 %v3703, %v3702
      %v3732 = vpack.c.b16 %v3705, %v3704
      %v3733 = vpack.c.b16 %v3707, %v3706
      %v3734 = vpack.c.b16 %v3709, %v3708
      %v3735 = vpack.c.b16 %v3711, %v3710
      %v3736 = vpack.c.b16 %v3713, %v3712
      %v3737 = vpack.c.b16 %v3715, %v3714
      %v3738 = vpack.c.b16 %v3717, %v3716
      %v3739 = vpack.c.b16 %v3719, %v3718
      %v3740 = vpack.c.b16 %v3721, %v3720
      %v3741 = vpack.c.b16 %v3722, %v3722
      %vm3742 = vsmask.f32 5376
      %v3744 = vshrl.u32 %v3723, 16
      %v3746 = vrot.slane %v3744, 2
      %v3747 = vshll.u32 %v3723, 16
      %v3749 = vrot.slane %v3747, 3
      %v3750 = vor.u32 %v3746, %v3749
      %v3752 = vshrl.u32 %v3724, 16
      %v3754 = vrot.slane %v3752, 2
      %v3755 = vshll.u32 %v3724, 16
      %v3757 = vrot.slane %v3755, 3
      %v3758 = vor.u32 %v3754, %v3757
      %v3759 = vsel %vm3742, %v3750, %v3758
      %v3761 = vshrl.u32 %v3725, 16
      %v3763 = vrot.slane %v3761, 2
      %v3764 = vshll.u32 %v3725, 16
      %v3766 = vrot.slane %v3764, 3
      %v3767 = vor.u32 %v3763, %v3766
      %v3768 = vsel %vm3742, %v3758, %v3767
      %v3770 = vshrl.u32 %v3726, 16
      %v3772 = vrot.slane %v3770, 2
      %v3773 = vshll.u32 %v3726, 16
      %v3775 = vrot.slane %v3773, 3
      %v3776 = vor.u32 %v3772, %v3775
      %v3777 = vsel %vm3742, %v3767, %v3776
      %v3779 = vshrl.u32 %v3727, 16
      %v3781 = vrot.slane %v3779, 2
      %v3782 = vshll.u32 %v3727, 16
      %v3784 = vrot.slane %v3782, 3
      %v3785 = vor.u32 %v3781, %v3784
      %v3786 = vsel %vm3742, %v3776, %v3785
      %v3788 = vshrl.u32 %v3728, 16
      %v3790 = vrot.slane %v3788, 2
      %v3791 = vshll.u32 %v3728, 16
      %v3793 = vrot.slane %v3791, 3
      %v3794 = vor.u32 %v3790, %v3793
      %v3795 = vsel %vm3742, %v3785, %v3794
      %v3797 = vshrl.u32 %v3729, 16
      %v3799 = vrot.slane %v3797, 2
      %v3800 = vshll.u32 %v3729, 16
      %v3802 = vrot.slane %v3800, 3
      %v3803 = vor.u32 %v3799, %v3802
      %v3804 = vsel %vm3742, %v3794, %v3803
      %v3806 = vshrl.u32 %v3730, 16
      %v3808 = vrot.slane %v3806, 2
      %v3809 = vshll.u32 %v3730, 16
      %v3811 = vrot.slane %v3809, 3
      %v3812 = vor.u32 %v3808, %v3811
      %v3813 = vsel %vm3742, %v3803, %v3812
      %v3815 = vshrl.u32 %v3731, 16
      %v3817 = vrot.slane %v3815, 2
      %v3818 = vshll.u32 %v3731, 16
      %v3820 = vrot.slane %v3818, 3
      %v3821 = vor.u32 %v3817, %v3820
      %v3822 = vsel %vm3742, %v3812, %v3821
      %v3824 = vshrl.u32 %v3732, 16
      %v3826 = vrot.slane %v3824, 2
      %v3827 = vshll.u32 %v3732, 16
      %v3829 = vrot.slane %v3827, 3
      %v3830 = vor.u32 %v3826, %v3829
      %v3831 = vsel %vm3742, %v3821, %v3830
      %v3833 = vshrl.u32 %v3733, 16
      %v3835 = vrot.slane %v3833, 2
      %v3836 = vshll.u32 %v3733, 16
      %v3838 = vrot.slane %v3836, 3
      %v3839 = vor.u32 %v3835, %v3838
      %v3840 = vsel %vm3742, %v3830, %v3839
      %v3842 = vshrl.u32 %v3734, 16
      %v3844 = vrot.slane %v3842, 2
      %v3845 = vshll.u32 %v3734, 16
      %v3847 = vrot.slane %v3845, 3
      %v3848 = vor.u32 %v3844, %v3847
      %v3849 = vsel %vm3742, %v3839, %v3848
      %v3851 = vshrl.u32 %v3735, 16
      %v3853 = vrot.slane %v3851, 2
      %v3854 = vshll.u32 %v3735, 16
      %v3856 = vrot.slane %v3854, 3
      %v3857 = vor.u32 %v3853, %v3856
      %v3858 = vsel %vm3742, %v3848, %v3857
      %v3860 = vshrl.u32 %v3736, 16
      %v3862 = vrot.slane %v3860, 2
      %v3863 = vshll.u32 %v3736, 16
      %v3865 = vrot.slane %v3863, 3
      %v3866 = vor.u32 %v3862, %v3865
      %v3867 = vsel %vm3742, %v3857, %v3866
      %v3869 = vshrl.u32 %v3737, 16
      %v3871 = vrot.slane %v3869, 2
      %v3872 = vshll.u32 %v3737, 16
      %v3874 = vrot.slane %v3872, 3
      %v3875 = vor.u32 %v3871, %v3874
      %v3876 = vsel %vm3742, %v3866, %v3875
      %v3878 = vshrl.u32 %v3738, 16
      %v3880 = vrot.slane %v3878, 2
      %v3881 = vshll.u32 %v3738, 16
      %v3883 = vrot.slane %v3881, 3
      %v3884 = vor.u32 %v3880, %v3883
      %v3885 = vsel %vm3742, %v3875, %v3884
      %v3887 = vshrl.u32 %v3739, 16
      %v3889 = vrot.slane %v3887, 2
      %v3890 = vshll.u32 %v3739, 16
      %v3892 = vrot.slane %v3890, 3
      %v3893 = vor.u32 %v3889, %v3892
      %v3894 = vsel %vm3742, %v3884, %v3893
      %v3896 = vshrl.u32 %v3740, 16
      %v3898 = vrot.slane %v3896, 2
      %v3899 = vshll.u32 %v3740, 16
      %v3901 = vrot.slane %v3899, 3
      %v3902 = vor.u32 %v3898, %v3901
      %v3903 = vsel %vm3742, %v3893, %v3902
      %v3905 = vshrl.u32 %v3741, 16
      %v3907 = vrot.slane %v3905, 2
      %v3908 = vshll.u32 %v3741, 16
      %v3910 = vrot.slane %v3908, 3
      %v3911 = vor.u32 %v3907, %v3910
      %v3912 = vsel %vm3742, %v3902, %v3911
      %v3914 = vsel %vm495, %v3759, 0
      %v3917 = vsel %vm495, %v3768, 0
      %v3920 = vsel %vm495, %v3777, 0
      %v3923 = vsel %vm495, %v3786, 0
      %v3926 = vsel %vm495, %v3795, 0
      %v3929 = vsel %vm495, %v3804, 0
      %v3932 = vsel %vm495, %v3813, 0
      %v3935 = vsel %vm495, %v3822, 0
      %v3938 = vsel %vm495, %v3831, 0
      %v3941 = vsel %vm495, %v3840, 0
      %v3944 = vsel %vm495, %v3849, 0
      %v3947 = vsel %vm495, %v3858, 0
      %v3950 = vsel %vm495, %v3867, 0
      %v3953 = vsel %vm495, %v3876, 0
      %v3956 = vsel %vm495, %v3885, 0
      %v3959 = vsel %vm495, %v3894, 0
      %v3962 = vsel %vm495, %v3903, 0
      %v3965 = vsel %vm495, %v3912, 0
      %v3968 = vand.u32 %v3648, %v553
      %3970 = vmatpush.bf16.msra.mxu0 0
      %3971 = vmatpush.bf16.msra.mxu0 0
      %3972 = vmatpush.bf16.msra.mxu0 0
      %3973 = vmatpush.bf16.msra.mxu0 0
      %3974 = vmatpush.bf16.msra.mxu0 0
      %3975 = vmatpush.bf16.msra.mxu0 0
      %3976 = vmatpush.bf16.msra.mxu0 0
      %3977 = vmatpush.bf16.msra.mxu0 %v3968
      %3978 = vmatmul.bf16.gmra.mxu0 %v3914
      %v3979 = vpop.f32.mrf.mxu0
      %v3980 = vadd.f32 0.0, %v3979
      %v3981 = vpop.f32.mrf.mxu0
      %v3982 = vadd.f32 0.0, %v3981
      %3983 = vmatmul.bf16.gmra.mxu0 %v3917
      %v3984 = vpop.f32.mrf.mxu0
      %v3985 = vadd.f32 0.0, %v3984
      %v3986 = vpop.f32.mrf.mxu0
      %v3987 = vadd.f32 0.0, %v3986
      %3988 = vmatmul.bf16.gmra.mxu0 %v3920
      %v3989 = vpop.f32.mrf.mxu0
      %v3990 = vadd.f32 0.0, %v3989
      %v3991 = vpop.f32.mrf.mxu0
      %v3992 = vadd.f32 0.0, %v3991
      %3993 = vmatmul.bf16.gmra.mxu0 %v3923
      %v3994 = vpop.f32.mrf.mxu0
      %v3995 = vadd.f32 0.0, %v3994
      %v3996 = vpop.f32.mrf.mxu0
      %v3997 = vadd.f32 0.0, %v3996
      %3998 = vmatmul.bf16.gmra.mxu0 %v3926
      %v3999 = vpop.f32.mrf.mxu0
      %v4000 = vadd.f32 0.0, %v3999
      %v4001 = vpop.f32.mrf.mxu0
      %v4002 = vadd.f32 0.0, %v4001
      %4003 = vmatmul.bf16.gmra.mxu0 %v3929
      %v4004 = vpop.f32.mrf.mxu0
      %v4005 = vadd.f32 0.0, %v4004
      %v4006 = vpop.f32.mrf.mxu0
      %v4007 = vadd.f32 0.0, %v4006
      %4008 = vmatmul.bf16.gmra.mxu0 %v3932
      %v4009 = vpop.f32.mrf.mxu0
      %v4010 = vadd.f32 0.0, %v4009
      %v4011 = vpop.f32.mrf.mxu0
      %v4012 = vadd.f32 0.0, %v4011
      %4013 = vmatmul.bf16.gmra.mxu0 %v3935
      %v4014 = vpop.f32.mrf.mxu0
      %v4015 = vadd.f32 0.0, %v4014
      %v4016 = vpop.f32.mrf.mxu0
      %v4017 = vadd.f32 0.0, %v4016
      %4018 = vmatmul.bf16.gmra.mxu0 %v3938
      %v4019 = vpop.f32.mrf.mxu0
      %v4020 = vadd.f32 0.0, %v4019
      %v4021 = vpop.f32.mrf.mxu0
      %v4022 = vadd.f32 0.0, %v4021
      %4023 = vmatmul.bf16.gmra.mxu0 %v3941
      %v4024 = vpop.f32.mrf.mxu0
      %v4025 = vadd.f32 0.0, %v4024
      %v4026 = vpop.f32.mrf.mxu0
      %v4027 = vadd.f32 0.0, %v4026
      %4028 = vmatmul.bf16.gmra.mxu0 %v3944
      %v4029 = vpop.f32.mrf.mxu0
      %v4030 = vadd.f32 0.0, %v4029
      %v4031 = vpop.f32.mrf.mxu0
      %v4032 = vadd.f32 0.0, %v4031
      %4033 = vmatmul.bf16.gmra.mxu0 %v3947
      %v4034 = vpop.f32.mrf.mxu0
      %v4035 = vadd.f32 0.0, %v4034
      %v4036 = vpop.f32.mrf.mxu0
      %v4037 = vadd.f32 0.0, %v4036
      %4038 = vmatmul.bf16.gmra.mxu0 %v3950
      %v4039 = vpop.f32.mrf.mxu0
      %v4040 = vadd.f32 0.0, %v4039
      %v4041 = vpop.f32.mrf.mxu0
      %v4042 = vadd.f32 0.0, %v4041
      %4043 = vmatmul.bf16.gmra.mxu0 %v3953
      %v4044 = vpop.f32.mrf.mxu0
      %v4045 = vadd.f32 0.0, %v4044
      %v4046 = vpop.f32.mrf.mxu0
      %v4047 = vadd.f32 0.0, %v4046
      %4048 = vmatmul.bf16.gmra.mxu0 %v3956
      %v4049 = vpop.f32.mrf.mxu0
      %v4050 = vadd.f32 0.0, %v4049
      %v4051 = vpop.f32.mrf.mxu0
      %v4052 = vadd.f32 0.0, %v4051
      %4053 = vmatmul.bf16.gmra.mxu0 %v3959
      %v4054 = vpop.f32.mrf.mxu0
      %v4055 = vadd.f32 0.0, %v4054
      %v4056 = vpop.f32.mrf.mxu0
      %v4057 = vadd.f32 0.0, %v4056
      %4058 = vmatmul.bf16.gmra.mxu0 %v3962
      %v4059 = vpop.f32.mrf.mxu0
      %v4060 = vadd.f32 0.0, %v4059
      %v4061 = vpop.f32.mrf.mxu0
      %v4062 = vadd.f32 0.0, %v4061
      %4063 = vmatmul.bf16.gmra.mxu0 %v3965
      %v4064 = vpop.f32.mrf.mxu0
      %v4065 = vadd.f32 0.0, %v4064
      %v4066 = vpop.f32.mrf.mxu0
      %v4067 = vadd.f32 0.0, %v4066
      %4068 = vdwg.mxu0
      %v4069 = vadd.f32 %v3611, %v3980
      %v4070 = vadd.f32 %v3612, %v3982
      %v4071 = vadd.f32 %v3613, %v3985
      %v4072 = vadd.f32 %v3614, %v3987
      %v4073 = vadd.f32 %v3615, %v3990
      %v4074 = vadd.f32 %v3616, %v3992
      %v4075 = vadd.f32 %v3617, %v3995
      %v4076 = vadd.f32 %v3618, %v3997
      %v4077 = vadd.f32 %v3619, %v4000
      %v4078 = vadd.f32 %v3620, %v4002
      %v4079 = vadd.f32 %v3621, %v4005
      %v4080 = vadd.f32 %v3622, %v4007
      %v4081 = vadd.f32 %v3623, %v4010
      %v4082 = vadd.f32 %v3624, %v4012
      %v4083 = vadd.f32 %v3625, %v4015
      %v4084 = vadd.f32 %v3626, %v4017
      %v4085 = vadd.f32 %v3627, %v4020
      %v4086 = vadd.f32 %v3628, %v4022
      %v4087 = vadd.f32 %v3629, %v4025
      %v4088 = vadd.f32 %v3630, %v4027
      %v4089 = vadd.f32 %v3631, %v4030
      %v4090 = vadd.f32 %v3632, %v4032
      %v4091 = vadd.f32 %v3633, %v4035
      %v4092 = vadd.f32 %v3634, %v4037
      %v4093 = vadd.f32 %v3635, %v4040
      %v4094 = vadd.f32 %v3636, %v4042
      %v4095 = vadd.f32 %v3637, %v4045
      %v4096 = vadd.f32 %v3638, %v4047
      %v4097 = vadd.f32 %v3639, %v4050
      %v4098 = vadd.f32 %v3640, %v4052
      %v4099 = vadd.f32 %v3641, %v4055
      %v4100 = vadd.f32 %v3642, %v4057
      %v4101 = vadd.f32 %v3643, %v4060
      %v4102 = vadd.f32 %v3644, %v4062
      %v4103 = vadd.f32 %v3645, %v4065
      %v4104 = vadd.f32 %v3646, %v4067
      %4105 = vst [vmem:[#allocation2] sm:$0xff] %v4069
      %4106 = vst [vmem:[#allocation2 + $0x8] sm:$0xff] %v4070
      %4107 = vst [vmem:[#allocation2 + $0x10] sm:$0xff] %v4071
      %4108 = vst [vmem:[#allocation2 + $0x18] sm:$0xff] %v4072
      %4109 = vst [vmem:[#allocation2 + $0x20] sm:$0xff] %v4073
      %4110 = vst [vmem:[#allocation2 + $0x28] sm:$0xff] %v4074
      %4111 = vst [vmem:[#allocation2 + $0x30] sm:$0xff] %v4075
      %4112 = vst [vmem:[#allocation2 + $0x38] sm:$0xff] %v4076
      %4113 = vst [vmem:[#allocation2 + $0x40] sm:$0xff] %v4077
      %4114 = vst [vmem:[#allocation2 + $0x48] sm:$0xff] %v4078
      %4115 = vst [vmem:[#allocation2 + $0x50] sm:$0xff] %v4079
      %4116 = vst [vmem:[#allocation2 + $0x58] sm:$0xff] %v4080
      %4117 = vst [vmem:[#allocation2 + $0x60] sm:$0xff] %v4081
      %4118 = vst [vmem:[#allocation2 + $0x68] sm:$0xff] %v4082
      %4119 = vst [vmem:[#allocation2 + $0x70] sm:$0xff] %v4083
      %4120 = vst [vmem:[#allocation2 + $0x78] sm:$0xff] %v4084
      %4121 = vst [vmem:[#allocation2 + $0x80] sm:$0xff] %v4085
      %4122 = vst [vmem:[#allocation2 + $0x88] sm:$0xff] %v4086
      %4123 = vst [vmem:[#allocation2 + $0x90] sm:$0xff] %v4087
      %4124 = vst [vmem:[#allocation2 + $0x98] sm:$0xff] %v4088
      %4125 = vst [vmem:[#allocation2 + $0xa0] sm:$0xff] %v4089
      %4126 = vst [vmem:[#allocation2 + $0xa8] sm:$0xff] %v4090
      %4127 = vst [vmem:[#allocation2 + $0xb0] sm:$0xff] %v4091
      %4128 = vst [vmem:[#allocation2 + $0xb8] sm:$0xff] %v4092
      %4129 = vst [vmem:[#allocation2 + $0xc0] sm:$0xff] %v4093
      %4130 = vst [vmem:[#allocation2 + $0xc8] sm:$0xff] %v4094
      %4131 = vst [vmem:[#allocation2 + $0xd0] sm:$0xff] %v4095
      %4132 = vst [vmem:[#allocation2 + $0xd8] sm:$0xff] %v4096
      %4133 = vst [vmem:[#allocation2 + $0xe0] sm:$0xff] %v4097
      %4134 = vst [vmem:[#allocation2 + $0xe8] sm:$0xff] %v4098
      %4135 = vst [vmem:[#allocation2 + $0xf0] sm:$0xff] %v4099
      %4136 = vst [vmem:[#allocation2 + $0xf8] sm:$0xff] %v4100
      %4137 = vst [vmem:[#allocation2 + $0x100] sm:$0xff] %v4101
      %4138 = vst [vmem:[#allocation2 + $0x108] sm:$0xff] %v4102
      %4139 = vst [vmem:[#allocation2 + $0x110] sm:$0xff] %v4103
      %4140 = vst [vmem:[#allocation2 + $0x118] sm:$0xff] %v4104
      %v4141 = vld [vmem:[%s280 + $0x10] sm:$0x8]
      %v4142 = vld [vmem:[%s280 + $0x14] sm:$0xf]
      %v4143 = vld [vmem:[%s280 + $0x18] sm:$0xf]
      %v4144 = vld [vmem:[%s280 + $0x1c] sm:$0xf]
      %v4145 = vld [vmem:[%s280 + $0x20] sm:$0xf]
      %v4146 = vld [vmem:[%s280 + $0x24] sm:$0xf]
      %v4147 = vld [vmem:[%s280 + $0x28] sm:$0xf]
      %v4148 = vld [vmem:[%s280 + $0x2c] sm:$0xf]
      %v4149 = vld [vmem:[%s280 + $0x30] sm:$0xf]
      %v4150 = vld [vmem:[%s280 + $0x34] sm:$0xf]
      %v4151 = vld [vmem:[%s280 + $0x38] sm:$0xf]
      %v4152 = vld [vmem:[%s280 + $0x3c] sm:$0xf]
      %v4153 = vld [vmem:[%s280 + $0x40] sm:$0xf]
      %v4154 = vld [vmem:[%s280 + $0x44] sm:$0xf]
      %v4155 = vld [vmem:[%s280 + $0x48] sm:$0xf]
      %v4156 = vld [vmem:[%s280 + $0x4c] sm:$0xf]
      %v4157 = vld [vmem:[%s280 + $0x50] sm:$0xf]
      %v4158 = vld [vmem:[%s280 + $0x54] sm:$0xf]
      %v4159 = vld [vmem:[%s280 + $0x58] sm:$0xf]
      %v4160 = vld [vmem:[%s280 + $0x5c] sm:$0xf]
      %v4161 = vld [vmem:[%s280 + $0x60] sm:$0xf]
      %v4162 = vld [vmem:[%s280 + $0x64] sm:$0xf]
      %v4163 = vld [vmem:[%s280 + $0x68] sm:$0xf]
      %v4164 = vld [vmem:[%s280 + $0x6c] sm:$0xf]
      %v4165 = vld [vmem:[%s280 + $0x70] sm:$0xf]
      %v4166 = vld [vmem:[%s280 + $0x74] sm:$0xf]
      %v4167 = vld [vmem:[%s280 + $0x78] sm:$0xf]
      %v4168 = vld [vmem:[%s280 + $0x7c] sm:$0xf]
      %v4169 = vld [vmem:[%s280 + $0x80] sm:$0xf]
      %v4170 = vld [vmem:[%s280 + $0x84] sm:$0xf]
      %v4171 = vld [vmem:[%s280 + $0x88] sm:$0xf]
      %v4172 = vld [vmem:[%s280 + $0x8c] sm:$0xf]
      %v4173 = vld [vmem:[%s280 + $0x90] sm:$0xf]
      %v4174 = vld [vmem:[%s280 + $0x94] sm:$0xf]
      %v4175 = vld [vmem:[%s280 + $0x98] sm:$0xf]
      %v4176 = vld [vmem:[%s280 + $0x9c] sm:$0xf]
      %v4177 = vld [vmem:[%s280 + $0xa0] sm:$0x7]
      %v4178 = vld [vmem:[#allocation2] sm:$0xff]
      %v4179 = vld [vmem:[#allocation2 + $0x8] sm:$0xff]
      %v4180 = vld [vmem:[#allocation2 + $0x10] sm:$0xff]
      %v4181 = vld [vmem:[#allocation2 + $0x18] sm:$0xff]
      %v4182 = vld [vmem:[#allocation2 + $0x20] sm:$0xff]
      %v4183 = vld [vmem:[#allocation2 + $0x28] sm:$0xff]
      %v4184 = vld [vmem:[#allocation2 + $0x30] sm:$0xff]
      %v4185 = vld [vmem:[#allocation2 + $0x38] sm:$0xff]
      %v4186 = vld [vmem:[#allocation2 + $0x40] sm:$0xff]
      %v4187 = vld [vmem:[#allocation2 + $0x48] sm:$0xff]
      %v4188 = vld [vmem:[#allocation2 + $0x50] sm:$0xff]
      %v4189 = vld [vmem:[#allocation2 + $0x58] sm:$0xff]
      %v4190 = vld [vmem:[#allocation2 + $0x60] sm:$0xff]
      %v4191 = vld [vmem:[#allocation2 + $0x68] sm:$0xff]
      %v4192 = vld [vmem:[#allocation2 + $0x70] sm:$0xff]
      %v4193 = vld [vmem:[#allocation2 + $0x78] sm:$0xff]
      %v4194 = vld [vmem:[#allocation2 + $0x80] sm:$0xff]
      %v4195 = vld [vmem:[#allocation2 + $0x88] sm:$0xff]
      %v4196 = vld [vmem:[#allocation2 + $0x90] sm:$0xff]
      %v4197 = vld [vmem:[#allocation2 + $0x98] sm:$0xff]
      %v4198 = vld [vmem:[#allocation2 + $0xa0] sm:$0xff]
      %v4199 = vld [vmem:[#allocation2 + $0xa8] sm:$0xff]
      %v4200 = vld [vmem:[#allocation2 + $0xb0] sm:$0xff]
      %v4201 = vld [vmem:[#allocation2 + $0xb8] sm:$0xff]
      %v4202 = vld [vmem:[#allocation2 + $0xc0] sm:$0xff]
      %v4203 = vld [vmem:[#allocation2 + $0xc8] sm:$0xff]
      %v4204 = vld [vmem:[#allocation2 + $0xd0] sm:$0xff]
      %v4205 = vld [vmem:[#allocation2 + $0xd8] sm:$0xff]
      %v4206 = vld [vmem:[#allocation2 + $0xe0] sm:$0xff]
      %v4207 = vld [vmem:[#allocation2 + $0xe8] sm:$0xff]
      %v4208 = vld [vmem:[#allocation2 + $0xf0] sm:$0xff]
      %v4209 = vld [vmem:[#allocation2 + $0xf8] sm:$0xff]
      %v4210 = vld [vmem:[#allocation2 + $0x100] sm:$0xff]
      %v4211 = vld [vmem:[#allocation2 + $0x108] sm:$0xff]
      %v4212 = vld [vmem:[#allocation2 + $0x110] sm:$0xff]
      %v4213 = vld [vmem:[#allocation2 + $0x118] sm:$0xff]
      %s4214 = scalar_lea.vmem %s1, 16
      %v4215 = vld [vmem:[%s4214] sm:$0x3]
      %v4253 = vunpack.c.l.b16 %v4141
      %v4254 = vunpack.c.l.b16 %v4142
      %v4255 = vunpack.c.l.b16 %v4143
      %v4256 = vunpack.c.l.b16 %v4144
      %v4257 = vunpack.c.l.b16 %v4145
      %v4258 = vunpack.c.l.b16 %v4146
      %v4259 = vunpack.c.l.b16 %v4147
      %v4260 = vunpack.c.l.b16 %v4148
      %v4261 = vunpack.c.l.b16 %v4149
      %v4262 = vunpack.c.l.b16 %v4150
      %v4263 = vunpack.c.l.b16 %v4151
      %v4264 = vunpack.c.l.b16 %v4152
      %v4265 = vunpack.c.l.b16 %v4153
      %v4266 = vunpack.c.l.b16 %v4154
      %v4267 = vunpack.c.l.b16 %v4155
      %v4268 = vunpack.c.l.b16 %v4156
      %v4269 = vunpack.c.l.b16 %v4157
      %v4270 = vunpack.c.l.b16 %v4158
      %v4271 = vunpack.c.l.b16 %v4159
      %v4272 = vunpack.c.l.b16 %v4160
      %v4273 = vunpack.c.l.b16 %v4161
      %v4274 = vunpack.c.l.b16 %v4162
      %v4275 = vunpack.c.l.b16 %v4163
      %v4276 = vunpack.c.l.b16 %v4164
      %v4277 = vunpack.c.l.b16 %v4165
      %v4278 = vunpack.c.l.b16 %v4166
      %v4279 = vunpack.c.l.b16 %v4167
      %v4280 = vunpack.c.l.b16 %v4168
      %v4281 = vunpack.c.l.b16 %v4169
      %v4282 = vunpack.c.l.b16 %v4170
      %v4283 = vunpack.c.l.b16 %v4171
      %v4284 = vunpack.c.l.b16 %v4172
      %v4285 = vunpack.c.l.b16 %v4173
      %v4286 = vunpack.c.l.b16 %v4174
      %v4287 = vunpack.c.l.b16 %v4175
      %v4288 = vunpack.c.l.b16 %v4176
      %v4289 = vunpack.c.l.b16 %v4177
      %v4290 = vpack.c.b16 %v4254, %v4253
      %v4291 = vpack.c.b16 %v4256, %v4255
      %v4292 = vpack.c.b16 %v4258, %v4257
      %v4293 = vpack.c.b16 %v4260, %v4259
      %v4294 = vpack.c.b16 %v4262, %v4261
      %v4295 = vpack.c.b16 %v4264, %v4263
      %v4296 = vpack.c.b16 %v4266, %v4265
      %v4297 = vpack.c.b16 %v4268, %v4267
      %v4298 = vpack.c.b16 %v4270, %v4269
      %v4299 = vpack.c.b16 %v4272, %v4271
      %v4300 = vpack.c.b16 %v4274, %v4273
      %v4301 = vpack.c.b16 %v4276, %v4275
      %v4302 = vpack.c.b16 %v4278, %v4277
      %v4303 = vpack.c.b16 %v4280, %v4279
      %v4304 = vpack.c.b16 %v4282, %v4281
      %v4305 = vpack.c.b16 %v4284, %v4283
      %v4306 = vpack.c.b16 %v4286, %v4285
      %v4307 = vpack.c.b16 %v4288, %v4287
      %v4308 = vpack.c.b16 %v4289, %v4289
      %vm4309 = vcmask 1044480
      %v4310 = vrot.slane %v4290, 3
      %v4311 = vrot.slane %v4291, 3
      %v4312 = vsel %vm4309, %v4310, %v4311
      %v4313 = vrot.slane %v4292, 3
      %v4314 = vsel %vm4309, %v4311, %v4313
      %v4315 = vrot.slane %v4293, 3
      %v4316 = vsel %vm4309, %v4313, %v4315
      %v4317 = vrot.slane %v4294, 3
      %v4318 = vsel %vm4309, %v4315, %v4317
      %v4319 = vrot.slane %v4295, 3
      %v4320 = vsel %vm4309, %v4317, %v4319
      %v4321 = vrot.slane %v4296, 3
      %v4322 = vsel %vm4309, %v4319, %v4321
      %v4323 = vrot.slane %v4297, 3
      %v4324 = vsel %vm4309, %v4321, %v4323
      %v4325 = vrot.slane %v4298, 3
      %v4326 = vsel %vm4309, %v4323, %v4325
      %v4327 = vrot.slane %v4299, 3
      %v4328 = vsel %vm4309, %v4325, %v4327
      %v4329 = vrot.slane %v4300, 3
      %v4330 = vsel %vm4309, %v4327, %v4329
      %v4331 = vrot.slane %v4301, 3
      %v4332 = vsel %vm4309, %v4329, %v4331
      %v4333 = vrot.slane %v4302, 3
      %v4334 = vsel %vm4309, %v4331, %v4333
      %v4335 = vrot.slane %v4303, 3
      %v4336 = vsel %vm4309, %v4333, %v4335
      %v4337 = vrot.slane %v4304, 3
      %v4338 = vsel %vm4309, %v4335, %v4337
      %v4339 = vrot.slane %v4305, 3
      %v4340 = vsel %vm4309, %v4337, %v4339
      %v4341 = vrot.slane %v4306, 3
      %v4342 = vsel %vm4309, %v4339, %v4341
      %v4343 = vrot.slane %v4307, 3
      %v4344 = vsel %vm4309, %v4341, %v4343
      %v4345 = vrot.slane %v4308, 3
      %v4346 = vsel %vm4309, %v4343, %v4345
      %v4348 = vsel %vm495, %v4312, 0
      %v4351 = vsel %vm495, %v4314, 0
      %v4354 = vsel %vm495, %v4316, 0
      %v4357 = vsel %vm495, %v4318, 0
      %v4360 = vsel %vm495, %v4320, 0
      %v4363 = vsel %vm495, %v4322, 0
      %v4366 = vsel %vm495, %v4324, 0
      %v4369 = vsel %vm495, %v4326, 0
      %v4372 = vsel %vm495, %v4328, 0
      %v4375 = vsel %vm495, %v4330, 0
      %v4378 = vsel %vm495, %v4332, 0
      %v4381 = vsel %vm495, %v4334, 0
      %v4384 = vsel %vm495, %v4336, 0
      %v4387 = vsel %vm495, %v4338, 0
      %v4390 = vsel %vm495, %v4340, 0
      %v4393 = vsel %vm495, %v4342, 0
      %v4396 = vsel %vm495, %v4344, 0
      %v4399 = vsel %vm495, %v4346, 0
      %v4402 = vand.u32 %v4215, %v553
      %4404 = vmatpush.bf16.msra.mxu0 0
      %4405 = vmatpush.bf16.msra.mxu0 0
      %4406 = vmatpush.bf16.msra.mxu0 0
      %4407 = vmatpush.bf16.msra.mxu0 0
      %4408 = vmatpush.bf16.msra.mxu0 0
      %4409 = vmatpush.bf16.msra.mxu0 0
      %4410 = vmatpush.bf16.msra.mxu0 0
      %4411 = vmatpush.bf16.msra.mxu0 %v4402
      %4412 = vmatmul.bf16.gmra.mxu0 %v4348
      %v4413 = vpop.f32.mrf.mxu0
      %v4414 = vadd.f32 0.0, %v4413
      %v4415 = vpop.f32.mrf.mxu0
      %v4416 = vadd.f32 0.0, %v4415
      %4417 = vmatmul.bf16.gmra.mxu0 %v4351
      %v4418 = vpop.f32.mrf.mxu0
      %v4419 = vadd.f32 0.0, %v4418
      %v4420 = vpop.f32.mrf.mxu0
      %v4421 = vadd.f32 0.0, %v4420
      %4422 = vmatmul.bf16.gmra.mxu0 %v4354
      %v4423 = vpop.f32.mrf.mxu0
      %v4424 = vadd.f32 0.0, %v4423
      %v4425 = vpop.f32.mrf.mxu0
      %v4426 = vadd.f32 0.0, %v4425
      %4427 = vmatmul.bf16.gmra.mxu0 %v4357
      %v4428 = vpop.f32.mrf.mxu0
      %v4429 = vadd.f32 0.0, %v4428
      %v4430 = vpop.f32.mrf.mxu0
      %v4431 = vadd.f32 0.0, %v4430
      %4432 = vmatmul.bf16.gmra.mxu0 %v4360
      %v4433 = vpop.f32.mrf.mxu0
      %v4434 = vadd.f32 0.0, %v4433
      %v4435 = vpop.f32.mrf.mxu0
      %v4436 = vadd.f32 0.0, %v4435
      %4437 = vmatmul.bf16.gmra.mxu0 %v4363
      %v4438 = vpop.f32.mrf.mxu0
      %v4439 = vadd.f32 0.0, %v4438
      %v4440 = vpop.f32.mrf.mxu0
      %v4441 = vadd.f32 0.0, %v4440
      %4442 = vmatmul.bf16.gmra.mxu0 %v4366
      %v4443 = vpop.f32.mrf.mxu0
      %v4444 = vadd.f32 0.0, %v4443
      %v4445 = vpop.f32.mrf.mxu0
      %v4446 = vadd.f32 0.0, %v4445
      %4447 = vmatmul.bf16.gmra.mxu0 %v4369
      %v4448 = vpop.f32.mrf.mxu0
      %v4449 = vadd.f32 0.0, %v4448
      %v4450 = vpop.f32.mrf.mxu0
      %v4451 = vadd.f32 0.0, %v4450
      %4452 = vmatmul.bf16.gmra.mxu0 %v4372
      %v4453 = vpop.f32.mrf.mxu0
      %v4454 = vadd.f32 0.0, %v4453
      %v4455 = vpop.f32.mrf.mxu0
      %v4456 = vadd.f32 0.0, %v4455
      %4457 = vmatmul.bf16.gmra.mxu0 %v4375
      %v4458 = vpop.f32.mrf.mxu0
      %v4459 = vadd.f32 0.0, %v4458
      %v4460 = vpop.f32.mrf.mxu0
      %v4461 = vadd.f32 0.0, %v4460
      %4462 = vmatmul.bf16.gmra.mxu0 %v4378
      %v4463 = vpop.f32.mrf.mxu0
      %v4464 = vadd.f32 0.0, %v4463
      %v4465 = vpop.f32.mrf.mxu0
      %v4466 = vadd.f32 0.0, %v4465
      %4467 = vmatmul.bf16.gmra.mxu0 %v4381
      %v4468 = vpop.f32.mrf.mxu0
      %v4469 = vadd.f32 0.0, %v4468
      %v4470 = vpop.f32.mrf.mxu0
      %v4471 = vadd.f32 0.0, %v4470
      %4472 = vmatmul.bf16.gmra.mxu0 %v4384
      %v4473 = vpop.f32.mrf.mxu0
      %v4474 = vadd.f32 0.0, %v4473
      %v4475 = vpop.f32.mrf.mxu0
      %v4476 = vadd.f32 0.0, %v4475
      %4477 = vmatmul.bf16.gmra.mxu0 %v4387
      %v4478 = vpop.f32.mrf.mxu0
      %v4479 = vadd.f32 0.0, %v4478
      %v4480 = vpop.f32.mrf.mxu0
      %v4481 = vadd.f32 0.0, %v4480
      %4482 = vmatmul.bf16.gmra.mxu0 %v4390
      %v4483 = vpop.f32.mrf.mxu0
      %v4484 = vadd.f32 0.0, %v4483
      %v4485 = vpop.f32.mrf.mxu0
      %v4486 = vadd.f32 0.0, %v4485
      %4487 = vmatmul.bf16.gmra.mxu0 %v4393
      %v4488 = vpop.f32.mrf.mxu0
      %v4489 = vadd.f32 0.0, %v4488
      %v4490 = vpop.f32.mrf.mxu0
      %v4491 = vadd.f32 0.0, %v4490
      %4492 = vmatmul.bf16.gmra.mxu0 %v4396
      %v4493 = vpop.f32.mrf.mxu0
      %v4494 = vadd.f32 0.0, %v4493
      %v4495 = vpop.f32.mrf.mxu0
      %v4496 = vadd.f32 0.0, %v4495
      %4497 = vmatmul.bf16.gmra.mxu0 %v4399
      %v4498 = vpop.f32.mrf.mxu0
      %v4499 = vadd.f32 0.0, %v4498
      %v4500 = vpop.f32.mrf.mxu0
      %v4501 = vadd.f32 0.0, %v4500
      %4502 = vdwg.mxu0
      %v4503 = vadd.f32 %v4178, %v4414
      %v4504 = vadd.f32 %v4179, %v4416
      %v4505 = vadd.f32 %v4180, %v4419
      %v4506 = vadd.f32 %v4181, %v4421
      %v4507 = vadd.f32 %v4182, %v4424
      %v4508 = vadd.f32 %v4183, %v4426
      %v4509 = vadd.f32 %v4184, %v4429
      %v4510 = vadd.f32 %v4185, %v4431
      %v4511 = vadd.f32 %v4186, %v4434
      %v4512 = vadd.f32 %v4187, %v4436
      %v4513 = vadd.f32 %v4188, %v4439
      %v4514 = vadd.f32 %v4189, %v4441
      %v4515 = vadd.f32 %v4190, %v4444
      %v4516 = vadd.f32 %v4191, %v4446
      %v4517 = vadd.f32 %v4192, %v4449
      %v4518 = vadd.f32 %v4193, %v4451
      %v4519 = vadd.f32 %v4194, %v4454
      %v4520 = vadd.f32 %v4195, %v4456
      %v4521 = vadd.f32 %v4196, %v4459
      %v4522 = vadd.f32 %v4197, %v4461
      %v4523 = vadd.f32 %v4198, %v4464
      %v4524 = vadd.f32 %v4199, %v4466
      %v4525 = vadd.f32 %v4200, %v4469
      %v4526 = vadd.f32 %v4201, %v4471
      %v4527 = vadd.f32 %v4202, %v4474
      %v4528 = vadd.f32 %v4203, %v4476
      %v4529 = vadd.f32 %v4204, %v4479
      %v4530 = vadd.f32 %v4205, %v4481
      %v4531 = vadd.f32 %v4206, %v4484
      %v4532 = vadd.f32 %v4207, %v4486
      %v4533 = vadd.f32 %v4208, %v4489
      %v4534 = vadd.f32 %v4209, %v4491
      %v4535 = vadd.f32 %v4210, %v4494
      %v4536 = vadd.f32 %v4211, %v4496
      %v4537 = vadd.f32 %v4212, %v4499
      %v4538 = vadd.f32 %v4213, %v4501
      %4539 = vst [vmem:[#allocation2] sm:$0xff] %v4503
      %4540 = vst [vmem:[#allocation2 + $0x8] sm:$0xff] %v4504
      %4541 = vst [vmem:[#allocation2 + $0x10] sm:$0xff] %v4505
      %4542 = vst [vmem:[#allocation2 + $0x18] sm:$0xff] %v4506
      %4543 = vst [vmem:[#allocation2 + $0x20] sm:$0xff] %v4507
      %4544 = vst [vmem:[#allocation2 + $0x28] sm:$0xff] %v4508
      %4545 = vst [vmem:[#allocation2 + $0x30] sm:$0xff] %v4509
      %4546 = vst [vmem:[#allocation2 + $0x38] sm:$0xff] %v4510
      %4547 = vst [vmem:[#allocation2 + $0x40] sm:$0xff] %v4511
      %4548 = vst [vmem:[#allocation2 + $0x48] sm:$0xff] %v4512
      %4549 = vst [vmem:[#allocation2 + $0x50] sm:$0xff] %v4513
      %4550 = vst [vmem:[#allocation2 + $0x58] sm:$0xff] %v4514
      %4551 = vst [vmem:[#allocation2 + $0x60] sm:$0xff] %v4515
      %4552 = vst [vmem:[#allocation2 + $0x68] sm:$0xff] %v4516
      %4553 = vst [vmem:[#allocation2 + $0x70] sm:$0xff] %v4517
      %4554 = vst [vmem:[#allocation2 + $0x78] sm:$0xff] %v4518
      %4555 = vst [vmem:[#allocation2 + $0x80] sm:$0xff] %v4519
      %4556 = vst [vmem:[#allocation2 + $0x88] sm:$0xff] %v4520
      %4557 = vst [vmem:[#allocation2 + $0x90] sm:$0xff] %v4521
      %4558 = vst [vmem:[#allocation2 + $0x98] sm:$0xff] %v4522
      %4559 = vst [vmem:[#allocation2 + $0xa0] sm:$0xff] %v4523
      %4560 = vst [vmem:[#allocation2 + $0xa8] sm:$0xff] %v4524
      %4561 = vst [vmem:[#allocation2 + $0xb0] sm:$0xff] %v4525
      %4562 = vst [vmem:[#allocation2 + $0xb8] sm:$0xff] %v4526
      %4563 = vst [vmem:[#allocation2 + $0xc0] sm:$0xff] %v4527
      %4564 = vst [vmem:[#allocation2 + $0xc8] sm:$0xff] %v4528
      %4565 = vst [vmem:[#allocation2 + $0xd0] sm:$0xff] %v4529
      %4566 = vst [vmem:[#allocation2 + $0xd8] sm:$0xff] %v4530
      %4567 = vst [vmem:[#allocation2 + $0xe0] sm:$0xff] %v4531
      %4568 = vst [vmem:[#allocation2 + $0xe8] sm:$0xff] %v4532
      %4569 = vst [vmem:[#allocation2 + $0xf0] sm:$0xff] %v4533
      %4570 = vst [vmem:[#allocation2 + $0xf8] sm:$0xff] %v4534
      %4571 = vst [vmem:[#allocation2 + $0x100] sm:$0xff] %v4535
      %4572 = vst [vmem:[#allocation2 + $0x108] sm:$0xff] %v4536
      %4573 = vst [vmem:[#allocation2 + $0x110] sm:$0xff] %v4537
      %4574 = vst [vmem:[#allocation2 + $0x118] sm:$0xff] %v4538
      %v4575 = vld [vmem:[#allocation2] sm:$0xff]
      %v4576 = vld [vmem:[#allocation2 + $0x8] sm:$0xff]
      %v4577 = vld [vmem:[#allocation2 + $0x10] sm:$0xff]
      %v4578 = vld [vmem:[#allocation2 + $0x18] sm:$0xff]
      %v4579 = vld [vmem:[#allocation2 + $0x20] sm:$0xff]
      %v4580 = vld [vmem:[#allocation2 + $0x28] sm:$0xff]
      %v4581 = vld [vmem:[#allocation2 + $0x30] sm:$0xff]
      %v4582 = vld [vmem:[#allocation2 + $0x38] sm:$0xff]
      %v4583 = vld [vmem:[#allocation2 + $0x40] sm:$0xff]
      %v4584 = vld [vmem:[#allocation2 + $0x48] sm:$0xff]
      %v4585 = vld [vmem:[#allocation2 + $0x50] sm:$0xff]
      %v4586 = vld [vmem:[#allocation2 + $0x58] sm:$0xff]
      %v4587 = vld [vmem:[#allocation2 + $0x60] sm:$0xff]
      %v4588 = vld [vmem:[#allocation2 + $0x68] sm:$0xff]
      %v4589 = vld [vmem:[#allocation2 + $0x70] sm:$0xff]
      %v4590 = vld [vmem:[#allocation2 + $0x78] sm:$0xff]
      %v4591 = vld [vmem:[#allocation2 + $0x80] sm:$0xff]
      %v4592 = vld [vmem:[#allocation2 + $0x88] sm:$0xff]
      %v4593 = vld [vmem:[#allocation2 + $0x90] sm:$0xff]
      %v4594 = vld [vmem:[#allocation2 + $0x98] sm:$0xff]
      %v4595 = vld [vmem:[#allocation2 + $0xa0] sm:$0xff]
      %v4596 = vld [vmem:[#allocation2 + $0xa8] sm:$0xff]
      %v4597 = vld [vmem:[#allocation2 + $0xb0] sm:$0xff]
      %v4598 = vld [vmem:[#allocation2 + $0xb8] sm:$0xff]
      %v4599 = vld [vmem:[#allocation2 + $0xc0] sm:$0xff]
      %v4600 = vld [vmem:[#allocation2 + $0xc8] sm:$0xff]
      %v4601 = vld [vmem:[#allocation2 + $0xd0] sm:$0xff]
      %v4602 = vld [vmem:[#allocation2 + $0xd8] sm:$0xff]
      %v4603 = vld [vmem:[#allocation2 + $0xe0] sm:$0xff]
      %v4604 = vld [vmem:[#allocation2 + $0xe8] sm:$0xff]
      %v4605 = vld [vmem:[#allocation2 + $0xf0] sm:$0xff]
      %v4606 = vld [vmem:[#allocation2 + $0xf8] sm:$0xff]
      %v4607 = vld [vmem:[#allocation2 + $0x100] sm:$0xff]
      %v4608 = vld [vmem:[#allocation2 + $0x108] sm:$0xff]
      %v4609 = vld [vmem:[#allocation2 + $0x110] sm:$0xff]
      %v4610 = vld [vmem:[#allocation2 + $0x118] sm:$0xff]
      %v4611 = vmax.f32 %v4575, 0.0
      %v4612 = vmax.f32 %v4576, 0.0
      %v4613 = vmax.f32 %v4577, 0.0
      %v4614 = vmax.f32 %v4578, 0.0
      %v4615 = vmax.f32 %v4579, 0.0
      %v4616 = vmax.f32 %v4580, 0.0
      %v4617 = vmax.f32 %v4581, 0.0
      %v4618 = vmax.f32 %v4582, 0.0
      %v4619 = vmax.f32 %v4583, 0.0
      %v4620 = vmax.f32 %v4584, 0.0
      %v4621 = vmax.f32 %v4585, 0.0
      %v4622 = vmax.f32 %v4586, 0.0
      %v4623 = vmax.f32 %v4587, 0.0
      %v4624 = vmax.f32 %v4588, 0.0
      %v4625 = vmax.f32 %v4589, 0.0
      %v4626 = vmax.f32 %v4590, 0.0
      %v4627 = vmax.f32 %v4591, 0.0
      %v4628 = vmax.f32 %v4592, 0.0
      %v4629 = vmax.f32 %v4593, 0.0
      %v4630 = vmax.f32 %v4594, 0.0
      %v4631 = vmax.f32 %v4595, 0.0
      %v4632 = vmax.f32 %v4596, 0.0
      %v4633 = vmax.f32 %v4597, 0.0
      %v4634 = vmax.f32 %v4598, 0.0
      %v4635 = vmax.f32 %v4599, 0.0
      %v4636 = vmax.f32 %v4600, 0.0
      %v4637 = vmax.f32 %v4601, 0.0
      %v4638 = vmax.f32 %v4602, 0.0
      %v4639 = vmax.f32 %v4603, 0.0
      %v4640 = vmax.f32 %v4604, 0.0
      %v4641 = vmax.f32 %v4605, 0.0
      %v4642 = vmax.f32 %v4606, 0.0
      %v4643 = vmax.f32 %v4607, 0.0
      %v4644 = vmax.f32 %v4608, 0.0
      %v4645 = vmax.f32 %v4609, 0.0
      %v4646 = vmax.f32 %v4610, 0.0
      %v4647 = vpack.c.bf16 %v4611, %v4611
      %v4648 = vpack.c.bf16 %v4612, %v4612
      %v4649 = vpack.c.bf16 %v4613, %v4613
      %v4650 = vpack.c.bf16 %v4614, %v4614
      %v4651 = vpack.c.bf16 %v4615, %v4615
      %v4652 = vpack.c.bf16 %v4616, %v4616
      %v4653 = vpack.c.bf16 %v4617, %v4617
      %v4654 = vpack.c.bf16 %v4618, %v4618
      %v4655 = vpack.c.bf16 %v4619, %v4619
      %v4656 = vpack.c.bf16 %v4620, %v4620
      %v4657 = vpack.c.bf16 %v4621, %v4621
      %v4658 = vpack.c.bf16 %v4622, %v4622
      %v4659 = vpack.c.bf16 %v4623, %v4623
      %v4660 = vpack.c.bf16 %v4624, %v4624
      %v4661 = vpack.c.bf16 %v4625, %v4625
      %v4662 = vpack.c.bf16 %v4626, %v4626
      %v4663 = vpack.c.bf16 %v4627, %v4627
      %v4664 = vpack.c.bf16 %v4628, %v4628
      %v4665 = vpack.c.bf16 %v4629, %v4629
      %v4666 = vpack.c.bf16 %v4630, %v4630
      %v4667 = vpack.c.bf16 %v4631, %v4631
      %v4668 = vpack.c.bf16 %v4632, %v4632
      %v4669 = vpack.c.bf16 %v4633, %v4633
      %v4670 = vpack.c.bf16 %v4634, %v4634
      %v4671 = vpack.c.bf16 %v4635, %v4635
      %v4672 = vpack.c.bf16 %v4636, %v4636
      %v4673 = vpack.c.bf16 %v4637, %v4637
      %v4674 = vpack.c.bf16 %v4638, %v4638
      %v4675 = vpack.c.bf16 %v4639, %v4639
      %v4676 = vpack.c.bf16 %v4640, %v4640
      %v4677 = vpack.c.bf16 %v4641, %v4641
      %v4678 = vpack.c.bf16 %v4642, %v4642
      %v4679 = vpack.c.bf16 %v4643, %v4643
      %v4680 = vpack.c.bf16 %v4644, %v4644
      %v4681 = vpack.c.bf16 %v4645, %v4645
      %v4682 = vpack.c.bf16 %v4646, %v4646
      %vm4683 = vcmask 257024
      %4684 = vst.msk [vmem:[%s285] sm:$0xf] %vm4683, %v4647
      %4685 = vst.msk [vmem:[%s285 + $0x4] sm:$0xf] %vm4683, %v4648
      %4686 = vst.msk [vmem:[%s285 + $0x8] sm:$0xf] %vm4683, %v4649
      %4687 = vst.msk [vmem:[%s285 + $0xc] sm:$0xf] %vm4683, %v4650
      %4688 = vst.msk [vmem:[%s285 + $0x10] sm:$0xf] %vm4683, %v4651
      %4689 = vst.msk [vmem:[%s285 + $0x14] sm:$0xf] %vm4683, %v4652
      %4690 = vst.msk [vmem:[%s285 + $0x18] sm:$0xf] %vm4683, %v4653
      %4691 = vst.msk [vmem:[%s285 + $0x1c] sm:$0xf] %vm4683, %v4654
      %4692 = vst.msk [vmem:[%s285 + $0x20] sm:$0xf] %vm4683, %v4655
      %4693 = vst.msk [vmem:[%s285 + $0x24] sm:$0xf] %vm4683, %v4656
      %4694 = vst.msk [vmem:[%s285 + $0x28] sm:$0xf] %vm4683, %v4657
      %4695 = vst.msk [vmem:[%s285 + $0x2c] sm:$0xf] %vm4683, %v4658
      %4696 = vst.msk [vmem:[%s285 + $0x30] sm:$0xf] %vm4683, %v4659
      %4697 = vst.msk [vmem:[%s285 + $0x34] sm:$0xf] %vm4683, %v4660
      %4698 = vst.msk [vmem:[%s285 + $0x38] sm:$0xf] %vm4683, %v4661
      %4699 = vst.msk [vmem:[%s285 + $0x3c] sm:$0xf] %vm4683, %v4662
      %4700 = vst.msk [vmem:[%s285 + $0x40] sm:$0xf] %vm4683, %v4663
      %4701 = vst.msk [vmem:[%s285 + $0x44] sm:$0xf] %vm4683, %v4664
      %4702 = vst.msk [vmem:[%s285 + $0x48] sm:$0xf] %vm4683, %v4665
      %4703 = vst.msk [vmem:[%s285 + $0x4c] sm:$0xf] %vm4683, %v4666
      %4704 = vst.msk [vmem:[%s285 + $0x50] sm:$0xf] %vm4683, %v4667
      %4705 = vst.msk [vmem:[%s285 + $0x54] sm:$0xf] %vm4683, %v4668
      %4706 = vst.msk [vmem:[%s285 + $0x58] sm:$0xf] %vm4683, %v4669
      %4707 = vst.msk [vmem:[%s285 + $0x5c] sm:$0xf] %vm4683, %v4670
      %4708 = vst.msk [vmem:[%s285 + $0x60] sm:$0xf] %vm4683, %v4671
      %4709 = vst.msk [vmem:[%s285 + $0x64] sm:$0xf] %vm4683, %v4672
      %4710 = vst.msk [vmem:[%s285 + $0x68] sm:$0xf] %vm4683, %v4673
      %4711 = vst.msk [vmem:[%s285 + $0x6c] sm:$0xf] %vm4683, %v4674
      %4712 = vst.msk [vmem:[%s285 + $0x70] sm:$0xf] %vm4683, %v4675
      %4713 = vst.msk [vmem:[%s285 + $0x74] sm:$0xf] %vm4683, %v4676
      %4714 = vst.msk [vmem:[%s285 + $0x78] sm:$0xf] %vm4683, %v4677
      %4715 = vst.msk [vmem:[%s285 + $0x7c] sm:$0xf] %vm4683, %v4678
      %4716 = vst.msk [vmem:[%s285 + $0x80] sm:$0xf] %vm4683, %v4679
      %4717 = vst.msk [vmem:[%s285 + $0x84] sm:$0xf] %vm4683, %v4680
      %4718 = vst.msk [vmem:[%s285 + $0x88] sm:$0xf] %vm4683, %v4681
      %4719 = vst.msk [vmem:[%s285 + $0x8c] sm:$0xf] %vm4683, %v4682
      %v4720 = vld [vmem:[%s3] sm:$0x3f]
      %4722 = vst [vmem:[#allocation1] ss:$4 sm:$0xff] %v4720
      %v4723 = vld.sshfl [vmem:[#allocation1] sm:$0xff pattern:$0x73625140]
      %v4724 = vld.sshfl [vmem:[#allocation1 + $0x8] sm:$0xff pattern:$0x73625140]
      %v4725 = vld.sshfl [vmem:[#allocation1 + $0x10] sm:$0xff pattern:$0x73625140]
      %v4764 = vunpack.c.l.b16 %v4647
      %v4765 = vunpack.c.l.b16 %v4648
      %v4766 = vunpack.c.l.b16 %v4649
      %v4767 = vunpack.c.l.b16 %v4650
      %v4768 = vunpack.c.l.b16 %v4651
      %v4769 = vunpack.c.l.b16 %v4652
      %v4770 = vunpack.c.l.b16 %v4653
      %v4771 = vunpack.c.l.b16 %v4654
      %v4772 = vunpack.c.l.b16 %v4655
      %v4773 = vunpack.c.l.b16 %v4656
      %v4774 = vunpack.c.l.b16 %v4657
      %v4775 = vunpack.c.l.b16 %v4658
      %v4776 = vunpack.c.l.b16 %v4659
      %v4777 = vunpack.c.l.b16 %v4660
      %v4778 = vunpack.c.l.b16 %v4661
      %v4779 = vunpack.c.l.b16 %v4662
      %v4780 = vunpack.c.l.b16 %v4663
      %v4781 = vunpack.c.l.b16 %v4664
      %v4782 = vunpack.c.l.b16 %v4665
      %v4783 = vunpack.c.l.b16 %v4666
      %v4784 = vunpack.c.l.b16 %v4667
      %v4785 = vunpack.c.l.b16 %v4668
      %v4786 = vunpack.c.l.b16 %v4669
      %v4787 = vunpack.c.l.b16 %v4670
      %v4788 = vunpack.c.l.b16 %v4671
      %v4789 = vunpack.c.l.b16 %v4672
      %v4790 = vunpack.c.l.b16 %v4673
      %v4791 = vunpack.c.l.b16 %v4674
      %v4792 = vunpack.c.l.b16 %v4675
      %v4793 = vunpack.c.l.b16 %v4676
      %v4794 = vunpack.c.l.b16 %v4677
      %v4795 = vunpack.c.l.b16 %v4678
      %v4796 = vunpack.c.l.b16 %v4679
      %v4797 = vunpack.c.l.b16 %v4680
      %v4798 = vunpack.c.l.b16 %v4681
      %v4799 = vunpack.c.l.b16 %v4682
      %v4800 = vpack.c.b16 %v4765, %v4764
      %v4801 = vpack.c.b16 %v4767, %v4766
      %v4802 = vpack.c.b16 %v4769, %v4768
      %v4803 = vpack.c.b16 %v4771, %v4770
      %v4804 = vpack.c.b16 %v4773, %v4772
      %v4805 = vpack.c.b16 %v4775, %v4774
      %v4806 = vpack.c.b16 %v4777, %v4776
      %v4807 = vpack.c.b16 %v4779, %v4778
      %v4808 = vpack.c.b16 %v4781, %v4780
      %v4809 = vpack.c.b16 %v4783, %v4782
      %v4810 = vpack.c.b16 %v4785, %v4784
      %v4811 = vpack.c.b16 %v4787, %v4786
      %v4812 = vpack.c.b16 %v4789, %v4788
      %v4813 = vpack.c.b16 %v4791, %v4790
      %v4814 = vpack.c.b16 %v4793, %v4792
      %v4815 = vpack.c.b16 %v4795, %v4794
      %v4816 = vpack.c.b16 %v4797, %v4796
      %v4817 = vpack.c.b16 %v4799, %v4798
      %vm4836 = vcmask 261120
      %v4837 = vsel %vm4836, %v4725, 0
      %4839 = vmatpush.bf16.msra.mxu0 %v4807
      %4840 = vmatpush.bf16.msra.mxu0 %v4806
      %4841 = vmatpush.bf16.msra.mxu0 %v4805
      %4842 = vmatpush.bf16.msra.mxu0 %v4804
      %4843 = vmatpush.bf16.msra.mxu0 %v4803
      %4844 = vmatpush.bf16.msra.mxu0 %v4802
      %4845 = vmatpush.bf16.msra.mxu0 %v4801
      %4846 = vmatpush.bf16.msra.mxu0 %v4800
      %4847 = vmatmul.bf16.gmra.mxu0 %v4723
      %v4848 = vpop.f32.mrf.mxu0
      %v4849 = vadd.f32 0.0, %v4848
      %v4850 = vpop.f32.mrf.mxu0
      %4851 = vdwg.mxu0
      %4852 = vmatpush.bf16.msra.mxu0 %v4815
      %4853 = vmatpush.bf16.msra.mxu0 %v4814
      %4854 = vmatpush.bf16.msra.mxu0 %v4813
      %4855 = vmatpush.bf16.msra.mxu0 %v4812
      %4856 = vmatpush.bf16.msra.mxu0 %v4811
      %4857 = vmatpush.bf16.msra.mxu0 %v4810
      %4858 = vmatpush.bf16.msra.mxu0 %v4809
      %4859 = vmatpush.bf16.msra.mxu0 %v4808
      %4860 = vmatmul.bf16.gmra.mxu0 %v4724
      %v4861 = vpop.f32.mrf.mxu0
      %v4862 = vadd.f32 %v4849, %v4861
      %v4863 = vpop.f32.mrf.mxu0
      %4864 = vdwg.mxu0
      %4865 = vmatpush.bf16.msra.mxu0 0
      %4866 = vmatpush.bf16.msra.mxu0 0
      %4867 = vmatpush.bf16.msra.mxu0 0
      %4868 = vmatpush.bf16.msra.mxu0 0
      %4869 = vmatpush.bf16.msra.mxu0 0
      %4870 = vmatpush.bf16.msra.mxu0 0
      %4871 = vmatpush.bf16.msra.mxu0 %v4817
      %4872 = vmatpush.bf16.msra.mxu0 %v4816
      %4873 = vmatmul.bf16.gmra.mxu0 %v4837
      %v4874 = vpop.f32.mrf.mxu0
      %v4875 = vadd.f32 %v4862, %v4874
      %v4876 = vpop.f32.mrf.mxu0
      %4877 = vdwg.mxu0
      %v4878 = vpack.c.bf16 %v4875, %v4875
      %v4879 = vld [vmem:[%s5] sm:$0x1]
      %v4880 = vld [vmem:[%s4] sm:$0xf]
      %v4881 = vld [vmem:[%s4 + $0x4] sm:$0xf]
      %v4882 = vld [vmem:[%s4 + $0x8] sm:$0xf]
      %v4883 = vld [vmem:[%s4 + $0xc] sm:$0xf]
      %v4884 = vld [vmem:[%s4 + $0x10] sm:$0xf]
      %v4885 = vld [vmem:[%s4 + $0x14] sm:$0xf]
      %v4886 = vld [vmem:[%s4 + $0x18] sm:$0xf]
      %v4887 = vld [vmem:[%s4 + $0x1c] sm:$0xf]
      %v4888 = vld [vmem:[%s4 + $0x20] sm:$0xf]
      %v4889 = vld [vmem:[%s4 + $0x24] sm:$0xf]
      %v4890 = vld [vmem:[%s4 + $0x28] sm:$0xf]
      %v4891 = vld [vmem:[%s4 + $0x2c] sm:$0xf]
      %v4892 = vld [vmem:[%s4 + $0x30] sm:$0xf]
      %v4893 = vld [vmem:[%s4 + $0x34] sm:$0xf]
      %v4894 = vld [vmem:[%s4 + $0x38] sm:$0xf]
      %v4895 = vld [vmem:[%s4 + $0x3c] sm:$0xf]
      %v4912 = vunpack.c.l.b16 %v4880
      %v4913 = vunpack.c.l.b16 %v4881
      %v4914 = vunpack.c.l.b16 %v4882
      %v4915 = vunpack.c.l.b16 %v4883
      %v4916 = vunpack.c.l.b16 %v4884
      %v4917 = vunpack.c.l.b16 %v4885
      %v4918 = vunpack.c.l.b16 %v4886
      %v4919 = vunpack.c.l.b16 %v4887
      %v4920 = vunpack.c.l.b16 %v4888
      %v4921 = vunpack.c.l.b16 %v4889
      %v4922 = vunpack.c.l.b16 %v4890
      %v4923 = vunpack.c.l.b16 %v4891
      %v4924 = vunpack.c.l.b16 %v4892
      %v4925 = vunpack.c.l.b16 %v4893
      %v4926 = vunpack.c.l.b16 %v4894
      %v4927 = vunpack.c.l.b16 %v4895
      %v4928 = vpack.c.b16 %v4913, %v4912
      %v4929 = vpack.c.b16 %v4915, %v4914
      %v4930 = vpack.c.b16 %v4917, %v4916
      %v4931 = vpack.c.b16 %v4919, %v4918
      %v4932 = vpack.c.b16 %v4921, %v4920
      %v4933 = vpack.c.b16 %v4923, %v4922
      %v4934 = vpack.c.b16 %v4925, %v4924
      %v4935 = vpack.c.b16 %v4927, %v4926
      %4944 = vmatpush.bf16.msra.mxu0 %v4935
      %4945 = vmatpush.bf16.msra.mxu0 %v4934
      %4946 = vmatpush.bf16.msra.mxu0 %v4933
      %4947 = vmatpush.bf16.msra.mxu0 %v4932
      %4948 = vmatpush.bf16.msra.mxu0 %v4931
      %4949 = vmatpush.bf16.msra.mxu0 %v4930
      %4950 = vmatpush.bf16.msra.mxu0 %v4929
      %4951 = vmatpush.bf16.msra.mxu0 %v4928
      %4952 = vmatmul.bf16.gmra.mxu0 %v4878
      %v4953 = vpop.f32.mrf.mxu0
      %v4954 = vadd.f32 0.0, %v4953
      %v4955 = vpop.f32.mrf.mxu0
      %4956 = vdwg.mxu0
      %v4957 = vadd.f32 %v4879, %v4954
      %s4958 = scalar_lea.vmem %s4, 64
      %v4959 = vld [vmem:[%s4958] sm:$0xf]
      %v4960 = vld [vmem:[%s4958 + $0x4] sm:$0xf]
      %v4961 = vld [vmem:[%s4958 + $0x8] sm:$0xf]
      %v4962 = vld [vmem:[%s4958 + $0xc] sm:$0xf]
      %v4963 = vld [vmem:[%s4958 + $0x10] sm:$0xf]
      %v4964 = vld [vmem:[%s4958 + $0x14] sm:$0xf]
      %v4965 = vld [vmem:[%s4958 + $0x18] sm:$0xf]
      %v4966 = vld [vmem:[%s4958 + $0x1c] sm:$0xf]
      %v4967 = vld [vmem:[%s4958 + $0x20] sm:$0xf]
      %v4968 = vld [vmem:[%s4958 + $0x24] sm:$0xf]
      %v4969 = vld [vmem:[%s4958 + $0x28] sm:$0xf]
      %v4970 = vld [vmem:[%s4958 + $0x2c] sm:$0xf]
      %v4971 = vld [vmem:[%s4958 + $0x30] sm:$0xf]
      %v4972 = vld [vmem:[%s4958 + $0x34] sm:$0xf]
      %v4973 = vld [vmem:[%s4958 + $0x38] sm:$0xf]
      %v4974 = vld [vmem:[%s4958 + $0x3c] sm:$0xf]
      %v4976 = vunpack.c.l.b16 %v4878
      %v4977 = vpack.c.b16 %v4976, %v4976
      %v4979 = vshrl.u32 %v4977, 16
      %v4998 = vunpack.c.l.b16 %v4959
      %v4999 = vunpack.c.l.b16 %v4960
      %v5000 = vunpack.c.l.b16 %v4961
      %v5001 = vunpack.c.l.b16 %v4962
      %v5002 = vunpack.c.l.b16 %v4963
      %v5003 = vunpack.c.l.b16 %v4964
      %v5004 = vunpack.c.l.b16 %v4965
      %v5005 = vunpack.c.l.b16 %v4966
      %v5006 = vunpack.c.l.b16 %v4967
      %v5007 = vunpack.c.l.b16 %v4968
      %v5008 = vunpack.c.l.b16 %v4969
      %v5009 = vunpack.c.l.b16 %v4970
      %v5010 = vunpack.c.l.b16 %v4971
      %v5011 = vunpack.c.l.b16 %v4972
      %v5012 = vunpack.c.l.b16 %v4973
      %v5013 = vunpack.c.l.b16 %v4974
      %v5014 = vpack.c.b16 %v4999, %v4998
      %v5015 = vpack.c.b16 %v5001, %v5000
      %v5016 = vpack.c.b16 %v5003, %v5002
      %v5017 = vpack.c.b16 %v5005, %v5004
      %v5018 = vpack.c.b16 %v5007, %v5006
      %v5019 = vpack.c.b16 %v5009, %v5008
      %v5020 = vpack.c.b16 %v5011, %v5010
      %v5021 = vpack.c.b16 %v5013, %v5012
      %5030 = vmatpush.bf16.msra.mxu0 %v5021
      %5031 = vmatpush.bf16.msra.mxu0 %v5020
      %5032 = vmatpush.bf16.msra.mxu0 %v5019
      %5033 = vmatpush.bf16.msra.mxu0 %v5018
      %5034 = vmatpush.bf16.msra.mxu0 %v5017
      %5035 = vmatpush.bf16.msra.mxu0 %v5016
      %5036 = vmatpush.bf16.msra.mxu0 %v5015
      %5037 = vmatpush.bf16.msra.mxu0 %v5014
      %5038 = vmatmul.bf16.gmra.mxu0 %v4979
      %v5039 = vpop.f32.mrf.mxu0
      %v5040 = vadd.f32 0.0, %v5039
      %v5041 = vpop.f32.mrf.mxu0
      %5042 = vdwg.mxu0
      %v5043 = vadd.f32 %v4957, %v5040
      %s5044 = scalar_lea.vmem %s4, 128
      %v5045 = vld [vmem:[%s5044] sm:$0xf]
      %v5046 = vld [vmem:[%s5044 + $0x4] sm:$0xf]
      %v5047 = vld [vmem:[%s5044 + $0x8] sm:$0xf]
      %v5048 = vld [vmem:[%s5044 + $0xc] sm:$0xf]
      %v5049 = vld [vmem:[%s5044 + $0x10] sm:$0xf]
      %v5050 = vld [vmem:[%s5044 + $0x14] sm:$0xf]
      %v5051 = vld [vmem:[%s5044 + $0x18] sm:$0xf]
      %v5052 = vld [vmem:[%s5044 + $0x1c] sm:$0xf]
      %v5053 = vld [vmem:[%s5044 + $0x20] sm:$0xf]
      %v5054 = vld [vmem:[%s5044 + $0x24] sm:$0xf]
      %v5055 = vld [vmem:[%s5044 + $0x28] sm:$0xf]
      %v5056 = vld [vmem:[%s5044 + $0x2c] sm:$0xf]
      %v5057 = vld [vmem:[%s5044 + $0x30] sm:$0xf]
      %v5058 = vld [vmem:[%s5044 + $0x34] sm:$0xf]
      %v5059 = vld [vmem:[%s5044 + $0x38] sm:$0xf]
      %v5060 = vld [vmem:[%s5044 + $0x3c] sm:$0xf]
      %v5061 = vrot.slane %v4977, 1
      %v5079 = vunpack.c.l.b16 %v5045
      %v5080 = vunpack.c.l.b16 %v5046
      %v5081 = vunpack.c.l.b16 %v5047
      %v5082 = vunpack.c.l.b16 %v5048
      %v5083 = vunpack.c.l.b16 %v5049
      %v5084 = vunpack.c.l.b16 %v5050
      %v5085 = vunpack.c.l.b16 %v5051
      %v5086 = vunpack.c.l.b16 %v5052
      %v5087 = vunpack.c.l.b16 %v5053
      %v5088 = vunpack.c.l.b16 %v5054
      %v5089 = vunpack.c.l.b16 %v5055
      %v5090 = vunpack.c.l.b16 %v5056
      %v5091 = vunpack.c.l.b16 %v5057
      %v5092 = vunpack.c.l.b16 %v5058
      %v5093 = vunpack.c.l.b16 %v5059
      %v5094 = vunpack.c.l.b16 %v5060
      %v5095 = vpack.c.b16 %v5080, %v5079
      %v5096 = vpack.c.b16 %v5082, %v5081
      %v5097 = vpack.c.b16 %v5084, %v5083
      %v5098 = vpack.c.b16 %v5086, %v5085
      %v5099 = vpack.c.b16 %v5088, %v5087
      %v5100 = vpack.c.b16 %v5090, %v5089
      %v5101 = vpack.c.b16 %v5092, %v5091
      %v5102 = vpack.c.b16 %v5094, %v5093
      %5111 = vmatpush.bf16.msra.mxu0 %v5102
      %5112 = vmatpush.bf16.msra.mxu0 %v5101
      %5113 = vmatpush.bf16.msra.mxu0 %v5100
      %5114 = vmatpush.bf16.msra.mxu0 %v5099
      %5115 = vmatpush.bf16.msra.mxu0 %v5098
      %5116 = vmatpush.bf16.msra.mxu0 %v5097
      %5117 = vmatpush.bf16.msra.mxu0 %v5096
      %5118 = vmatpush.bf16.msra.mxu0 %v5095
      %5119 = vmatmul.bf16.gmra.mxu0 %v5061
      %v5120 = vpop.f32.mrf.mxu0
      %v5121 = vadd.f32 0.0, %v5120
      %v5122 = vpop.f32.mrf.mxu0
      %5123 = vdwg.mxu0
      %v5124 = vadd.f32 %v5043, %v5121
      %s5125 = scalar_lea.vmem %s4, 192
      %v5126 = vld [vmem:[%s5125] sm:$0xf]
      %v5127 = vld [vmem:[%s5125 + $0x4] sm:$0xf]
      %v5128 = vld [vmem:[%s5125 + $0x8] sm:$0xf]
      %v5129 = vld [vmem:[%s5125 + $0xc] sm:$0xf]
      %v5130 = vld [vmem:[%s5125 + $0x10] sm:$0xf]
      %v5131 = vld [vmem:[%s5125 + $0x14] sm:$0xf]
      %v5132 = vld [vmem:[%s5125 + $0x18] sm:$0xf]
      %v5133 = vld [vmem:[%s5125 + $0x1c] sm:$0xf]
      %v5134 = vld [vmem:[%s5125 + $0x20] sm:$0xf]
      %v5135 = vld [vmem:[%s5125 + $0x24] sm:$0xf]
      %v5136 = vld [vmem:[%s5125 + $0x28] sm:$0xf]
      %v5137 = vld [vmem:[%s5125 + $0x2c] sm:$0xf]
      %v5138 = vld [vmem:[%s5125 + $0x30] sm:$0xf]
      %v5139 = vld [vmem:[%s5125 + $0x34] sm:$0xf]
      %v5140 = vld [vmem:[%s5125 + $0x38] sm:$0xf]
      %v5141 = vld [vmem:[%s5125 + $0x3c] sm:$0xf]
      %v5142 = vrot.slane %v4979, 1
      %v5160 = vunpack.c.l.b16 %v5126
      %v5161 = vunpack.c.l.b16 %v5127
      %v5162 = vunpack.c.l.b16 %v5128
      %v5163 = vunpack.c.l.b16 %v5129
      %v5164 = vunpack.c.l.b16 %v5130
      %v5165 = vunpack.c.l.b16 %v5131
      %v5166 = vunpack.c.l.b16 %v5132
      %v5167 = vunpack.c.l.b16 %v5133
      %v5168 = vunpack.c.l.b16 %v5134
      %v5169 = vunpack.c.l.b16 %v5135
      %v5170 = vunpack.c.l.b16 %v5136
      %v5171 = vunpack.c.l.b16 %v5137
      %v5172 = vunpack.c.l.b16 %v5138
      %v5173 = vunpack.c.l.b16 %v5139
      %v5174 = vunpack.c.l.b16 %v5140
      %v5175 = vunpack.c.l.b16 %v5141
      %v5176 = vpack.c.b16 %v5161, %v5160
      %v5177 = vpack.c.b16 %v5163, %v5162
      %v5178 = vpack.c.b16 %v5165, %v5164
      %v5179 = vpack.c.b16 %v5167, %v5166
      %v5180 = vpack.c.b16 %v5169, %v5168
      %v5181 = vpack.c.b16 %v5171, %v5170
      %v5182 = vpack.c.b16 %v5173, %v5172
      %v5183 = vpack.c.b16 %v5175, %v5174
      %5192 = vmatpush.bf16.msra.mxu0 %v5183
      %5193 = vmatpush.bf16.msra.mxu0 %v5182
      %5194 = vmatpush.bf16.msra.mxu0 %v5181
      %5195 = vmatpush.bf16.msra.mxu0 %v5180
      %5196 = vmatpush.bf16.msra.mxu0 %v5179
      %5197 = vmatpush.bf16.msra.mxu0 %v5178
      %5198 = vmatpush.bf16.msra.mxu0 %v5177
      %5199 = vmatpush.bf16.msra.mxu0 %v5176
      %5200 = vmatmul.bf16.gmra.mxu0 %v5142
      %v5201 = vpop.f32.mrf.mxu0
      %v5202 = vadd.f32 0.0, %v5201
      %v5203 = vpop.f32.mrf.mxu0
      %5204 = vdwg.mxu0
      %v5205 = vadd.f32 %v5124, %v5202
      %v5207 = vperm.slane %v5205, 0
      %5209 = vst [vmem:[%s290] sm:$0xff] %v5207
      %s5210 = smul.u32 36, %s19
      %p5211 = scmp.lt.s32.totalorder %s5210, 71
      %s5212 = scalar_select %p5211, %s5210, 71
      %s5213 = smul.addr %s5212, 4
      %s5214 = scalar_lea.vmem %s6, %s5213
      %p5215 = scmp.lt.s32.totalorder %s19, 1
      %s5216 = scalar_select %p5215, %s19, 1
      %s5217 = smul.addr %s5216, 8
      %s5218 = scalar_lea.vmem %s7, %s5217
      // Predicated region
      $region45: #{face_encoder_forward.1} parent=43 // pred_check
        %p5219 = pneg %p168
      $region46: #{face_encoder_forward.1} parent=43 // pred_check_branch
        %5221 = sbr.rel (%p5219) target = $region48
      $region47: #{face_encoder_forward.1} parent=43 // pred_region
        %s5222 = smul.u32 36, %s19
      $region48: #{face_encoder_forward.1} parent=43 // pred_fallthru
        _
      // Predicated region
      $region49: #{face_encoder_forward.1} parent=43 // pred_check
        %p5223 = pneg %p194
      $region50: #{face_encoder_forward.1} parent=43 // pred_check_branch
        %5225 = sbr.rel (%p5223) target = $region52
      $region51: #{face_encoder_forward.1} parent=43 // pred_region
        _
      $region52: #{face_encoder_forward.1} parent=43 // pred_fallthru
        _
    $region44: #{face_encoder_forward.1} parent=5 // pred_fallthru
      _
    %p5226 = scmp.le.s32.totalorder 2, %s14
    // Predicated region
    $region53: #{face_encoder_forward.1} parent=5 // pred_check
      %p5227 = pneg %p5226
    $region54: #{face_encoder_forward.1} parent=5 // pred_check_branch
      %5229 = sbr.rel (%p5227) target = $region56
    $region55: #{face_encoder_forward.1} parent=5 // pred_region
      %s5230 = ssub.s32 %s14, 2
      // Predicated region
      $region57: #{face_encoder_forward.1} parent=55 // pred_check
        %p5231 = pneg %p174
      $region58: #{face_encoder_forward.1} parent=55 // pred_check_branch
        %5233 = sbr.rel (%p5231) target = $region60
      $region59: #{face_encoder_forward.1} parent=55 // pred_region
        %s5234 = smul.u32 36, %s20
        %p5235 = scmp.lt.s32.totalorder %s5234, 71
        %s5236 = scalar_select %p5235, %s5234, 71
        %s5237 = smul.addr %s5236, 4
        %s5238 = scalar_lea.vmem %s6, %s5237
      $region60: #{face_encoder_forward.1} parent=55 // pred_fallthru
        _
      // Predicated region
      $region61: #{face_encoder_forward.1} parent=55 // pred_check
        %p5239 = pneg %p200
      $region62: #{face_encoder_forward.1} parent=55 // pred_check_branch
        %5241 = sbr.rel (%p5239) target = $region64
      $region63: #{face_encoder_forward.1} parent=55 // pred_region
        %p5242 = scmp.lt.s32.totalorder %s20, 1
        %s5243 = scalar_select %p5242, %s20, 1
        %s5244 = smul.addr %s5243, 8
        %s5245 = scalar_lea.vmem %s7, %s5244
      $region64: #{face_encoder_forward.1} parent=55 // pred_fallthru
        _
    $region56: #{face_encoder_forward.1} parent=5 // pred_fallthru
      _
  $region6: #{face_encoder_forward.1} parent=0 // loop_footer
    %s18 = sadd.s32 1, %s14
  $region7: #{face_encoder_forward.1} parent=0 // loop_footer_branch
    %13 = sbr.rel target = $region3
  $region8: #{face_encoder_forward.1} parent=0 // loop_exit
    _

</llo_original>
